<compile_context>
chip_gen: v7x
topology: tpu7x:2x2x1
jax: 0.10.0
libtpu: 0.0.40
codegen_flags: <defaults>
</compile_context>

<pallas_src>
import numpy as np
import jax
import jax.numpy as jnp
from jax.experimental import pallas as pl
from jax.experimental.pallas import tpu as pltpu

# ---- model config (small, consistent with the module) ----
EMBED_DIM = 32
NUM_HEADS = 4
FFN_HIDDEN = 64
NUM_LAYERS = 2
SEQ = 8
BATCH = 2
LN_EPS = 1e-5
HEAD_DIM = EMBED_DIM // NUM_HEADS
N_TOK = SEQ * BATCH

# ---- packed parameter slab layout (per layer); all starts 8-sublane / 128-lane aligned ----
SLAB_ROWS = 64
SLAB_LANES = 384
WIN_ROW, WIN_LANE = 0, 0        # in_proj^T  (E, 3E)  rows 0:32,  lanes 0:96
W1_ROW, W1_LANE = 0, 128        # ffn1^T     (E, FFN) rows 0:32,  lanes 128:192
WOUT_ROW, WOUT_LANE = 32, 128   # out_proj^T (E, E)   rows 32:64, lanes 128:160
W2_ROW, W2_LANE = 0, 256        # ffn2^T     (FFN, E) rows 0:64,  lanes 256:288
VEC_ROW, VEC_W = 32, 128        # 8 packed bias/LN vectors        rows 32:40, lanes 0:128
_VEC_ORDER = ("b_in", "b_out", "b1", "b2", "g1", "be1", "g2", "be2")


def _layer_norm(x, gamma, beta):
    # x: (N, E); gamma/beta: (E,)
    mu = jnp.mean(x, axis=-1, keepdims=True)
    xc = x - mu
    var = jnp.mean(xc * xc, axis=-1, keepdims=True)
    return xc * jax.lax.rsqrt(var + LN_EPS) * gamma + beta


def _gelu_exact(x):
    # PyTorch nn.GELU() default: exact erf formulation.
    return 0.5 * x * (1.0 + jax.lax.erf(x * (1.0 / jnp.sqrt(2.0).astype(x.dtype))))


def fused_encoder_kernel(x_ref, p_ref, o_ref):
    """All layers, all batch elements, one invocation (no grid).

    x_ref : (S, B, E)      seq-first input, consumed directly (no host relayout)
    p_ref : (L, 64, 384)   packed parameter slab (see layout constants above)
    o_ref : (S, B, E)
    """
    E, H, Dh, FFN = EMBED_DIM, NUM_HEADS, HEAD_DIM, FFN_HIDDEN
    N = N_TOK
    scale = 1.0 / (Dh ** 0.5)

    # (S, B, E) -> (S*B, E); rows stay in (s, b) order. Every per-token op below is row-order
    # independent; attention handles batching via an additive mask, so no transposes are needed.
    y = x_ref[...].reshape(N, E)

    # Same-batch additive mask: token row r belongs to batch (r % B). Computed once, reused by every
    # head of every layer. Cross-batch score -> -1e30 -> exp underflows to exactly 0.
    ri = jax.lax.broadcasted_iota(jnp.int32, (N, N), 0)
    ci = jax.lax.broadcasted_iota(jnp.int32, (N, N), 1)
    mask_bias = jnp.where((ri % BATCH) == (ci % BATCH), 0.0, -1e30).astype(jnp.float32)

    for l in range(NUM_LAYERS):                      # static unroll: both blocks fused
        win_t = p_ref[l, WIN_ROW:WIN_ROW + E, WIN_LANE:WIN_LANE + 3 * E]    # (E, 3E)
        w1_t = p_ref[l, W1_ROW:W1_ROW + E, W1_LANE:W1_LANE + FFN]           # (E, FFN)
        wout_t = p_ref[l, WOUT_ROW:WOUT_ROW + E, WOUT_LANE:WOUT_LANE + E]   # (E, E)
        w2_t = p_ref[l, W2_ROW:W2_ROW + FFN, W2_LANE:W2_LANE + E]           # (FFN, E)
        vec = p_ref[l, VEC_ROW:VEC_ROW + 8, 0:VEC_W]                        # (8, 128)

        # ---- multi-head self attention: fused QKV projection (one MXU matmul) ----
        qkv = jnp.dot(y, win_t, preferred_element_type=jnp.float32) + vec[0, 0:3 * E]

        attn = jnp.zeros((N, E), jnp.float32)
        for h in range(H):                           # static unroll, H = 4
            qh = qkv[:, h * Dh:(h + 1) * Dh]                      # (N, Dh)
            kh = qkv[:, E + h * Dh:E + (h + 1) * Dh]              # (N, Dh)
            vh = qkv[:, 2 * E + h * Dh:2 * E + (h + 1) * Dh]      # (N, Dh)
            sc = jnp.einsum("qd,kd->qk", qh, kh,
                            preferred_element_type=jnp.float32) * scale + mask_bias  # (N, N)
            m = jnp.max(sc, axis=-1, keepdims=True)
            p = jnp.exp(sc - m)
            p = p / jnp.sum(p, axis=-1, keepdims=True)            # exact divide (parity; not a bottleneck)
            ctx_h = jnp.dot(p, vh, preferred_element_type=jnp.float32)                # (N, Dh)
            # out_proj folded in per head: no lane concat of 8-lane head fragments.
            attn = attn + jnp.dot(ctx_h, wout_t[h * Dh:(h + 1) * Dh, :],
                                  preferred_element_type=jnp.float32)
        attn = attn + vec[1, 0:E]

        # ---- residual 1 + LayerNorm 1 ----
        n1 = _layer_norm(y + attn, vec[4, 0:E], vec[5, 0:E])

        # ---- FFN (Linear -> exact GELU -> Linear); Dropout = identity (inference) ----
        hid = _gelu_exact(jnp.dot(n1, w1_t, preferred_element_type=jnp.float32) + vec[2, 0:FFN])
        ffn = jnp.dot(hid, w2_t, preferred_element_type=jnp.float32) + vec[3, 0:E]

        # ---- residual 2 + LayerNorm 2 ----
        y = _layer_norm(n1 + ffn, vec[6, 0:E], vec[7, 0:E])

    o_ref[...] = y.reshape(SEQ, BATCH, E)


# ---------------- host-side, ONE-TIME (numpy) parameter packing ----------------
def pack_params(params_list):
    """Pack all per-layer weights (pre-transposed) + biases/LN params into one (L, 64, 384) f32 slab."""
    L = len(params_list)
    slab = np.zeros((L, SLAB_ROWS, SLAB_LANES), np.float32)
    for l, p in enumerate(params_list):
        slab[l, WIN_ROW:WIN_ROW + EMBED_DIM, WIN_LANE:WIN_LANE + 3 * EMBED_DIM] = np.asarray(p["w_in"]).T
        slab[l, W1_ROW:W1_ROW + EMBED_DIM, W1_LANE:W1_LANE + FFN_HIDDEN] = np.asarray(p["w1"]).T
        slab[l, WOUT_ROW:WOUT_ROW + EMBED_DIM, WOUT_LANE:WOUT_LANE + EMBED_DIM] = np.asarray(p["w_out"]).T
        slab[l, W2_ROW:W2_ROW + FFN_HIDDEN, W2_LANE:W2_LANE + EMBED_DIM] = np.asarray(p["w2"]).T
        for j, name in enumerate(_VEC_ORDER):
            vv = np.asarray(p[name])
            slab[l, VEC_ROW + j, 0:vv.shape[0]] = vv
    return jnp.asarray(slab)


def transformer_encoder_layer(x_sbe, params_slab):
    """x_sbe: (S, B, E) seq-first (PyTorch convention); params_slab: pre-packed (L, 64, 384)."""
    S, B, E = x_sbe.shape
    vmem = pltpu.MemorySpace.VMEM
    return pl.pallas_call(
        fused_encoder_kernel,
        out_shape=jax.ShapeDtypeStruct((S, B, E), jnp.float32),
        in_specs=[pl.BlockSpec(memory_space=vmem), pl.BlockSpec(memory_space=vmem)],
        out_specs=pl.BlockSpec(memory_space=vmem),
    )(x_sbe, params_slab)


# ---------------- pure-JAX reference (same math, unpacked params) ----------------
def _ref_block(x_bse, p):
    E, H, Dh = EMBED_DIM, NUM_HEADS, HEAD_DIM

    def one(x):  # x: (S, E)
        wi, bi = p["w_in"], p["b_in"]
        q = x @ wi[0:E].T + bi[0:E]
        k = x @ wi[E:2 * E].T + bi[E:2 * E]
        v = x @ wi[2 * E:].T + bi[2 * E:]
        outs = []
        for h in range(H):
            qh, kh, vh = (t[:, h * Dh:(h + 1) * Dh] for t in (q, k, v))
            sc = qh @ kh.T / (Dh ** 0.5)
            pr = jax.nn.softmax(sc, axis=-1)
            outs.append(pr @ vh)
        ctx = jnp.concatenate(outs, axis=-1)
        attn = ctx @ p["w_out"].T + p["b_out"]
        n1 = _layer_norm(x + attn, p["g1"], p["be1"])
        hid = jax.nn.gelu(n1 @ p["w1"].T + p["b1"], approximate=False)
        ffn = hid @ p["w2"].T + p["b2"]
        return _layer_norm(n1 + ffn, p["g2"], p["be2"])

    return jax.vmap(one)(x_bse)


def _ref_forward(x_sbe, params_list):
    out = jnp.transpose(x_sbe, (1, 0, 2))
    for p in params_list:
        out = _ref_block(out, p)
    return jnp.transpose(out, (1, 0, 2))


# ---------------- deterministic parameter init ----------------
def init_block_params(key):
    ks = jax.random.split(key, 8)
    E, Hd = EMBED_DIM, FFN_HIDDEN
    f32 = jnp.float32
    return {
        "w_in":  jax.random.normal(ks[0], (3 * E, E), f32) * 0.05,
        "b_in":  jax.random.normal(ks[1], (3 * E,), f32) * 0.01,
        "w_out": jax.random.normal(ks[2], (E, E), f32) * 0.05,
        "b_out": jax.random.normal(ks[3], (E,), f32) * 0.01,
        "g1":    jnp.ones((E,), f32),
        "be1":   jnp.zeros((E,), f32),
        "w1":    jax.random.normal(ks[4], (Hd, E), f32) * 0.05,
        "b1":    jax.random.normal(ks[5], (Hd,), f32) * 0.01,
        "w2":    jax.random.normal(ks[6], (E, Hd), f32) * 0.05,
        "b2":    jax.random.normal(ks[7], (E,), f32) * 0.01,
        "g2":    jnp.ones((E,), f32),
        "be2":   jnp.zeros((E,), f32),
    }


if __name__ == "__main__":
    root = jax.random.PRNGKey(0)
    kx, kp = jax.random.split(root)
    # PyTorch nn.MultiheadAttention convention: (seq, batch, embed)
    x = jax.random.normal(kx, (SEQ, BATCH, EMBED_DIM), jnp.float32)
    params_list = [init_block_params(k) for k in jax.random.split(kp, NUM_LAYERS)]

    # One-time host-side packing (numpy) -- outside the jitted per-call path.
    params_slab = pack_params(params_list)

    fwd = jax.jit(transformer_encoder_layer)
    out = jax.block_until_ready(fwd(x, params_slab))
    ref = jax.block_until_ready(_ref_forward(x, params_list))

    assert out.shape == (SEQ, BATCH, EMBED_DIM)
    # Exact softmax divide restored; remaining slack covers default-precision MXU f32 matmuls inside the
    # kernel vs XLA's default-precision f32 matmuls in the reference.
    assert jnp.allclose(out, ref, rtol=2e-3, atol=2e-3), "Pallas output mismatch vs reference"

    print("KERNEL_OK")
</pallas_src>

<mosaic_0001>
module attributes {stable_mosaic.version = 11 : i64} {
  func.func @fused_encoder_kernel(%arg0: memref<8x2x32xf32, #tpu.memory_space<vmem>>, %arg1: memref<2x64x384xf32, #tpu.memory_space<vmem>>, %arg2: memref<8x2x32xf32, #tpu.memory_space<vmem>>) attributes {dimension_semantics = [], scalar_prefetch = 0 : i64, scratch_operands = 0 : i64, tpu.core_type = #tpu.core_type<tc>} {
    %c0 = arith.constant 0 : index
    %c0_0 = arith.constant 0 : index
    %c0_1 = arith.constant 0 : index
    %0 = vector.load %arg0[%c0, %c0_0, %c0_1] : memref<8x2x32xf32, #tpu.memory_space<vmem>>, vector<8x2x32xf32>
    %1 = vector.shape_cast %0 : vector<8x2x32xf32> to vector<16x32xf32>
    %2 = tpu.iota {dimensions = array<i32: 0>} : vector<16x16xi32>
    %3 = tpu.iota {dimensions = array<i32: 1>} : vector<16x16xi32>
    %c2_i32 = arith.constant 2 : i32
    %c0_i32 = arith.constant 0 : i32
    %4 = arith.cmpi eq, %c2_i32, %c0_i32 : i32
    %c1_i32 = arith.constant 1 : i32
    %5 = arith.select %4, %c1_i32, %c2_i32 : i32
    %6 = vector.broadcast %5 : i32 to vector<16x16xi32>
    %7 = arith.remsi %2, %6 : vector<16x16xi32>
    %c0_i32_2 = arith.constant 0 : i32
    %8 = vector.broadcast %c0_i32_2 : i32 to vector<16x16xi32>
    %9 = arith.cmpi ne, %7, %8 : vector<16x16xi32>
    %c0_i32_3 = arith.constant 0 : i32
    %10 = vector.broadcast %c0_i32_3 : i32 to vector<16x16xi32>
    %11 = arith.cmpi slt, %7, %10 : vector<16x16xi32>
    %c0_i32_4 = arith.constant 0 : i32
    %12 = arith.cmpi slt, %5, %c0_i32_4 : i32
    %13 = vector.broadcast %12 : i1 to vector<16x16xi1>
    %14 = vector.broadcast %13 : vector<16x16xi1> to vector<16x16xi1>
    %15 = arith.xori %11, %14 : vector<16x16xi1>
    %16 = arith.andi %15, %9 : vector<16x16xi1>
    %17 = vector.broadcast %5 : i32 to vector<16x16xi32>
    %18 = arith.addi %7, %17 : vector<16x16xi32>
    %19 = arith.select %16, %18, %7 : vector<16x16xi1>, vector<16x16xi32>
    %c2_i32_5 = arith.constant 2 : i32
    %c0_i32_6 = arith.constant 0 : i32
    %20 = arith.cmpi eq, %c2_i32_5, %c0_i32_6 : i32
    %c1_i32_7 = arith.constant 1 : i32
    %21 = arith.select %20, %c1_i32_7, %c2_i32_5 : i32
    %22 = vector.broadcast %21 : i32 to vector<16x16xi32>
    %23 = arith.remsi %3, %22 : vector<16x16xi32>
    %c0_i32_8 = arith.constant 0 : i32
    %24 = vector.broadcast %c0_i32_8 : i32 to vector<16x16xi32>
    %25 = arith.cmpi ne, %23, %24 : vector<16x16xi32>
    %c0_i32_9 = arith.constant 0 : i32
    %26 = vector.broadcast %c0_i32_9 : i32 to vector<16x16xi32>
    %27 = arith.cmpi slt, %23, %26 : vector<16x16xi32>
    %c0_i32_10 = arith.constant 0 : i32
    %28 = arith.cmpi slt, %21, %c0_i32_10 : i32
    %29 = vector.broadcast %28 : i1 to vector<16x16xi1>
    %30 = vector.broadcast %29 : vector<16x16xi1> to vector<16x16xi1>
    %31 = arith.xori %27, %30 : vector<16x16xi1>
    %32 = arith.andi %31, %25 : vector<16x16xi1>
    %33 = vector.broadcast %21 : i32 to vector<16x16xi32>
    %34 = arith.addi %23, %33 : vector<16x16xi32>
    %35 = arith.select %32, %34, %23 : vector<16x16xi1>, vector<16x16xi32>
    %36 = arith.cmpi eq, %19, %35 : vector<16x16xi32>
    %cst = arith.constant 0.000000e+00 : f32
    %cst_11 = arith.constant -1.000000e+30 : f32
    %37 = vector.broadcast %cst : f32 to vector<16x16xf32>
    %38 = vector.broadcast %cst_11 : f32 to vector<16x16xf32>
    %39 = arith.select %36, %37, %38 : vector<16x16xi1>, vector<16x16xf32>
    %c0_12 = arith.constant 0 : index
    %c0_13 = arith.constant 0 : index
    %c0_14 = arith.constant 0 : index
    %40 = vector.load %arg1[%c0_12, %c0_13, %c0_14] : memref<2x64x384xf32, #tpu.memory_space<vmem>>, vector<1x32x96xf32>
    %41 = vector.shape_cast %40 : vector<1x32x96xf32> to vector<32x96xf32>
    %c0_15 = arith.constant 0 : index
    %c0_16 = arith.constant 0 : index
    %c128 = arith.constant 128 : index
    %42 = vector.load %arg1[%c0_15, %c0_16, %c128] : memref<2x64x384xf32, #tpu.memory_space<vmem>>, vector<1x32x64xf32>
    %43 = vector.shape_cast %42 : vector<1x32x64xf32> to vector<32x64xf32>
    %c0_17 = arith.constant 0 : index
    %c32 = arith.constant 32 : index
    %c128_18 = arith.constant 128 : index
    %44 = vector.load %arg1[%c0_17, %c32, %c128_18] : memref<2x64x384xf32, #tpu.memory_space<vmem>>, vector<1x32x32xf32>
    %45 = vector.shape_cast %44 : vector<1x32x32xf32> to vector<32x32xf32>
    %c0_19 = arith.constant 0 : index
    %c0_20 = arith.constant 0 : index
    %c256 = arith.constant 256 : index
    %46 = vector.load %arg1[%c0_19, %c0_20, %c256] : memref<2x64x384xf32, #tpu.memory_space<vmem>>, vector<1x64x32xf32>
    %47 = vector.shape_cast %46 : vector<1x64x32xf32> to vector<64x32xf32>
    %c0_21 = arith.constant 0 : index
    %c32_22 = arith.constant 32 : index
    %c0_23 = arith.constant 0 : index
    %48 = vector.load %arg1[%c0_21, %c32_22, %c0_23] : memref<2x64x384xf32, #tpu.memory_space<vmem>>, vector<1x8x128xf32>
    %49 = vector.shape_cast %48 : vector<1x8x128xf32> to vector<8x128xf32>
    %cst_24 = arith.constant dense<0.000000e+00> : vector<16x96xf32>
    %50 = tpu.matmul %1, %41, %cst_24 {dimension_numbers = #tpu.dot_dimension_numbers<[1], [0], [0], [1], [0, 0, 1, 1], [], []>} : vector<16x32xf32>, vector<32x96xf32>, vector<16x96xf32> -> vector<16x96xf32>
    %51 = vector.extract_strided_slice %49 {offsets = [0, 0], sizes = [1, 96], strides = [1, 1]} : vector<8x128xf32> to vector<1x96xf32>
    %52 = vector.shape_cast %51 : vector<1x96xf32> to vector<96xf32>
    %53 = vector.shape_cast %52 : vector<96xf32> to vector<1x96xf32>
    %54 = vector.broadcast %53 : vector<1x96xf32> to vector<16x96xf32>
    %55 = arith.addf %50, %54 : vector<16x96xf32>
    %cst_25 = arith.constant 0.000000e+00 : f32
    %56 = vector.broadcast %cst_25 : f32 to vector<16x32xf32>
    %57 = vector.extract_strided_slice %55 {offsets = [0, 0], sizes = [16, 8], strides = [1, 1]} : vector<16x96xf32> to vector<16x8xf32>
    %58 = vector.extract_strided_slice %55 {offsets = [0, 32], sizes = [16, 8], strides = [1, 1]} : vector<16x96xf32> to vector<16x8xf32>
    %59 = vector.extract_strided_slice %55 {offsets = [0, 64], sizes = [16, 8], strides = [1, 1]} : vector<16x96xf32> to vector<16x8xf32>
    "tpu.trace_start"() <{level = 10 : i32, message = "qd,kd->qk"}> : () -> ()
    %cst_26 = arith.constant dense<0.000000e+00> : vector<16x16xf32>
    %60 = tpu.matmul %57, %58, %cst_26 {dimension_numbers = #tpu.dot_dimension_numbers<[1], [1], [0], [0], [0, 0, 1, 0], [], []>} : vector<16x8xf32>, vector<16x8xf32>, vector<16x16xf32> -> vector<16x16xf32>
    "tpu.trace_stop"() : () -> ()
    %cst_27 = arith.constant 0.353553385 : f32
    %61 = vector.broadcast %cst_27 : f32 to vector<16x16xf32>
    %62 = arith.mulf %60, %61 : vector<16x16xf32>
    %63 = arith.addf %62, %39 : vector<16x16xf32>
    %cst_28 = arith.constant dense<0xFF800000> : vector<16xf32>
    %64 = vector.multi_reduction <maximumf>, %63, %cst_28 [1] : vector<16x16xf32> to vector<16xf32>
    %65 = vector.shape_cast %64 : vector<16xf32> to vector<16x1xf32>
    %66 = vector.broadcast %65 : vector<16x1xf32> to vector<16x16xf32>
    %67 = arith.subf %63, %66 : vector<16x16xf32>
    %68 = math.exp %67 : vector<16x16xf32>
    %cst_29 = arith.constant dense<0.000000e+00> : vector<16xf32>
    %69 = vector.multi_reduction <add>, %68, %cst_29 [1] : vector<16x16xf32> to vector<16xf32>
    %70 = vector.shape_cast %69 : vector<16xf32> to vector<16x1xf32>
    %71 = vector.broadcast %70 : vector<16x1xf32> to vector<16x16xf32>
    %72 = arith.divf %68, %71 : vector<16x16xf32>
    %cst_30 = arith.constant dense<0.000000e+00> : vector<16x8xf32>
    %73 = tpu.matmul %72, %59, %cst_30 {dimension_numbers = #tpu.dot_dimension_numbers<[1], [0], [0], [1], [0, 0, 1, 1], [], []>} : vector<16x16xf32>, vector<16x8xf32>, vector<16x8xf32> -> vector<16x8xf32>
    %74 = vector.extract_strided_slice %45 {offsets = [0, 0], sizes = [8, 32], strides = [1, 1]} : vector<32x32xf32> to vector<8x32xf32>
    %cst_31 = arith.constant dense<0.000000e+00> : vector<16x32xf32>
    %75 = tpu.matmul %73, %74, %cst_31 {dimension_numbers = #tpu.dot_dimension_numbers<[1], [0], [0], [1], [0, 0, 1, 1], [], []>} : vector<16x8xf32>, vector<8x32xf32>, vector<16x32xf32> -> vector<16x32xf32>
    %76 = arith.addf %56, %75 : vector<16x32xf32>
    %77 = vector.extract_strided_slice %55 {offsets = [0, 8], sizes = [16, 8], strides = [1, 1]} : vector<16x96xf32> to vector<16x8xf32>
    %78 = vector.extract_strided_slice %55 {offsets = [0, 40], sizes = [16, 8], strides = [1, 1]} : vector<16x96xf32> to vector<16x8xf32>
    %79 = vector.extract_strided_slice %55 {offsets = [0, 72], sizes = [16, 8], strides = [1, 1]} : vector<16x96xf32> to vector<16x8xf32>
    "tpu.trace_start"() <{level = 10 : i32, message = "qd,kd->qk"}> : () -> ()
    %cst_32 = arith.constant dense<0.000000e+00> : vector<16x16xf32>
    %80 = tpu.matmul %77, %78, %cst_32 {dimension_numbers = #tpu.dot_dimension_numbers<[1], [1], [0], [0], [0, 0, 1, 0], [], []>} : vector<16x8xf32>, vector<16x8xf32>, vector<16x16xf32> -> vector<16x16xf32>
    "tpu.trace_stop"() : () -> ()
    %cst_33 = arith.constant 0.353553385 : f32
    %81 = vector.broadcast %cst_33 : f32 to vector<16x16xf32>
    %82 = arith.mulf %80, %81 : vector<16x16xf32>
    %83 = arith.addf %82, %39 : vector<16x16xf32>
    %cst_34 = arith.constant dense<0xFF800000> : vector<16xf32>
    %84 = vector.multi_reduction <maximumf>, %83, %cst_34 [1] : vector<16x16xf32> to vector<16xf32>
    %85 = vector.shape_cast %84 : vector<16xf32> to vector<16x1xf32>
    %86 = vector.broadcast %85 : vector<16x1xf32> to vector<16x16xf32>
    %87 = arith.subf %83, %86 : vector<16x16xf32>
    %88 = math.exp %87 : vector<16x16xf32>
    %cst_35 = arith.constant dense<0.000000e+00> : vector<16xf32>
    %89 = vector.multi_reduction <add>, %88, %cst_35 [1] : vector<16x16xf32> to vector<16xf32>
    %90 = vector.shape_cast %89 : vector<16xf32> to vector<16x1xf32>
    %91 = vector.broadcast %90 : vector<16x1xf32> to vector<16x16xf32>
    %92 = arith.divf %88, %91 : vector<16x16xf32>
    %cst_36 = arith.constant dense<0.000000e+00> : vector<16x8xf32>
    %93 = tpu.matmul %92, %79, %cst_36 {dimension_numbers = #tpu.dot_dimension_numbers<[1], [0], [0], [1], [0, 0, 1, 1], [], []>} : vector<16x16xf32>, vector<16x8xf32>, vector<16x8xf32> -> vector<16x8xf32>
    %94 = vector.extract_strided_slice %45 {offsets = [8, 0], sizes = [8, 32], strides = [1, 1]} : vector<32x32xf32> to vector<8x32xf32>
    %cst_37 = arith.constant dense<0.000000e+00> : vector<16x32xf32>
    %95 = tpu.matmul %93, %94, %cst_37 {dimension_numbers = #tpu.dot_dimension_numbers<[1], [0], [0], [1], [0, 0, 1, 1], [], []>} : vector<16x8xf32>, vector<8x32xf32>, vector<16x32xf32> -> vector<16x32xf32>
    %96 = arith.addf %76, %95 : vector<16x32xf32>
    %97 = vector.extract_strided_slice %55 {offsets = [0, 16], sizes = [16, 8], strides = [1, 1]} : vector<16x96xf32> to vector<16x8xf32>
    %98 = vector.extract_strided_slice %55 {offsets = [0, 48], sizes = [16, 8], strides = [1, 1]} : vector<16x96xf32> to vector<16x8xf32>
    %99 = vector.extract_strided_slice %55 {offsets = [0, 80], sizes = [16, 8], strides = [1, 1]} : vector<16x96xf32> to vector<16x8xf32>
    "tpu.trace_start"() <{level = 10 : i32, message = "qd,kd->qk"}> : () -> ()
    %cst_38 = arith.constant dense<0.000000e+00> : vector<16x16xf32>
    %100 = tpu.matmul %97, %98, %cst_38 {dimension_numbers = #tpu.dot_dimension_numbers<[1], [1], [0], [0], [0, 0, 1, 0], [], []>} : vector<16x8xf32>, vector<16x8xf32>, vector<16x16xf32> -> vector<16x16xf32>
    "tpu.trace_stop"() : () -> ()
    %cst_39 = arith.constant 0.353553385 : f32
    %101 = vector.broadcast %cst_39 : f32 to vector<16x16xf32>
    %102 = arith.mulf %100, %101 : vector<16x16xf32>
    %103 = arith.addf %102, %39 : vector<16x16xf32>
    %cst_40 = arith.constant dense<0xFF800000> : vector<16xf32>
    %104 = vector.multi_reduction <maximumf>, %103, %cst_40 [1] : vector<16x16xf32> to vector<16xf32>
    %105 = vector.shape_cast %104 : vector<16xf32> to vector<16x1xf32>
    %106 = vector.broadcast %105 : vector<16x1xf32> to vector<16x16xf32>
    %107 = arith.subf %103, %106 : vector<16x16xf32>
    %108 = math.exp %107 : vector<16x16xf32>
    %cst_41 = arith.constant dense<0.000000e+00> : vector<16xf32>
    %109 = vector.multi_reduction <add>, %108, %cst_41 [1] : vector<16x16xf32> to vector<16xf32>
    %110 = vector.shape_cast %109 : vector<16xf32> to vector<16x1xf32>
    %111 = vector.broadcast %110 : vector<16x1xf32> to vector<16x16xf32>
    %112 = arith.divf %108, %111 : vector<16x16xf32>
    %cst_42 = arith.constant dense<0.000000e+00> : vector<16x8xf32>
    %113 = tpu.matmul %112, %99, %cst_42 {dimension_numbers = #tpu.dot_dimension_numbers<[1], [0], [0], [1], [0, 0, 1, 1], [], []>} : vector<16x16xf32>, vector<16x8xf32>, vector<16x8xf32> -> vector<16x8xf32>
    %114 = vector.extract_strided_slice %45 {offsets = [16, 0], sizes = [8, 32], strides = [1, 1]} : vector<32x32xf32> to vector<8x32xf32>
    %cst_43 = arith.constant dense<0.000000e+00> : vector<16x32xf32>
    %115 = tpu.matmul %113, %114, %cst_43 {dimension_numbers = #tpu.dot_dimension_numbers<[1], [0], [0], [1], [0, 0, 1, 1], [], []>} : vector<16x8xf32>, vector<8x32xf32>, vector<16x32xf32> -> vector<16x32xf32>
    %116 = arith.addf %96, %115 : vector<16x32xf32>
    %117 = vector.extract_strided_slice %55 {offsets = [0, 24], sizes = [16, 8], strides = [1, 1]} : vector<16x96xf32> to vector<16x8xf32>
    %118 = vector.extract_strided_slice %55 {offsets = [0, 56], sizes = [16, 8], strides = [1, 1]} : vector<16x96xf32> to vector<16x8xf32>
    %119 = vector.extract_strided_slice %55 {offsets = [0, 88], sizes = [16, 8], strides = [1, 1]} : vector<16x96xf32> to vector<16x8xf32>
    "tpu.trace_start"() <{level = 10 : i32, message = "qd,kd->qk"}> : () -> ()
    %cst_44 = arith.constant dense<0.000000e+00> : vector<16x16xf32>
    %120 = tpu.matmul %117, %118, %cst_44 {dimension_numbers = #tpu.dot_dimension_numbers<[1], [1], [0], [0], [0, 0, 1, 0], [], []>} : vector<16x8xf32>, vector<16x8xf32>, vector<16x16xf32> -> vector<16x16xf32>
    "tpu.trace_stop"() : () -> ()
    %cst_45 = arith.constant 0.353553385 : f32
    %121 = vector.broadcast %cst_45 : f32 to vector<16x16xf32>
    %122 = arith.mulf %120, %121 : vector<16x16xf32>
    %123 = arith.addf %122, %39 : vector<16x16xf32>
    %cst_46 = arith.constant dense<0xFF800000> : vector<16xf32>
    %124 = vector.multi_reduction <maximumf>, %123, %cst_46 [1] : vector<16x16xf32> to vector<16xf32>
    %125 = vector.shape_cast %124 : vector<16xf32> to vector<16x1xf32>
    %126 = vector.broadcast %125 : vector<16x1xf32> to vector<16x16xf32>
    %127 = arith.subf %123, %126 : vector<16x16xf32>
    %128 = math.exp %127 : vector<16x16xf32>
    %cst_47 = arith.constant dense<0.000000e+00> : vector<16xf32>
    %129 = vector.multi_reduction <add>, %128, %cst_47 [1] : vector<16x16xf32> to vector<16xf32>
    %130 = vector.shape_cast %129 : vector<16xf32> to vector<16x1xf32>
    %131 = vector.broadcast %130 : vector<16x1xf32> to vector<16x16xf32>
    %132 = arith.divf %128, %131 : vector<16x16xf32>
    %cst_48 = arith.constant dense<0.000000e+00> : vector<16x8xf32>
    %133 = tpu.matmul %132, %119, %cst_48 {dimension_numbers = #tpu.dot_dimension_numbers<[1], [0], [0], [1], [0, 0, 1, 1], [], []>} : vector<16x16xf32>, vector<16x8xf32>, vector<16x8xf32> -> vector<16x8xf32>
    %134 = vector.extract_strided_slice %45 {offsets = [24, 0], sizes = [8, 32], strides = [1, 1]} : vector<32x32xf32> to vector<8x32xf32>
    %cst_49 = arith.constant dense<0.000000e+00> : vector<16x32xf32>
    %135 = tpu.matmul %133, %134, %cst_49 {dimension_numbers = #tpu.dot_dimension_numbers<[1], [0], [0], [1], [0, 0, 1, 1], [], []>} : vector<16x8xf32>, vector<8x32xf32>, vector<16x32xf32> -> vector<16x32xf32>
    %136 = arith.addf %116, %135 : vector<16x32xf32>
    %137 = vector.extract_strided_slice %49 {offsets = [1, 0], sizes = [1, 32], strides = [1, 1]} : vector<8x128xf32> to vector<1x32xf32>
    %138 = vector.shape_cast %137 : vector<1x32xf32> to vector<32xf32>
    %139 = vector.shape_cast %138 : vector<32xf32> to vector<1x32xf32>
    %140 = vector.broadcast %139 : vector<1x32xf32> to vector<16x32xf32>
    %141 = arith.addf %136, %140 : vector<16x32xf32>
    %142 = arith.addf %1, %141 : vector<16x32xf32>
    %143 = vector.extract_strided_slice %49 {offsets = [4, 0], sizes = [1, 32], strides = [1, 1]} : vector<8x128xf32> to vector<1x32xf32>
    %144 = vector.shape_cast %143 : vector<1x32xf32> to vector<32xf32>
    %145 = vector.extract_strided_slice %49 {offsets = [5, 0], sizes = [1, 32], strides = [1, 1]} : vector<8x128xf32> to vector<1x32xf32>
    %146 = vector.shape_cast %145 : vector<1x32xf32> to vector<32xf32>
    %cst_50 = arith.constant dense<0.000000e+00> : vector<16xf32>
    %147 = vector.multi_reduction <add>, %142, %cst_50 [1] : vector<16x32xf32> to vector<16xf32>
    %148 = vector.shape_cast %147 : vector<16xf32> to vector<16x1xf32>
    %cst_51 = arith.constant 3.200000e+01 : f32
    %149 = vector.broadcast %cst_51 : f32 to vector<16x1xf32>
    %150 = arith.divf %148, %149 : vector<16x1xf32>
    %151 = vector.broadcast %150 : vector<16x1xf32> to vector<16x32xf32>
    %152 = arith.subf %142, %151 : vector<16x32xf32>
    %153 = arith.mulf %152, %152 : vector<16x32xf32>
    %cst_52 = arith.constant dense<0.000000e+00> : vector<16xf32>
    %154 = vector.multi_reduction <add>, %153, %cst_52 [1] : vector<16x32xf32> to vector<16xf32>
    %155 = vector.shape_cast %154 : vector<16xf32> to vector<16x1xf32>
    %cst_53 = arith.constant 3.200000e+01 : f32
    %156 = vector.broadcast %cst_53 : f32 to vector<16x1xf32>
    %157 = arith.divf %155, %156 : vector<16x1xf32>
    %cst_54 = arith.constant 9.99999974E-6 : f32
    %158 = vector.broadcast %cst_54 : f32 to vector<16x1xf32>
    %159 = arith.addf %157, %158 : vector<16x1xf32>
    %160 = math.rsqrt %159 : vector<16x1xf32>
    %161 = vector.broadcast %160 : vector<16x1xf32> to vector<16x32xf32>
    %162 = arith.mulf %152, %161 : vector<16x32xf32>
    %163 = vector.shape_cast %144 : vector<32xf32> to vector<1x32xf32>
    %164 = vector.broadcast %163 : vector<1x32xf32> to vector<16x32xf32>
    %165 = arith.mulf %162, %164 : vector<16x32xf32>
    %166 = vector.shape_cast %146 : vector<32xf32> to vector<1x32xf32>
    %167 = vector.broadcast %166 : vector<1x32xf32> to vector<16x32xf32>
    %168 = arith.addf %165, %167 : vector<16x32xf32>
    %cst_55 = arith.constant dense<0.000000e+00> : vector<16x64xf32>
    %169 = tpu.matmul %168, %43, %cst_55 {dimension_numbers = #tpu.dot_dimension_numbers<[1], [0], [0], [1], [0, 0, 1, 1], [], []>} : vector<16x32xf32>, vector<32x64xf32>, vector<16x64xf32> -> vector<16x64xf32>
    %170 = vector.extract_strided_slice %49 {offsets = [2, 0], sizes = [1, 64], strides = [1, 1]} : vector<8x128xf32> to vector<1x64xf32>
    %171 = vector.shape_cast %170 : vector<1x64xf32> to vector<64xf32>
    %172 = vector.shape_cast %171 : vector<64xf32> to vector<1x64xf32>
    %173 = vector.broadcast %172 : vector<1x64xf32> to vector<16x64xf32>
    %174 = arith.addf %169, %173 : vector<16x64xf32>
    %cst_56 = arith.constant 5.000000e-01 : f32
    %175 = vector.broadcast %cst_56 : f32 to vector<16x64xf32>
    %176 = arith.mulf %175, %174 : vector<16x64xf32>
    %cst_57 = arith.constant 2.000000e+00 : f32
    %177 = math.sqrt %cst_57 : f32
    %cst_58 = arith.constant 1.000000e+00 : f32
    %178 = arith.divf %cst_58, %177 : f32
    %179 = vector.broadcast %178 : f32 to vector<16x64xf32>
    %180 = arith.mulf %174, %179 : vector<16x64xf32>
    %181 = math.erf %180 : vector<16x64xf32>
    %cst_59 = arith.constant 1.000000e+00 : f32
    %182 = vector.broadcast %cst_59 : f32 to vector<16x64xf32>
    %183 = arith.addf %182, %181 : vector<16x64xf32>
    %184 = arith.mulf %176, %183 : vector<16x64xf32>
    %cst_60 = arith.constant dense<0.000000e+00> : vector<16x32xf32>
    %185 = tpu.matmul %184, %47, %cst_60 {dimension_numbers = #tpu.dot_dimension_numbers<[1], [0], [0], [1], [0, 0, 1, 1], [], []>} : vector<16x64xf32>, vector<64x32xf32>, vector<16x32xf32> -> vector<16x32xf32>
    %186 = vector.extract_strided_slice %49 {offsets = [3, 0], sizes = [1, 32], strides = [1, 1]} : vector<8x128xf32> to vector<1x32xf32>
    %187 = vector.shape_cast %186 : vector<1x32xf32> to vector<32xf32>
    %188 = vector.shape_cast %187 : vector<32xf32> to vector<1x32xf32>
    %189 = vector.broadcast %188 : vector<1x32xf32> to vector<16x32xf32>
    %190 = arith.addf %185, %189 : vector<16x32xf32>
    %191 = arith.addf %168, %190 : vector<16x32xf32>
    %192 = vector.extract_strided_slice %49 {offsets = [6, 0], sizes = [1, 32], strides = [1, 1]} : vector<8x128xf32> to vector<1x32xf32>
    %193 = vector.shape_cast %192 : vector<1x32xf32> to vector<32xf32>
    %194 = vector.extract_strided_slice %49 {offsets = [7, 0], sizes = [1, 32], strides = [1, 1]} : vector<8x128xf32> to vector<1x32xf32>
    %195 = vector.shape_cast %194 : vector<1x32xf32> to vector<32xf32>
    %cst_61 = arith.constant dense<0.000000e+00> : vector<16xf32>
    %196 = vector.multi_reduction <add>, %191, %cst_61 [1] : vector<16x32xf32> to vector<16xf32>
    %197 = vector.shape_cast %196 : vector<16xf32> to vector<16x1xf32>
    %cst_62 = arith.constant 3.200000e+01 : f32
    %198 = vector.broadcast %cst_62 : f32 to vector<16x1xf32>
    %199 = arith.divf %197, %198 : vector<16x1xf32>
    %200 = vector.broadcast %199 : vector<16x1xf32> to vector<16x32xf32>
    %201 = arith.subf %191, %200 : vector<16x32xf32>
    %202 = arith.mulf %201, %201 : vector<16x32xf32>
    %cst_63 = arith.constant dense<0.000000e+00> : vector<16xf32>
    %203 = vector.multi_reduction <add>, %202, %cst_63 [1] : vector<16x32xf32> to vector<16xf32>
    %204 = vector.shape_cast %203 : vector<16xf32> to vector<16x1xf32>
    %cst_64 = arith.constant 3.200000e+01 : f32
    %205 = vector.broadcast %cst_64 : f32 to vector<16x1xf32>
    %206 = arith.divf %204, %205 : vector<16x1xf32>
    %cst_65 = arith.constant 9.99999974E-6 : f32
    %207 = vector.broadcast %cst_65 : f32 to vector<16x1xf32>
    %208 = arith.addf %206, %207 : vector<16x1xf32>
    %209 = math.rsqrt %208 : vector<16x1xf32>
    %210 = vector.broadcast %209 : vector<16x1xf32> to vector<16x32xf32>
    %211 = arith.mulf %201, %210 : vector<16x32xf32>
    %212 = vector.shape_cast %193 : vector<32xf32> to vector<1x32xf32>
    %213 = vector.broadcast %212 : vector<1x32xf32> to vector<16x32xf32>
    %214 = arith.mulf %211, %213 : vector<16x32xf32>
    %215 = vector.shape_cast %195 : vector<32xf32> to vector<1x32xf32>
    %216 = vector.broadcast %215 : vector<1x32xf32> to vector<16x32xf32>
    %217 = arith.addf %214, %216 : vector<16x32xf32>
    %c1 = arith.constant 1 : index
    %c0_66 = arith.constant 0 : index
    %c0_67 = arith.constant 0 : index
    %218 = vector.load %arg1[%c1, %c0_66, %c0_67] : memref<2x64x384xf32, #tpu.memory_space<vmem>>, vector<1x32x96xf32>
    %219 = vector.shape_cast %218 : vector<1x32x96xf32> to vector<32x96xf32>
    %c1_68 = arith.constant 1 : index
    %c0_69 = arith.constant 0 : index
    %c128_70 = arith.constant 128 : index
    %220 = vector.load %arg1[%c1_68, %c0_69, %c128_70] : memref<2x64x384xf32, #tpu.memory_space<vmem>>, vector<1x32x64xf32>
    %221 = vector.shape_cast %220 : vector<1x32x64xf32> to vector<32x64xf32>
    %c1_71 = arith.constant 1 : index
    %c32_72 = arith.constant 32 : index
    %c128_73 = arith.constant 128 : index
    %222 = vector.load %arg1[%c1_71, %c32_72, %c128_73] : memref<2x64x384xf32, #tpu.memory_space<vmem>>, vector<1x32x32xf32>
    %223 = vector.shape_cast %222 : vector<1x32x32xf32> to vector<32x32xf32>
    %c1_74 = arith.constant 1 : index
    %c0_75 = arith.constant 0 : index
    %c256_76 = arith.constant 256 : index
    %224 = vector.load %arg1[%c1_74, %c0_75, %c256_76] : memref<2x64x384xf32, #tpu.memory_space<vmem>>, vector<1x64x32xf32>
    %225 = vector.shape_cast %224 : vector<1x64x32xf32> to vector<64x32xf32>
    %c1_77 = arith.constant 1 : index
    %c32_78 = arith.constant 32 : index
    %c0_79 = arith.constant 0 : index
    %226 = vector.load %arg1[%c1_77, %c32_78, %c0_79] : memref<2x64x384xf32, #tpu.memory_space<vmem>>, vector<1x8x128xf32>
    %227 = vector.shape_cast %226 : vector<1x8x128xf32> to vector<8x128xf32>
    %cst_80 = arith.constant dense<0.000000e+00> : vector<16x96xf32>
    %228 = tpu.matmul %217, %219, %cst_80 {dimension_numbers = #tpu.dot_dimension_numbers<[1], [0], [0], [1], [0, 0, 1, 1], [], []>} : vector<16x32xf32>, vector<32x96xf32>, vector<16x96xf32> -> vector<16x96xf32>
    %229 = vector.extract_strided_slice %227 {offsets = [0, 0], sizes = [1, 96], strides = [1, 1]} : vector<8x128xf32> to vector<1x96xf32>
    %230 = vector.shape_cast %229 : vector<1x96xf32> to vector<96xf32>
    %231 = vector.shape_cast %230 : vector<96xf32> to vector<1x96xf32>
    %232 = vector.broadcast %231 : vector<1x96xf32> to vector<16x96xf32>
    %233 = arith.addf %228, %232 : vector<16x96xf32>
    %cst_81 = arith.constant 0.000000e+00 : f32
    %234 = vector.broadcast %cst_81 : f32 to vector<16x32xf32>
    %235 = vector.extract_strided_slice %233 {offsets = [0, 0], sizes = [16, 8], strides = [1, 1]} : vector<16x96xf32> to vector<16x8xf32>
    %236 = vector.extract_strided_slice %233 {offsets = [0, 32], sizes = [16, 8], strides = [1, 1]} : vector<16x96xf32> to vector<16x8xf32>
    %237 = vector.extract_strided_slice %233 {offsets = [0, 64], sizes = [16, 8], strides = [1, 1]} : vector<16x96xf32> to vector<16x8xf32>
    "tpu.trace_start"() <{level = 10 : i32, message = "qd,kd->qk"}> : () -> ()
    %cst_82 = arith.constant dense<0.000000e+00> : vector<16x16xf32>
    %238 = tpu.matmul %235, %236, %cst_82 {dimension_numbers = #tpu.dot_dimension_numbers<[1], [1], [0], [0], [0, 0, 1, 0], [], []>} : vector<16x8xf32>, vector<16x8xf32>, vector<16x16xf32> -> vector<16x16xf32>
    "tpu.trace_stop"() : () -> ()
    %cst_83 = arith.constant 0.353553385 : f32
    %239 = vector.broadcast %cst_83 : f32 to vector<16x16xf32>
    %240 = arith.mulf %238, %239 : vector<16x16xf32>
    %241 = arith.addf %240, %39 : vector<16x16xf32>
    %cst_84 = arith.constant dense<0xFF800000> : vector<16xf32>
    %242 = vector.multi_reduction <maximumf>, %241, %cst_84 [1] : vector<16x16xf32> to vector<16xf32>
    %243 = vector.shape_cast %242 : vector<16xf32> to vector<16x1xf32>
    %244 = vector.broadcast %243 : vector<16x1xf32> to vector<16x16xf32>
    %245 = arith.subf %241, %244 : vector<16x16xf32>
    %246 = math.exp %245 : vector<16x16xf32>
    %cst_85 = arith.constant dense<0.000000e+00> : vector<16xf32>
    %247 = vector.multi_reduction <add>, %246, %cst_85 [1] : vector<16x16xf32> to vector<16xf32>
    %248 = vector.shape_cast %247 : vector<16xf32> to vector<16x1xf32>
    %249 = vector.broadcast %248 : vector<16x1xf32> to vector<16x16xf32>
    %250 = arith.divf %246, %249 : vector<16x16xf32>
    %cst_86 = arith.constant dense<0.000000e+00> : vector<16x8xf32>
    %251 = tpu.matmul %250, %237, %cst_86 {dimension_numbers = #tpu.dot_dimension_numbers<[1], [0], [0], [1], [0, 0, 1, 1], [], []>} : vector<16x16xf32>, vector<16x8xf32>, vector<16x8xf32> -> vector<16x8xf32>
    %252 = vector.extract_strided_slice %223 {offsets = [0, 0], sizes = [8, 32], strides = [1, 1]} : vector<32x32xf32> to vector<8x32xf32>
    %cst_87 = arith.constant dense<0.000000e+00> : vector<16x32xf32>
    %253 = tpu.matmul %251, %252, %cst_87 {dimension_numbers = #tpu.dot_dimension_numbers<[1], [0], [0], [1], [0, 0, 1, 1], [], []>} : vector<16x8xf32>, vector<8x32xf32>, vector<16x32xf32> -> vector<16x32xf32>
    %254 = arith.addf %234, %253 : vector<16x32xf32>
    %255 = vector.extract_strided_slice %233 {offsets = [0, 8], sizes = [16, 8], strides = [1, 1]} : vector<16x96xf32> to vector<16x8xf32>
    %256 = vector.extract_strided_slice %233 {offsets = [0, 40], sizes = [16, 8], strides = [1, 1]} : vector<16x96xf32> to vector<16x8xf32>
    %257 = vector.extract_strided_slice %233 {offsets = [0, 72], sizes = [16, 8], strides = [1, 1]} : vector<16x96xf32> to vector<16x8xf32>
    "tpu.trace_start"() <{level = 10 : i32, message = "qd,kd->qk"}> : () -> ()
    %cst_88 = arith.constant dense<0.000000e+00> : vector<16x16xf32>
    %258 = tpu.matmul %255, %256, %cst_88 {dimension_numbers = #tpu.dot_dimension_numbers<[1], [1], [0], [0], [0, 0, 1, 0], [], []>} : vector<16x8xf32>, vector<16x8xf32>, vector<16x16xf32> -> vector<16x16xf32>
    "tpu.trace_stop"() : () -> ()
    %cst_89 = arith.constant 0.353553385 : f32
    %259 = vector.broadcast %cst_89 : f32 to vector<16x16xf32>
    %260 = arith.mulf %258, %259 : vector<16x16xf32>
    %261 = arith.addf %260, %39 : vector<16x16xf32>
    %cst_90 = arith.constant dense<0xFF800000> : vector<16xf32>
    %262 = vector.multi_reduction <maximumf>, %261, %cst_90 [1] : vector<16x16xf32> to vector<16xf32>
    %263 = vector.shape_cast %262 : vector<16xf32> to vector<16x1xf32>
    %264 = vector.broadcast %263 : vector<16x1xf32> to vector<16x16xf32>
    %265 = arith.subf %261, %264 : vector<16x16xf32>
    %266 = math.exp %265 : vector<16x16xf32>
    %cst_91 = arith.constant dense<0.000000e+00> : vector<16xf32>
    %267 = vector.multi_reduction <add>, %266, %cst_91 [1] : vector<16x16xf32> to vector<16xf32>
    %268 = vector.shape_cast %267 : vector<16xf32> to vector<16x1xf32>
    %269 = vector.broadcast %268 : vector<16x1xf32> to vector<16x16xf32>
    %270 = arith.divf %266, %269 : vector<16x16xf32>
    %cst_92 = arith.constant dense<0.000000e+00> : vector<16x8xf32>
    %271 = tpu.matmul %270, %257, %cst_92 {dimension_numbers = #tpu.dot_dimension_numbers<[1], [0], [0], [1], [0, 0, 1, 1], [], []>} : vector<16x16xf32>, vector<16x8xf32>, vector<16x8xf32> -> vector<16x8xf32>
    %272 = vector.extract_strided_slice %223 {offsets = [8, 0], sizes = [8, 32], strides = [1, 1]} : vector<32x32xf32> to vector<8x32xf32>
    %cst_93 = arith.constant dense<0.000000e+00> : vector<16x32xf32>
    %273 = tpu.matmul %271, %272, %cst_93 {dimension_numbers = #tpu.dot_dimension_numbers<[1], [0], [0], [1], [0, 0, 1, 1], [], []>} : vector<16x8xf32>, vector<8x32xf32>, vector<16x32xf32> -> vector<16x32xf32>
    %274 = arith.addf %254, %273 : vector<16x32xf32>
    %275 = vector.extract_strided_slice %233 {offsets = [0, 16], sizes = [16, 8], strides = [1, 1]} : vector<16x96xf32> to vector<16x8xf32>
    %276 = vector.extract_strided_slice %233 {offsets = [0, 48], sizes = [16, 8], strides = [1, 1]} : vector<16x96xf32> to vector<16x8xf32>
    %277 = vector.extract_strided_slice %233 {offsets = [0, 80], sizes = [16, 8], strides = [1, 1]} : vector<16x96xf32> to vector<16x8xf32>
    "tpu.trace_start"() <{level = 10 : i32, message = "qd,kd->qk"}> : () -> ()
    %cst_94 = arith.constant dense<0.000000e+00> : vector<16x16xf32>
    %278 = tpu.matmul %275, %276, %cst_94 {dimension_numbers = #tpu.dot_dimension_numbers<[1], [1], [0], [0], [0, 0, 1, 0], [], []>} : vector<16x8xf32>, vector<16x8xf32>, vector<16x16xf32> -> vector<16x16xf32>
    "tpu.trace_stop"() : () -> ()
    %cst_95 = arith.constant 0.353553385 : f32
    %279 = vector.broadcast %cst_95 : f32 to vector<16x16xf32>
    %280 = arith.mulf %278, %279 : vector<16x16xf32>
    %281 = arith.addf %280, %39 : vector<16x16xf32>
    %cst_96 = arith.constant dense<0xFF800000> : vector<16xf32>
    %282 = vector.multi_reduction <maximumf>, %281, %cst_96 [1] : vector<16x16xf32> to vector<16xf32>
    %283 = vector.shape_cast %282 : vector<16xf32> to vector<16x1xf32>
    %284 = vector.broadcast %283 : vector<16x1xf32> to vector<16x16xf32>
    %285 = arith.subf %281, %284 : vector<16x16xf32>
    %286 = math.exp %285 : vector<16x16xf32>
    %cst_97 = arith.constant dense<0.000000e+00> : vector<16xf32>
    %287 = vector.multi_reduction <add>, %286, %cst_97 [1] : vector<16x16xf32> to vector<16xf32>
    %288 = vector.shape_cast %287 : vector<16xf32> to vector<16x1xf32>
    %289 = vector.broadcast %288 : vector<16x1xf32> to vector<16x16xf32>
    %290 = arith.divf %286, %289 : vector<16x16xf32>
    %cst_98 = arith.constant dense<0.000000e+00> : vector<16x8xf32>
    %291 = tpu.matmul %290, %277, %cst_98 {dimension_numbers = #tpu.dot_dimension_numbers<[1], [0], [0], [1], [0, 0, 1, 1], [], []>} : vector<16x16xf32>, vector<16x8xf32>, vector<16x8xf32> -> vector<16x8xf32>
    %292 = vector.extract_strided_slice %223 {offsets = [16, 0], sizes = [8, 32], strides = [1, 1]} : vector<32x32xf32> to vector<8x32xf32>
    %cst_99 = arith.constant dense<0.000000e+00> : vector<16x32xf32>
    %293 = tpu.matmul %291, %292, %cst_99 {dimension_numbers = #tpu.dot_dimension_numbers<[1], [0], [0], [1], [0, 0, 1, 1], [], []>} : vector<16x8xf32>, vector<8x32xf32>, vector<16x32xf32> -> vector<16x32xf32>
    %294 = arith.addf %274, %293 : vector<16x32xf32>
    %295 = vector.extract_strided_slice %233 {offsets = [0, 24], sizes = [16, 8], strides = [1, 1]} : vector<16x96xf32> to vector<16x8xf32>
    %296 = vector.extract_strided_slice %233 {offsets = [0, 56], sizes = [16, 8], strides = [1, 1]} : vector<16x96xf32> to vector<16x8xf32>
    %297 = vector.extract_strided_slice %233 {offsets = [0, 88], sizes = [16, 8], strides = [1, 1]} : vector<16x96xf32> to vector<16x8xf32>
    "tpu.trace_start"() <{level = 10 : i32, message = "qd,kd->qk"}> : () -> ()
    %cst_100 = arith.constant dense<0.000000e+00> : vector<16x16xf32>
    %298 = tpu.matmul %295, %296, %cst_100 {dimension_numbers = #tpu.dot_dimension_numbers<[1], [1], [0], [0], [0, 0, 1, 0], [], []>} : vector<16x8xf32>, vector<16x8xf32>, vector<16x16xf32> -> vector<16x16xf32>
    "tpu.trace_stop"() : () -> ()
    %cst_101 = arith.constant 0.353553385 : f32
    %299 = vector.broadcast %cst_101 : f32 to vector<16x16xf32>
    %300 = arith.mulf %298, %299 : vector<16x16xf32>
    %301 = arith.addf %300, %39 : vector<16x16xf32>
    %cst_102 = arith.constant dense<0xFF800000> : vector<16xf32>
    %302 = vector.multi_reduction <maximumf>, %301, %cst_102 [1] : vector<16x16xf32> to vector<16xf32>
    %303 = vector.shape_cast %302 : vector<16xf32> to vector<16x1xf32>
    %304 = vector.broadcast %303 : vector<16x1xf32> to vector<16x16xf32>
    %305 = arith.subf %301, %304 : vector<16x16xf32>
    %306 = math.exp %305 : vector<16x16xf32>
    %cst_103 = arith.constant dense<0.000000e+00> : vector<16xf32>
    %307 = vector.multi_reduction <add>, %306, %cst_103 [1] : vector<16x16xf32> to vector<16xf32>
    %308 = vector.shape_cast %307 : vector<16xf32> to vector<16x1xf32>
    %309 = vector.broadcast %308 : vector<16x1xf32> to vector<16x16xf32>
    %310 = arith.divf %306, %309 : vector<16x16xf32>
    %cst_104 = arith.constant dense<0.000000e+00> : vector<16x8xf32>
    %311 = tpu.matmul %310, %297, %cst_104 {dimension_numbers = #tpu.dot_dimension_numbers<[1], [0], [0], [1], [0, 0, 1, 1], [], []>} : vector<16x16xf32>, vector<16x8xf32>, vector<16x8xf32> -> vector<16x8xf32>
    %312 = vector.extract_strided_slice %223 {offsets = [24, 0], sizes = [8, 32], strides = [1, 1]} : vector<32x32xf32> to vector<8x32xf32>
    %cst_105 = arith.constant dense<0.000000e+00> : vector<16x32xf32>
    %313 = tpu.matmul %311, %312, %cst_105 {dimension_numbers = #tpu.dot_dimension_numbers<[1], [0], [0], [1], [0, 0, 1, 1], [], []>} : vector<16x8xf32>, vector<8x32xf32>, vector<16x32xf32> -> vector<16x32xf32>
    %314 = arith.addf %294, %313 : vector<16x32xf32>
    %315 = vector.extract_strided_slice %227 {offsets = [1, 0], sizes = [1, 32], strides = [1, 1]} : vector<8x128xf32> to vector<1x32xf32>
    %316 = vector.shape_cast %315 : vector<1x32xf32> to vector<32xf32>
    %317 = vector.shape_cast %316 : vector<32xf32> to vector<1x32xf32>
    %318 = vector.broadcast %317 : vector<1x32xf32> to vector<16x32xf32>
    %319 = arith.addf %314, %318 : vector<16x32xf32>
    %320 = arith.addf %217, %319 : vector<16x32xf32>
    %321 = vector.extract_strided_slice %227 {offsets = [4, 0], sizes = [1, 32], strides = [1, 1]} : vector<8x128xf32> to vector<1x32xf32>
    %322 = vector.shape_cast %321 : vector<1x32xf32> to vector<32xf32>
    %323 = vector.extract_strided_slice %227 {offsets = [5, 0], sizes = [1, 32], strides = [1, 1]} : vector<8x128xf32> to vector<1x32xf32>
    %324 = vector.shape_cast %323 : vector<1x32xf32> to vector<32xf32>
    %cst_106 = arith.constant dense<0.000000e+00> : vector<16xf32>
    %325 = vector.multi_reduction <add>, %320, %cst_106 [1] : vector<16x32xf32> to vector<16xf32>
    %326 = vector.shape_cast %325 : vector<16xf32> to vector<16x1xf32>
    %cst_107 = arith.constant 3.200000e+01 : f32
    %327 = vector.broadcast %cst_107 : f32 to vector<16x1xf32>
    %328 = arith.divf %326, %327 : vector<16x1xf32>
    %329 = vector.broadcast %328 : vector<16x1xf32> to vector<16x32xf32>
    %330 = arith.subf %320, %329 : vector<16x32xf32>
    %331 = arith.mulf %330, %330 : vector<16x32xf32>
    %cst_108 = arith.constant dense<0.000000e+00> : vector<16xf32>
    %332 = vector.multi_reduction <add>, %331, %cst_108 [1] : vector<16x32xf32> to vector<16xf32>
    %333 = vector.shape_cast %332 : vector<16xf32> to vector<16x1xf32>
    %cst_109 = arith.constant 3.200000e+01 : f32
    %334 = vector.broadcast %cst_109 : f32 to vector<16x1xf32>
    %335 = arith.divf %333, %334 : vector<16x1xf32>
    %cst_110 = arith.constant 9.99999974E-6 : f32
    %336 = vector.broadcast %cst_110 : f32 to vector<16x1xf32>
    %337 = arith.addf %335, %336 : vector<16x1xf32>
    %338 = math.rsqrt %337 : vector<16x1xf32>
    %339 = vector.broadcast %338 : vector<16x1xf32> to vector<16x32xf32>
    %340 = arith.mulf %330, %339 : vector<16x32xf32>
    %341 = vector.shape_cast %322 : vector<32xf32> to vector<1x32xf32>
    %342 = vector.broadcast %341 : vector<1x32xf32> to vector<16x32xf32>
    %343 = arith.mulf %340, %342 : vector<16x32xf32>
    %344 = vector.shape_cast %324 : vector<32xf32> to vector<1x32xf32>
    %345 = vector.broadcast %344 : vector<1x32xf32> to vector<16x32xf32>
    %346 = arith.addf %343, %345 : vector<16x32xf32>
    %cst_111 = arith.constant dense<0.000000e+00> : vector<16x64xf32>
    %347 = tpu.matmul %346, %221, %cst_111 {dimension_numbers = #tpu.dot_dimension_numbers<[1], [0], [0], [1], [0, 0, 1, 1], [], []>} : vector<16x32xf32>, vector<32x64xf32>, vector<16x64xf32> -> vector<16x64xf32>
    %348 = vector.extract_strided_slice %227 {offsets = [2, 0], sizes = [1, 64], strides = [1, 1]} : vector<8x128xf32> to vector<1x64xf32>
    %349 = vector.shape_cast %348 : vector<1x64xf32> to vector<64xf32>
    %350 = vector.shape_cast %349 : vector<64xf32> to vector<1x64xf32>
    %351 = vector.broadcast %350 : vector<1x64xf32> to vector<16x64xf32>
    %352 = arith.addf %347, %351 : vector<16x64xf32>
    %cst_112 = arith.constant 5.000000e-01 : f32
    %353 = vector.broadcast %cst_112 : f32 to vector<16x64xf32>
    %354 = arith.mulf %353, %352 : vector<16x64xf32>
    %cst_113 = arith.constant 2.000000e+00 : f32
    %355 = math.sqrt %cst_113 : f32
    %cst_114 = arith.constant 1.000000e+00 : f32
    %356 = arith.divf %cst_114, %355 : f32
    %357 = vector.broadcast %356 : f32 to vector<16x64xf32>
    %358 = arith.mulf %352, %357 : vector<16x64xf32>
    %359 = math.erf %358 : vector<16x64xf32>
    %cst_115 = arith.constant 1.000000e+00 : f32
    %360 = vector.broadcast %cst_115 : f32 to vector<16x64xf32>
    %361 = arith.addf %360, %359 : vector<16x64xf32>
    %362 = arith.mulf %354, %361 : vector<16x64xf32>
    %cst_116 = arith.constant dense<0.000000e+00> : vector<16x32xf32>
    %363 = tpu.matmul %362, %225, %cst_116 {dimension_numbers = #tpu.dot_dimension_numbers<[1], [0], [0], [1], [0, 0, 1, 1], [], []>} : vector<16x64xf32>, vector<64x32xf32>, vector<16x32xf32> -> vector<16x32xf32>
    %364 = vector.extract_strided_slice %227 {offsets = [3, 0], sizes = [1, 32], strides = [1, 1]} : vector<8x128xf32> to vector<1x32xf32>
    %365 = vector.shape_cast %364 : vector<1x32xf32> to vector<32xf32>
    %366 = vector.shape_cast %365 : vector<32xf32> to vector<1x32xf32>
    %367 = vector.broadcast %366 : vector<1x32xf32> to vector<16x32xf32>
    %368 = arith.addf %363, %367 : vector<16x32xf32>
    %369 = arith.addf %346, %368 : vector<16x32xf32>
    %370 = vector.extract_strided_slice %227 {offsets = [6, 0], sizes = [1, 32], strides = [1, 1]} : vector<8x128xf32> to vector<1x32xf32>
    %371 = vector.shape_cast %370 : vector<1x32xf32> to vector<32xf32>
    %372 = vector.extract_strided_slice %227 {offsets = [7, 0], sizes = [1, 32], strides = [1, 1]} : vector<8x128xf32> to vector<1x32xf32>
    %373 = vector.shape_cast %372 : vector<1x32xf32> to vector<32xf32>
    %cst_117 = arith.constant dense<0.000000e+00> : vector<16xf32>
    %374 = vector.multi_reduction <add>, %369, %cst_117 [1] : vector<16x32xf32> to vector<16xf32>
    %375 = vector.shape_cast %374 : vector<16xf32> to vector<16x1xf32>
    %cst_118 = arith.constant 3.200000e+01 : f32
    %376 = vector.broadcast %cst_118 : f32 to vector<16x1xf32>
    %377 = arith.divf %375, %376 : vector<16x1xf32>
    %378 = vector.broadcast %377 : vector<16x1xf32> to vector<16x32xf32>
    %379 = arith.subf %369, %378 : vector<16x32xf32>
    %380 = arith.mulf %379, %379 : vector<16x32xf32>
    %cst_119 = arith.constant dense<0.000000e+00> : vector<16xf32>
    %381 = vector.multi_reduction <add>, %380, %cst_119 [1] : vector<16x32xf32> to vector<16xf32>
    %382 = vector.shape_cast %381 : vector<16xf32> to vector<16x1xf32>
    %cst_120 = arith.constant 3.200000e+01 : f32
    %383 = vector.broadcast %cst_120 : f32 to vector<16x1xf32>
    %384 = arith.divf %382, %383 : vector<16x1xf32>
    %cst_121 = arith.constant 9.99999974E-6 : f32
    %385 = vector.broadcast %cst_121 : f32 to vector<16x1xf32>
    %386 = arith.addf %384, %385 : vector<16x1xf32>
    %387 = math.rsqrt %386 : vector<16x1xf32>
    %388 = vector.broadcast %387 : vector<16x1xf32> to vector<16x32xf32>
    %389 = arith.mulf %379, %388 : vector<16x32xf32>
    %390 = vector.shape_cast %371 : vector<32xf32> to vector<1x32xf32>
    %391 = vector.broadcast %390 : vector<1x32xf32> to vector<16x32xf32>
    %392 = arith.mulf %389, %391 : vector<16x32xf32>
    %393 = vector.shape_cast %373 : vector<32xf32> to vector<1x32xf32>
    %394 = vector.broadcast %393 : vector<1x32xf32> to vector<16x32xf32>
    %395 = arith.addf %392, %394 : vector<16x32xf32>
    %396 = vector.shape_cast %395 : vector<16x32xf32> to vector<8x2x32xf32>
    %c0_122 = arith.constant 0 : index
    %c0_123 = arith.constant 0 : index
    %c0_124 = arith.constant 0 : index
    %397 = vector.load %arg2[%c0_122, %c0_123, %c0_124] : memref<8x2x32xf32, #tpu.memory_space<vmem>>, vector<8x2x32xf32>
    tpu.vector_store %arg2[%c0_122, %c0_123, %c0_124], %396 {strides = array<i32>} : memref<8x2x32xf32, #tpu.memory_space<vmem>>, vector<8x2x32xf32>,
    return
  }
}

</mosaic_0001>

<llo_original>
// kernel: transformer_encoder_layer.1
$region0: #{transformer_encoder_layer.1}
  #allocation0 [shape = 'u32[]', space=smem, size = 0x4, offset = 0x4, fixed_abs, tag = 'smem constant byte address 0x4 - core index']
  #allocation1 [shape = 'u32[144,128]{1,0:T(1,128)}', space=vmem, size = 0x12000, scoped, tag = 'internal scratch']
  %s0 = inlined_call_operand.hbm [shape: f32[8,2,32], index: 0, kind: input, shape index: {}]
  %s1 = inlined_call_operand.hbm [shape: f32[2,64,384], index: 1, kind: input, shape index: {}]
  %s2 = inlined_call_operand.hbm [shape: f32[8,2,32], index: 2, kind: output, shape index: {}]
  %s3 = sld [smem:[#allocation0]]
  $region26: #{transformer_encoder_layer.1} parent=0
    _
  %s5 = ssub.s32 1, %s3
  %s6 = scalar_select 0, %s5, %s3
  $region1: #{transformer_encoder_layer.1} parent=0
    #allocation2 [shape = 'u8[8192]{0}', space=vmem, size = 0x2000, scoped, tag = 'input window, operand 0, single buffered']
    #allocation3 [shape = 's32[1]{0}', space=sflag, size = 0x4, scoped, tag = 'scoped memory for transformer_encoder_layer.1']
    #allocation4 [shape = 's32[1]{0}', space=sflag, size = 0x4, scoped, tag = 'scoped memory for transformer_encoder_layer.1']
    #allocation5 [shape = 'u8[196608]{0}', space=vmem, size = 0x30000, scoped, tag = 'input window, operand 1, single buffered']
    #allocation6 [shape = 's32[1]{0}', space=sflag, size = 0x4, scoped, tag = 'scoped memory for transformer_encoder_layer.1']
    #allocation7 [shape = 'u8[8192]{0}', space=vmem, size = 0x2000, scoped, tag = 'output window, operand 0, single buffered']
    %7 = vsyncpa [#allocation3], 0
    %8 = vsyncpa [#allocation6], 0
    %9 = vsyncpa [#allocation4], 0
    // Predicated region
    $region2: #{transformer_encoder_layer.1} parent=1 // pred_check
      _
    $region3: #{transformer_encoder_layer.1} parent=1 // pred_check_branch
      %11 = sbr.rel (0) target = $region5
    $region4: #{transformer_encoder_layer.1} parent=1 // pred_region
      %s13 = ssub.s32 256, 256
      %14 = vsyncadd [#allocation3], %s13
      %s15 = sshll.u32 [#allocation2], 4
      %s16 = int_to_ptr.vmem [resolvable:$true] %s15
      %21 = dma.hbm_to_vmem [thread:$0]  %s0, 256, %s16, [#allocation3], 32, 32, 2
    $region5: #{transformer_encoder_layer.1} parent=1 // pred_fallthru
      _
    // Predicated region
    $region6: #{transformer_encoder_layer.1} parent=1 // pred_check
      _
    $region7: #{transformer_encoder_layer.1} parent=1 // pred_check_branch
      %23 = sbr.rel (0) target = $region9
    $region8: #{transformer_encoder_layer.1} parent=1 // pred_region
      %s25 = ssub.s32 6144, 6144
      %26 = vsyncadd [#allocation6], %s25
      %s27 = sshll.u32 [#allocation5], 4
      %s28 = int_to_ptr.vmem [resolvable:$true] %s27
      %33 = dma.hbm_to_vmem [thread:$0]  %s1, 6144, %s28, [#allocation6], 384, 384, 24
    $region9: #{transformer_encoder_layer.1} parent=1 // pred_fallthru
      _
    // Predicated region
    $region10: #{transformer_encoder_layer.1} parent=1 // pred_check
      _
    $region11: #{transformer_encoder_layer.1} parent=1 // pred_check_branch
      %35 = sbr.rel (0) target = $region13
    $region12: #{transformer_encoder_layer.1} parent=1 // pred_region
      %36 = dma.done [#allocation3], 256
    $region13: #{transformer_encoder_layer.1} parent=1 // pred_fallthru
      _
    // Predicated region
    $region14: #{transformer_encoder_layer.1} parent=1 // pred_check
      _
    $region15: #{transformer_encoder_layer.1} parent=1 // pred_check_branch
      %38 = sbr.rel (0) target = $region17
    $region16: #{transformer_encoder_layer.1} parent=1 // pred_region
      %39 = dma.done [#allocation6], 6144
    $region17: #{transformer_encoder_layer.1} parent=1 // pred_fallthru
      _
    %v40 = vld [vmem:[#allocation2] sm:$0x3]
    %v41 = vld [vmem:[#allocation2 + $0x2] sm:$0x3]
    %v42 = vld [vmem:[#allocation2 + $0x4] sm:$0x3]
    %v43 = vld [vmem:[#allocation2 + $0x6] sm:$0x3]
    %v44 = vld [vmem:[#allocation2 + $0x8] sm:$0x3]
    %v45 = vld [vmem:[#allocation2 + $0xa] sm:$0x3]
    %v46 = vld [vmem:[#allocation2 + $0xc] sm:$0x3]
    %v47 = vld [vmem:[#allocation2 + $0xe] sm:$0x3]
    %v48 = vlaneseq
    %v49 = vshrl.u32 %v48, 7
    %v50 = vadd.s32 %v49, 8
    %v51 = vlaneseq
    %v52 = vand.u32 %v51, 127
    %vm53 = vcmp.lt.s32.totalorder %v49, 0
    %v54 = vsub.s32 0, %v49
    %v55 = vsel %vm53, %v54, %v49
    %v56 = vshrl.u32 %v55, 1
    %v57 = vand.u32 %v55, 1
    %v58 = vsub.s32 0, %v57
    %v59 = vsel %vm53, %v58, %v57
    %vm60 = vcmp.lt.s32.totalorder %v50, 0
    %v61 = vsub.s32 0, %v50
    %v62 = vsel %vm60, %v61, %v50
    %v63 = vshrl.u32 %v62, 1
    %v64 = vand.u32 %v62, 1
    %v65 = vsub.s32 0, %v64
    %v66 = vsel %vm60, %v65, %v64
    %vm67 = vcmp.ne.s32.totalorder %v59, 0
    %vm68 = vcmp.ne.s32.totalorder %v66, 0
    %vm69 = vcmp.lt.s32.totalorder %v59, 0
    %vm70 = vcmp.lt.s32.totalorder %v66, 0
    %vm71 = vmand %vm69, %vm67
    %vm72 = vmand %vm70, %vm68
    %v73 = vadd.s32 %v59, 2
    %v74 = vadd.s32 %v66, 2
    %v75 = vsel %vm71, %v73, %v59
    %v76 = vsel %vm72, %v74, %v66
    %vm77 = vcmp.lt.s32.totalorder %v52, 0
    %v78 = vsub.s32 0, %v52
    %v79 = vsel %vm77, %v78, %v52
    %v80 = vshrl.u32 %v79, 1
    %v81 = vand.u32 %v79, 1
    %v82 = vsub.s32 0, %v81
    %v83 = vsel %vm77, %v82, %v81
    %vm84 = vcmp.ne.s32.totalorder %v83, 0
    %vm85 = vcmp.lt.s32.totalorder %v83, 0
    %vm86 = vmand %vm85, %vm84
    %v87 = vadd.s32 %v83, 2
    %v88 = vsel %vm86, %v87, %v83
    %vm89 = vcmp.eq.s32.totalorder %v75, %v88
    %vm90 = vcmp.eq.s32.totalorder %v76, %v88
    %v91 = vsel %vm89, 0.0, -1e+30
    %v92 = vsel %vm90, 0.0, -1e+30
    %v93 = vld [vmem:[#allocation5] sm:$0xff]
    %v94 = vld [vmem:[#allocation5 + $0x18] sm:$0xff]
    %v95 = vld [vmem:[#allocation5 + $0x30] sm:$0xff]
    %v96 = vld [vmem:[#allocation5 + $0x48] sm:$0xff]
    %v97 = vld [vmem:[#allocation5 + $0x8] sm:$0xff]
    %v98 = vld [vmem:[#allocation5 + $0x20] sm:$0xff]
    %v99 = vld [vmem:[#allocation5 + $0x38] sm:$0xff]
    %v100 = vld [vmem:[#allocation5 + $0x50] sm:$0xff]
    %v101 = vld [vmem:[#allocation5 + $0x68] sm:$0xff]
    %v102 = vld [vmem:[#allocation5 + $0x80] sm:$0xff]
    %v103 = vld [vmem:[#allocation5 + $0x98] sm:$0xff]
    %v104 = vld [vmem:[#allocation5 + $0xb0] sm:$0xff]
    %v105 = vld [vmem:[#allocation5 + $0x10] sm:$0xff]
    %v106 = vld [vmem:[#allocation5 + $0x28] sm:$0xff]
    %v107 = vld [vmem:[#allocation5 + $0x40] sm:$0xff]
    %v108 = vld [vmem:[#allocation5 + $0x58] sm:$0xff]
    %v109 = vld [vmem:[#allocation5 + $0x70] sm:$0xff]
    %v110 = vld [vmem:[#allocation5 + $0x88] sm:$0xff]
    %v111 = vld [vmem:[#allocation5 + $0xa0] sm:$0xff]
    %v112 = vld [vmem:[#allocation5 + $0xb8] sm:$0xff]
    %v113 = vld [vmem:[#allocation5 + $0x60] sm:$0xff]
    %v114 = vlaneseq
    %v115 = vshrl.u32 %v114, 7
    %v116 = vsub.s32 0, %v115
    %v117 = vrot.slane %v113, %v116
    %v126 = vcombine.low %v40, %v41
    %v127 = vcombine.low %v42, %v43
    %v129 = vunpack.c.l.s4 1983009808
    %v130 = vunpack.c.0.s8 %v129
    %v131 = vlaneseq
    %v132 = vshrl.u32 %v131, 7
    %v133 = vsub.s32 %v130, %v132
    %v134 = vrot.slane %v126, %v133
    %v136 = vunpack.c.l.s4 1983009808
    %v137 = vunpack.c.0.s8 %v136
    %v138 = vlaneseq
    %v139 = vshrl.u32 %v138, 7
    %v140 = vsub.s32 %v137, %v139
    %v141 = vrot.slane %v127, %v140
    %v142 = vcombine.low %v134, %v141
    %v143 = vcombine.low %v44, %v45
    %v144 = vcombine.low %v46, %v47
    %v146 = vunpack.c.l.s4 1983009808
    %v147 = vunpack.c.0.s8 %v146
    %v148 = vlaneseq
    %v149 = vshrl.u32 %v148, 7
    %v150 = vsub.s32 %v147, %v149
    %v151 = vrot.slane %v143, %v150
    %v153 = vunpack.c.l.s4 1983009808
    %v154 = vunpack.c.0.s8 %v153
    %v155 = vlaneseq
    %v156 = vshrl.u32 %v155, 7
    %v157 = vsub.s32 %v154, %v156
    %v158 = vrot.slane %v144, %v157
    %v159 = vcombine.low %v151, %v158
    %vm160 = vcmask 261120
    %v161 = vsel %vm160, %v142, 0
    %v163 = vsel %vm160, %v159, 0
    %165 = vmatprep.subr.mxu0 0.0
    %166 = vmatpush1.msra.mxu0 %v93
    %167 = vmatprep.subr.mxu0 0.0
    %168 = vmatpush1.msra.mxu0 %v94
    %169 = vmatprep.subr.mxu0 0.0
    %170 = vmatpush1.msra.mxu0 %v95
    %171 = vmatprep.subr.mxu0 0.0
    %172 = vmatpush1.msra.mxu0 %v96
    %173 = vmatprep.subr.mxu0 0.0
    %174 = vmatpush1.msra.mxu0 0.0
    %175 = vmatprep.subr.mxu0 0.0
    %176 = vmatpush1.msra.mxu0 0.0
    %177 = vmatprep.subr.mxu0 0.0
    %178 = vmatpush1.msra.mxu0 0.0
    %179 = vmatprep.subr.mxu0 0.0
    %180 = vmatpush1.msra.mxu0 0.0
    %181 = vmatprep.subr.mxu0 0.0
    %182 = vmatpush1.msra.mxu0 0.0
    %183 = vmatprep.subr.mxu0 0.0
    %184 = vmatpush1.msra.mxu0 0.0
    %185 = vmatprep.subr.mxu0 0.0
    %186 = vmatpush1.msra.mxu0 0.0
    %187 = vmatprep.subr.mxu0 0.0
    %188 = vmatpush1.msra.mxu0 0.0
    %189 = vmatprep.subr.mxu0 0.0
    %190 = vmatpush1.msra.mxu0 0.0
    %191 = vmatprep.subr.mxu0 0.0
    %192 = vmatpush1.msra.mxu0 0.0
    %193 = vmatprep.subr.mxu0 0.0
    %194 = vmatpush1.msra.mxu0 0.0
    %195 = vmatprep.subr.mxu0 0.0
    %196 = vmatpush1.msra.mxu0 0.0
    %197 = vmatprep.subr.mxu0 0.0
    %198 = vmatpush1.msra.mxu0 0.0
    %199 = vmatprep.subr.mxu0 0.0
    %200 = vmatpush1.msra.mxu0 0.0
    %201 = vmatprep.subr.mxu0 0.0
    %202 = vmatpush1.msra.mxu0 0.0
    %203 = vmatprep.subr.mxu0 0.0
    %204 = vmatpush1.msra.mxu0 0.0
    %205 = vmatprep.subr.mxu0 0.0
    %206 = vmatpush1.msra.mxu0 0.0
    %207 = vmatprep.subr.mxu0 0.0
    %208 = vmatpush1.msra.mxu0 0.0
    %209 = vmatprep.subr.mxu0 0.0
    %210 = vmatpush1.msra.mxu0 0.0
    %211 = vmatprep.subr.mxu0 0.0
    %212 = vmatpush1.msra.mxu0 0.0
    %213 = vmatprep.subr.mxu0 0.0
    %214 = vmatpush1.msra.mxu0 0.0
    %215 = vmatprep.subr.mxu0 0.0
    %216 = vmatpush1.msra.mxu0 0.0
    %217 = vmatprep.subr.mxu0 0.0
    %218 = vmatpush1.msra.mxu0 0.0
    %219 = vmatprep.subr.mxu0 0.0
    %220 = vmatpush1.msra.mxu0 0.0
    %221 = vmatprep.subr.mxu0 0.0
    %222 = vmatpush1.msra.mxu0 0.0
    %223 = vmatprep.subr.mxu0 0.0
    %224 = vmatpush1.msra.mxu0 0.0
    %225 = vmatprep.subr.mxu0 0.0
    %226 = vmatpush1.msra.mxu0 0.0
    %227 = vmatprep.subr.mxu0 0.0
    %228 = vmatpush1.msra.mxu0 0.0
    %229 = vmatprep.mubr.f32.mxu0 0.0
    %230 = vmatmul.mubr.f32.gmra.mrb[0].mxu0 %v161
    %v231 = vpop.f32.mrb[0].mxu0
    %v232 = vadd.f32 %v117, %v231
    %v233 = vpop.f32.mrb[0].mxu0
    %234 = vmatprep.mubr.f32.mxu0 0.0
    %235 = vmatmul.mubr.f32.gmra.mrb[0].mxu0 %v163
    %v236 = vpop.f32.mrb[0].mxu0
    %v237 = vadd.f32 %v117, %v236
    %v238 = vpop.f32.mrb[0].mxu0
    %239 = vdwg.mxu0
    %242 = vrot.lane.b32.xlu0 %v232, 96
    %v243 = vpop.permute.xlu0 %242
    %244 = vrot.lane.b32.xlu0 %v237, 96
    %v245 = vpop.permute.xlu0 %244
    %vm246 = vcmask 64512
    %v247 = vsel %vm246, %v232, 0
    %v249 = vsel %vm246, %v237, 0
    %v251 = vsel %vm246, %v243, 0
    %v253 = vsel %vm246, %v245, 0
    %255 = vmatprep.subr.mxu0 0.0
    %256 = vmatpush1.xpose.msra.mxu0 %v251
    %257 = vmatprep.subr.mxu0 0.0
    %258 = vmatpush1.xpose.msra.mxu0 %v253
    %259 = vmatprep.subr.mxu0 0.0
    %260 = vmatpush1.xpose.msra.mxu0 0.0
    %261 = vmatprep.subr.mxu0 0.0
    %262 = vmatpush1.xpose.msra.mxu0 0.0
    %263 = vmatprep.subr.mxu0 0.0
    %264 = vmatpush1.xpose.msra.mxu0 0.0
    %265 = vmatprep.subr.mxu0 0.0
    %266 = vmatpush1.xpose.msra.mxu0 0.0
    %267 = vmatprep.subr.mxu0 0.0
    %268 = vmatpush1.xpose.msra.mxu0 0.0
    %269 = vmatprep.subr.mxu0 0.0
    %270 = vmatpush1.xpose.msra.mxu0 0.0
    %271 = vmatprep.subr.mxu0 0.0
    %272 = vmatpush1.xpose.msra.mxu0 0.0
    %273 = vmatprep.subr.mxu0 0.0
    %274 = vmatpush1.xpose.msra.mxu0 0.0
    %275 = vmatprep.subr.mxu0 0.0
    %276 = vmatpush1.xpose.msra.mxu0 0.0
    %277 = vmatprep.subr.mxu0 0.0
    %278 = vmatpush1.xpose.msra.mxu0 0.0
    %279 = vmatprep.subr.mxu0 0.0
    %280 = vmatpush1.xpose.msra.mxu0 0.0
    %281 = vmatprep.subr.mxu0 0.0
    %282 = vmatpush1.xpose.msra.mxu0 0.0
    %283 = vmatprep.subr.mxu0 0.0
    %284 = vmatpush1.xpose.msra.mxu0 0.0
    %285 = vmatprep.subr.mxu0 0.0
    %286 = vmatpush1.xpose.msra.mxu0 0.0
    %287 = vmatprep.subr.mxu0 0.0
    %288 = vmatpush1.xpose.msra.mxu0 0.0
    %289 = vmatprep.subr.mxu0 0.0
    %290 = vmatpush1.xpose.msra.mxu0 0.0
    %291 = vmatprep.subr.mxu0 0.0
    %292 = vmatpush1.xpose.msra.mxu0 0.0
    %293 = vmatprep.subr.mxu0 0.0
    %294 = vmatpush1.xpose.msra.mxu0 0.0
    %295 = vmatprep.subr.mxu0 0.0
    %296 = vmatpush1.xpose.msra.mxu0 0.0
    %297 = vmatprep.subr.mxu0 0.0
    %298 = vmatpush1.xpose.msra.mxu0 0.0
    %299 = vmatprep.subr.mxu0 0.0
    %300 = vmatpush1.xpose.msra.mxu0 0.0
    %301 = vmatprep.subr.mxu0 0.0
    %302 = vmatpush1.xpose.msra.mxu0 0.0
    %303 = vmatprep.subr.mxu0 0.0
    %304 = vmatpush1.xpose.msra.mxu0 0.0
    %305 = vmatprep.subr.mxu0 0.0
    %306 = vmatpush1.xpose.msra.mxu0 0.0
    %307 = vmatprep.subr.mxu0 0.0
    %308 = vmatpush1.xpose.msra.mxu0 0.0
    %309 = vmatprep.subr.mxu0 0.0
    %310 = vmatpush1.xpose.msra.mxu0 0.0
    %311 = vmatprep.subr.mxu0 0.0
    %312 = vmatpush1.xpose.msra.mxu0 0.0
    %313 = vmatprep.subr.mxu0 0.0
    %314 = vmatpush1.xpose.msra.mxu0 0.0
    %315 = vmatprep.subr.mxu0 0.0
    %316 = vmatpush1.xpose.msra.mxu0 0.0
    %317 = vmatprep.subr.mxu0 0.0
    %318 = vmatpush1.xpose.msra.mxu0 0.0
    %319 = vmatprep.mubr.f32.mxu0 0.0
    %320 = vmatmul.mubr.f32.gmra.mrb[0].mxu0 %v247
    %v321 = vpop.f32.mrb[0].mxu0
    %v322 = vadd.f32 0.0, %v321
    %v323 = vpop.f32.mrb[0].mxu0
    %324 = vmatprep.mubr.f32.mxu0 0.0
    %325 = vmatmul.mubr.f32.gmra.mrb[0].mxu0 %v249
    %v326 = vpop.f32.mrb[0].mxu0
    %v327 = vadd.f32 0.0, %v326
    %v328 = vpop.f32.mrb[0].mxu0
    %329 = vdwg.mxu0
    %v330 = vmul.f32 %v322, 0.35355338
    %v331 = vmul.f32 %v327, 0.35355338
    %v332 = vadd.f32 %v330, %v91
    %v333 = vadd.f32 %v331, %v92
    %vm334 = vcmask 130048
    %v335 = vsel %vm334, %v332, -inf
    %336 = vmax.xlane.f32.xlu0 %v335
    %v337 = vpop.xlane.xlu0 %336
    %v338 = vsel %vm334, %v333, -inf
    %339 = vmax.xlane.f32.xlu0 %v338
    %v340 = vpop.xlane.xlu0 %339
    %v341 = vsub.f32 %v332, %v337
    %v342 = vsub.f32 %v333, %v340
    %v343 = vmul.f32 %v341, 1.442695
    %v344 = vpow.pop %v343
    %v345 = vmul.f32 %v342, 1.442695
    %v346 = vpow.pop %v345
    %v347 = vsel %vm334, %v344, 0.0
    %348 = vadd.xlane.f32.xlu0 %v347
    %v349 = vpop.xlane.xlu0 %348
    %v350 = vsel %vm334, %v346, 0.0
    %351 = vadd.xlane.f32.xlu0 %v350
    %v352 = vpop.xlane.xlu0 %351
    %v353 = vrcp.pop %v349
    %v354 = vmul.f32 %v344, %v353
    %v355 = vrcp.pop %v352
    %v356 = vmul.f32 %v346, %v355
    %357 = vrot.lane.b32.xlu0 %v232, 64
    %v358 = vpop.permute.xlu0 %357
    %359 = vrot.lane.b32.xlu0 %v237, 64
    %v360 = vpop.permute.xlu0 %359
    %v364 = vsel %vm334, %v354, 0
    %v367 = vsel %vm334, %v356, 0
    %369 = vmatprep.subr.mxu0 0.0
    %370 = vmatpush1.msra.mxu0 %v358
    %371 = vmatprep.subr.mxu0 0.0
    %372 = vmatpush1.msra.mxu0 %v360
    %373 = vmatprep.subr.mxu0 0.0
    %374 = vmatpush1.msra.mxu0 0.0
    %375 = vmatprep.subr.mxu0 0.0
    %376 = vmatpush1.msra.mxu0 0.0
    %377 = vmatprep.subr.mxu0 0.0
    %378 = vmatpush1.msra.mxu0 0.0
    %379 = vmatprep.subr.mxu0 0.0
    %380 = vmatpush1.msra.mxu0 0.0
    %381 = vmatprep.subr.mxu0 0.0
    %382 = vmatpush1.msra.mxu0 0.0
    %383 = vmatprep.subr.mxu0 0.0
    %384 = vmatpush1.msra.mxu0 0.0
    %385 = vmatprep.subr.mxu0 0.0
    %386 = vmatpush1.msra.mxu0 0.0
    %387 = vmatprep.subr.mxu0 0.0
    %388 = vmatpush1.msra.mxu0 0.0
    %389 = vmatprep.subr.mxu0 0.0
    %390 = vmatpush1.msra.mxu0 0.0
    %391 = vmatprep.subr.mxu0 0.0
    %392 = vmatpush1.msra.mxu0 0.0
    %393 = vmatprep.subr.mxu0 0.0
    %394 = vmatpush1.msra.mxu0 0.0
    %395 = vmatprep.subr.mxu0 0.0
    %396 = vmatpush1.msra.mxu0 0.0
    %397 = vmatprep.subr.mxu0 0.0
    %398 = vmatpush1.msra.mxu0 0.0
    %399 = vmatprep.subr.mxu0 0.0
    %400 = vmatpush1.msra.mxu0 0.0
    %401 = vmatprep.subr.mxu0 0.0
    %402 = vmatpush1.msra.mxu0 0.0
    %403 = vmatprep.subr.mxu0 0.0
    %404 = vmatpush1.msra.mxu0 0.0
    %405 = vmatprep.subr.mxu0 0.0
    %406 = vmatpush1.msra.mxu0 0.0
    %407 = vmatprep.subr.mxu0 0.0
    %408 = vmatpush1.msra.mxu0 0.0
    %409 = vmatprep.subr.mxu0 0.0
    %410 = vmatpush1.msra.mxu0 0.0
    %411 = vmatprep.subr.mxu0 0.0
    %412 = vmatpush1.msra.mxu0 0.0
    %413 = vmatprep.subr.mxu0 0.0
    %414 = vmatpush1.msra.mxu0 0.0
    %415 = vmatprep.subr.mxu0 0.0
    %416 = vmatpush1.msra.mxu0 0.0
    %417 = vmatprep.subr.mxu0 0.0
    %418 = vmatpush1.msra.mxu0 0.0
    %419 = vmatprep.subr.mxu0 0.0
    %420 = vmatpush1.msra.mxu0 0.0
    %421 = vmatprep.subr.mxu0 0.0
    %422 = vmatpush1.msra.mxu0 0.0
    %423 = vmatprep.subr.mxu0 0.0
    %424 = vmatpush1.msra.mxu0 0.0
    %425 = vmatprep.subr.mxu0 0.0
    %426 = vmatpush1.msra.mxu0 0.0
    %427 = vmatprep.subr.mxu0 0.0
    %428 = vmatpush1.msra.mxu0 0.0
    %429 = vmatprep.subr.mxu0 0.0
    %430 = vmatpush1.msra.mxu0 0.0
    %431 = vmatprep.subr.mxu0 0.0
    %432 = vmatpush1.msra.mxu0 0.0
    %433 = vmatprep.mubr.f32.mxu0 0.0
    %434 = vmatmul.mubr.f32.gmra.mrb[0].mxu0 %v364
    %v435 = vpop.f32.mrb[0].mxu0
    %v436 = vadd.f32 0.0, %v435
    %v437 = vpop.f32.mrb[0].mxu0
    %438 = vmatprep.mubr.f32.mxu0 0.0
    %439 = vmatmul.mubr.f32.gmra.mrb[0].mxu0 %v367
    %v440 = vpop.f32.mrb[0].mxu0
    %v441 = vadd.f32 0.0, %v440
    %v442 = vpop.f32.mrb[0].mxu0
    %443 = vdwg.mxu0
    %444 = vrot.lane.b32.xlu0 %v232, 120
    %v445 = vpop.permute.xlu0 %444
    %446 = vrot.lane.b32.xlu0 %v237, 120
    %v447 = vpop.permute.xlu0 %446
    %448 = vrot.lane.b32.xlu0 %v232, 88
    %v449 = vpop.permute.xlu0 %448
    %450 = vrot.lane.b32.xlu0 %v237, 88
    %v451 = vpop.permute.xlu0 %450
    %v452 = vsel %vm246, %v445, 0
    %v454 = vsel %vm246, %v447, 0
    %v456 = vsel %vm246, %v449, 0
    %v458 = vsel %vm246, %v451, 0
    %460 = vmatprep.subr.mxu0 0.0
    %461 = vmatpush1.xpose.msra.mxu0 %v456
    %462 = vmatprep.subr.mxu0 0.0
    %463 = vmatpush1.xpose.msra.mxu0 %v458
    %464 = vmatprep.subr.mxu0 0.0
    %465 = vmatpush1.xpose.msra.mxu0 0.0
    %466 = vmatprep.subr.mxu0 0.0
    %467 = vmatpush1.xpose.msra.mxu0 0.0
    %468 = vmatprep.subr.mxu0 0.0
    %469 = vmatpush1.xpose.msra.mxu0 0.0
    %470 = vmatprep.subr.mxu0 0.0
    %471 = vmatpush1.xpose.msra.mxu0 0.0
    %472 = vmatprep.subr.mxu0 0.0
    %473 = vmatpush1.xpose.msra.mxu0 0.0
    %474 = vmatprep.subr.mxu0 0.0
    %475 = vmatpush1.xpose.msra.mxu0 0.0
    %476 = vmatprep.subr.mxu0 0.0
    %477 = vmatpush1.xpose.msra.mxu0 0.0
    %478 = vmatprep.subr.mxu0 0.0
    %479 = vmatpush1.xpose.msra.mxu0 0.0
    %480 = vmatprep.subr.mxu0 0.0
    %481 = vmatpush1.xpose.msra.mxu0 0.0
    %482 = vmatprep.subr.mxu0 0.0
    %483 = vmatpush1.xpose.msra.mxu0 0.0
    %484 = vmatprep.subr.mxu0 0.0
    %485 = vmatpush1.xpose.msra.mxu0 0.0
    %486 = vmatprep.subr.mxu0 0.0
    %487 = vmatpush1.xpose.msra.mxu0 0.0
    %488 = vmatprep.subr.mxu0 0.0
    %489 = vmatpush1.xpose.msra.mxu0 0.0
    %490 = vmatprep.subr.mxu0 0.0
    %491 = vmatpush1.xpose.msra.mxu0 0.0
    %492 = vmatprep.subr.mxu0 0.0
    %493 = vmatpush1.xpose.msra.mxu0 0.0
    %494 = vmatprep.subr.mxu0 0.0
    %495 = vmatpush1.xpose.msra.mxu0 0.0
    %496 = vmatprep.subr.mxu0 0.0
    %497 = vmatpush1.xpose.msra.mxu0 0.0
    %498 = vmatprep.subr.mxu0 0.0
    %499 = vmatpush1.xpose.msra.mxu0 0.0
    %500 = vmatprep.subr.mxu0 0.0
    %501 = vmatpush1.xpose.msra.mxu0 0.0
    %502 = vmatprep.subr.mxu0 0.0
    %503 = vmatpush1.xpose.msra.mxu0 0.0
    %504 = vmatprep.subr.mxu0 0.0
    %505 = vmatpush1.xpose.msra.mxu0 0.0
    %506 = vmatprep.subr.mxu0 0.0
    %507 = vmatpush1.xpose.msra.mxu0 0.0
    %508 = vmatprep.subr.mxu0 0.0
    %509 = vmatpush1.xpose.msra.mxu0 0.0
    %510 = vmatprep.subr.mxu0 0.0
    %511 = vmatpush1.xpose.msra.mxu0 0.0
    %512 = vmatprep.subr.mxu0 0.0
    %513 = vmatpush1.xpose.msra.mxu0 0.0
    %514 = vmatprep.subr.mxu0 0.0
    %515 = vmatpush1.xpose.msra.mxu0 0.0
    %516 = vmatprep.subr.mxu0 0.0
    %517 = vmatpush1.xpose.msra.mxu0 0.0
    %518 = vmatprep.subr.mxu0 0.0
    %519 = vmatpush1.xpose.msra.mxu0 0.0
    %520 = vmatprep.subr.mxu0 0.0
    %521 = vmatpush1.xpose.msra.mxu0 0.0
    %522 = vmatprep.subr.mxu0 0.0
    %523 = vmatpush1.xpose.msra.mxu0 0.0
    %524 = vmatprep.mubr.f32.mxu0 0.0
    %525 = vmatmul.mubr.f32.gmra.mrb[0].mxu0 %v452
    %v526 = vpop.f32.mrb[0].mxu0
    %v527 = vadd.f32 0.0, %v526
    %v528 = vpop.f32.mrb[0].mxu0
    %529 = vmatprep.mubr.f32.mxu0 0.0
    %530 = vmatmul.mubr.f32.gmra.mrb[0].mxu0 %v454
    %v531 = vpop.f32.mrb[0].mxu0
    %v532 = vadd.f32 0.0, %v531
    %v533 = vpop.f32.mrb[0].mxu0
    %534 = vdwg.mxu0
    %v535 = vmul.f32 %v527, 0.35355338
    %v536 = vmul.f32 %v532, 0.35355338
    %v537 = vadd.f32 %v535, %v91
    %v538 = vadd.f32 %v536, %v92
    %v539 = vsel %vm334, %v537, -inf
    %540 = vmax.xlane.f32.xlu0 %v539
    %v541 = vpop.xlane.xlu0 %540
    %v542 = vsel %vm334, %v538, -inf
    %543 = vmax.xlane.f32.xlu0 %v542
    %v544 = vpop.xlane.xlu0 %543
    %v545 = vsub.f32 %v537, %v541
    %v546 = vsub.f32 %v538, %v544
    %v547 = vmul.f32 %v545, 1.442695
    %v548 = vpow.pop %v547
    %v549 = vmul.f32 %v546, 1.442695
    %v550 = vpow.pop %v549
    %v551 = vsel %vm334, %v548, 0.0
    %552 = vadd.xlane.f32.xlu0 %v551
    %v553 = vpop.xlane.xlu0 %552
    %v554 = vsel %vm334, %v550, 0.0
    %555 = vadd.xlane.f32.xlu0 %v554
    %v556 = vpop.xlane.xlu0 %555
    %v557 = vrcp.pop %v553
    %v558 = vmul.f32 %v548, %v557
    %v559 = vrcp.pop %v556
    %v560 = vmul.f32 %v550, %v559
    %561 = vrot.lane.b32.xlu0 %v232, 56
    %v562 = vpop.permute.xlu0 %561
    %563 = vrot.lane.b32.xlu0 %v237, 56
    %v564 = vpop.permute.xlu0 %563
    %v568 = vsel %vm334, %v558, 0
    %v571 = vsel %vm334, %v560, 0
    %573 = vmatprep.subr.mxu0 0.0
    %574 = vmatpush1.msra.mxu0 %v562
    %575 = vmatprep.subr.mxu0 0.0
    %576 = vmatpush1.msra.mxu0 %v564
    %577 = vmatprep.subr.mxu0 0.0
    %578 = vmatpush1.msra.mxu0 0.0
    %579 = vmatprep.subr.mxu0 0.0
    %580 = vmatpush1.msra.mxu0 0.0
    %581 = vmatprep.subr.mxu0 0.0
    %582 = vmatpush1.msra.mxu0 0.0
    %583 = vmatprep.subr.mxu0 0.0
    %584 = vmatpush1.msra.mxu0 0.0
    %585 = vmatprep.subr.mxu0 0.0
    %586 = vmatpush1.msra.mxu0 0.0
    %587 = vmatprep.subr.mxu0 0.0
    %588 = vmatpush1.msra.mxu0 0.0
    %589 = vmatprep.subr.mxu0 0.0
    %590 = vmatpush1.msra.mxu0 0.0
    %591 = vmatprep.subr.mxu0 0.0
    %592 = vmatpush1.msra.mxu0 0.0
    %593 = vmatprep.subr.mxu0 0.0
    %594 = vmatpush1.msra.mxu0 0.0
    %595 = vmatprep.subr.mxu0 0.0
    %596 = vmatpush1.msra.mxu0 0.0
    %597 = vmatprep.subr.mxu0 0.0
    %598 = vmatpush1.msra.mxu0 0.0
    %599 = vmatprep.subr.mxu0 0.0
    %600 = vmatpush1.msra.mxu0 0.0
    %601 = vmatprep.subr.mxu0 0.0
    %602 = vmatpush1.msra.mxu0 0.0
    %603 = vmatprep.subr.mxu0 0.0
    %604 = vmatpush1.msra.mxu0 0.0
    %605 = vmatprep.subr.mxu0 0.0
    %606 = vmatpush1.msra.mxu0 0.0
    %607 = vmatprep.subr.mxu0 0.0
    %608 = vmatpush1.msra.mxu0 0.0
    %609 = vmatprep.subr.mxu0 0.0
    %610 = vmatpush1.msra.mxu0 0.0
    %611 = vmatprep.subr.mxu0 0.0
    %612 = vmatpush1.msra.mxu0 0.0
    %613 = vmatprep.subr.mxu0 0.0
    %614 = vmatpush1.msra.mxu0 0.0
    %615 = vmatprep.subr.mxu0 0.0
    %616 = vmatpush1.msra.mxu0 0.0
    %617 = vmatprep.subr.mxu0 0.0
    %618 = vmatpush1.msra.mxu0 0.0
    %619 = vmatprep.subr.mxu0 0.0
    %620 = vmatpush1.msra.mxu0 0.0
    %621 = vmatprep.subr.mxu0 0.0
    %622 = vmatpush1.msra.mxu0 0.0
    %623 = vmatprep.subr.mxu0 0.0
    %624 = vmatpush1.msra.mxu0 0.0
    %625 = vmatprep.subr.mxu0 0.0
    %626 = vmatpush1.msra.mxu0 0.0
    %627 = vmatprep.subr.mxu0 0.0
    %628 = vmatpush1.msra.mxu0 0.0
    %629 = vmatprep.subr.mxu0 0.0
    %630 = vmatpush1.msra.mxu0 0.0
    %631 = vmatprep.subr.mxu0 0.0
    %632 = vmatpush1.msra.mxu0 0.0
    %633 = vmatprep.subr.mxu0 0.0
    %634 = vmatpush1.msra.mxu0 0.0
    %635 = vmatprep.subr.mxu0 0.0
    %636 = vmatpush1.msra.mxu0 0.0
    %637 = vmatprep.mubr.f32.mxu0 0.0
    %638 = vmatmul.mubr.f32.gmra.mrb[0].mxu0 %v568
    %v639 = vpop.f32.mrb[0].mxu0
    %v640 = vadd.f32 0.0, %v639
    %v641 = vpop.f32.mrb[0].mxu0
    %642 = vmatprep.mubr.f32.mxu0 0.0
    %643 = vmatmul.mubr.f32.gmra.mrb[0].mxu0 %v571
    %v644 = vpop.f32.mrb[0].mxu0
    %v645 = vadd.f32 0.0, %v644
    %v646 = vpop.f32.mrb[0].mxu0
    %647 = vdwg.mxu0
    %v649 = vsel %vm246, %v640, 0
    %v652 = vsel %vm246, %v645, 0
    %654 = vmatprep.subr.mxu0 0.0
    %655 = vmatpush1.msra.mxu0 %v102
    %656 = vmatprep.subr.mxu0 0.0
    %657 = vmatpush1.msra.mxu0 0.0
    %658 = vmatprep.subr.mxu0 0.0
    %659 = vmatpush1.msra.mxu0 0.0
    %660 = vmatprep.subr.mxu0 0.0
    %661 = vmatpush1.msra.mxu0 0.0
    %662 = vmatprep.subr.mxu0 0.0
    %663 = vmatpush1.msra.mxu0 0.0
    %664 = vmatprep.subr.mxu0 0.0
    %665 = vmatpush1.msra.mxu0 0.0
    %666 = vmatprep.subr.mxu0 0.0
    %667 = vmatpush1.msra.mxu0 0.0
    %668 = vmatprep.subr.mxu0 0.0
    %669 = vmatpush1.msra.mxu0 0.0
    %670 = vmatprep.subr.mxu0 0.0
    %671 = vmatpush1.msra.mxu0 0.0
    %672 = vmatprep.subr.mxu0 0.0
    %673 = vmatpush1.msra.mxu0 0.0
    %674 = vmatprep.subr.mxu0 0.0
    %675 = vmatpush1.msra.mxu0 0.0
    %676 = vmatprep.subr.mxu0 0.0
    %677 = vmatpush1.msra.mxu0 0.0
    %678 = vmatprep.subr.mxu0 0.0
    %679 = vmatpush1.msra.mxu0 0.0
    %680 = vmatprep.subr.mxu0 0.0
    %681 = vmatpush1.msra.mxu0 0.0
    %682 = vmatprep.subr.mxu0 0.0
    %683 = vmatpush1.msra.mxu0 0.0
    %684 = vmatprep.subr.mxu0 0.0
    %685 = vmatpush1.msra.mxu0 0.0
    %686 = vmatprep.subr.mxu0 0.0
    %687 = vmatpush1.msra.mxu0 0.0
    %688 = vmatprep.subr.mxu0 0.0
    %689 = vmatpush1.msra.mxu0 0.0
    %690 = vmatprep.subr.mxu0 0.0
    %691 = vmatpush1.msra.mxu0 0.0
    %692 = vmatprep.subr.mxu0 0.0
    %693 = vmatpush1.msra.mxu0 0.0
    %694 = vmatprep.subr.mxu0 0.0
    %695 = vmatpush1.msra.mxu0 0.0
    %696 = vmatprep.subr.mxu0 0.0
    %697 = vmatpush1.msra.mxu0 0.0
    %698 = vmatprep.subr.mxu0 0.0
    %699 = vmatpush1.msra.mxu0 0.0
    %700 = vmatprep.subr.mxu0 0.0
    %701 = vmatpush1.msra.mxu0 0.0
    %702 = vmatprep.subr.mxu0 0.0
    %703 = vmatpush1.msra.mxu0 0.0
    %704 = vmatprep.subr.mxu0 0.0
    %705 = vmatpush1.msra.mxu0 0.0
    %706 = vmatprep.subr.mxu0 0.0
    %707 = vmatpush1.msra.mxu0 0.0
    %708 = vmatprep.subr.mxu0 0.0
    %709 = vmatpush1.msra.mxu0 0.0
    %710 = vmatprep.subr.mxu0 0.0
    %711 = vmatpush1.msra.mxu0 0.0
    %712 = vmatprep.subr.mxu0 0.0
    %713 = vmatpush1.msra.mxu0 0.0
    %714 = vmatprep.subr.mxu0 0.0
    %715 = vmatpush1.msra.mxu0 0.0
    %716 = vmatprep.subr.mxu0 0.0
    %717 = vmatpush1.msra.mxu0 0.0
    %718 = vmatprep.mubr.f32.mxu0 0.0
    %719 = vmatmul.mubr.f32.gmra.mrb[0].mxu0 %v649
    %v720 = vpop.f32.mrb[0].mxu0
    %v721 = vadd.f32 0.0, %v720
    %v722 = vpop.f32.mrb[0].mxu0
    %723 = vmatprep.mubr.f32.mxu0 0.0
    %724 = vmatmul.mubr.f32.gmra.mrb[0].mxu0 %v652
    %v725 = vpop.f32.mrb[0].mxu0
    %v726 = vadd.f32 0.0, %v725
    %v727 = vpop.f32.mrb[0].mxu0
    %728 = vdwg.mxu0
    %v730 = vsel %vm246, %v436, 0
    %v733 = vsel %vm246, %v441, 0
    %735 = vmatprep.subr.mxu0 0.0
    %736 = vmatpush1.msra.mxu0 %v101
    %737 = vmatprep.subr.mxu0 0.0
    %738 = vmatpush1.msra.mxu0 0.0
    %739 = vmatprep.subr.mxu0 0.0
    %740 = vmatpush1.msra.mxu0 0.0
    %741 = vmatprep.subr.mxu0 0.0
    %742 = vmatpush1.msra.mxu0 0.0
    %743 = vmatprep.subr.mxu0 0.0
    %744 = vmatpush1.msra.mxu0 0.0
    %745 = vmatprep.subr.mxu0 0.0
    %746 = vmatpush1.msra.mxu0 0.0
    %747 = vmatprep.subr.mxu0 0.0
    %748 = vmatpush1.msra.mxu0 0.0
    %749 = vmatprep.subr.mxu0 0.0
    %750 = vmatpush1.msra.mxu0 0.0
    %751 = vmatprep.subr.mxu0 0.0
    %752 = vmatpush1.msra.mxu0 0.0
    %753 = vmatprep.subr.mxu0 0.0
    %754 = vmatpush1.msra.mxu0 0.0
    %755 = vmatprep.subr.mxu0 0.0
    %756 = vmatpush1.msra.mxu0 0.0
    %757 = vmatprep.subr.mxu0 0.0
    %758 = vmatpush1.msra.mxu0 0.0
    %759 = vmatprep.subr.mxu0 0.0
    %760 = vmatpush1.msra.mxu0 0.0
    %761 = vmatprep.subr.mxu0 0.0
    %762 = vmatpush1.msra.mxu0 0.0
    %763 = vmatprep.subr.mxu0 0.0
    %764 = vmatpush1.msra.mxu0 0.0
    %765 = vmatprep.subr.mxu0 0.0
    %766 = vmatpush1.msra.mxu0 0.0
    %767 = vmatprep.subr.mxu0 0.0
    %768 = vmatpush1.msra.mxu0 0.0
    %769 = vmatprep.subr.mxu0 0.0
    %770 = vmatpush1.msra.mxu0 0.0
    %771 = vmatprep.subr.mxu0 0.0
    %772 = vmatpush1.msra.mxu0 0.0
    %773 = vmatprep.subr.mxu0 0.0
    %774 = vmatpush1.msra.mxu0 0.0
    %775 = vmatprep.subr.mxu0 0.0
    %776 = vmatpush1.msra.mxu0 0.0
    %777 = vmatprep.subr.mxu0 0.0
    %778 = vmatpush1.msra.mxu0 0.0
    %779 = vmatprep.subr.mxu0 0.0
    %780 = vmatpush1.msra.mxu0 0.0
    %781 = vmatprep.subr.mxu0 0.0
    %782 = vmatpush1.msra.mxu0 0.0
    %783 = vmatprep.subr.mxu0 0.0
    %784 = vmatpush1.msra.mxu0 0.0
    %785 = vmatprep.subr.mxu0 0.0
    %786 = vmatpush1.msra.mxu0 0.0
    %787 = vmatprep.subr.mxu0 0.0
    %788 = vmatpush1.msra.mxu0 0.0
    %789 = vmatprep.subr.mxu0 0.0
    %790 = vmatpush1.msra.mxu0 0.0
    %791 = vmatprep.subr.mxu0 0.0
    %792 = vmatpush1.msra.mxu0 0.0
    %793 = vmatprep.subr.mxu0 0.0
    %794 = vmatpush1.msra.mxu0 0.0
    %795 = vmatprep.subr.mxu0 0.0
    %796 = vmatpush1.msra.mxu0 0.0
    %797 = vmatprep.subr.mxu0 0.0
    %798 = vmatpush1.msra.mxu0 0.0
    %799 = vmatprep.mubr.f32.mxu0 0.0
    %800 = vmatmul.mubr.f32.gmra.mrb[0].mxu0 %v730
    %v801 = vpop.f32.mrb[0].mxu0
    %v802 = vadd.f32 %v721, %v801
    %v803 = vpop.f32.mrb[0].mxu0
    %804 = vmatprep.mubr.f32.mxu0 0.0
    %805 = vmatmul.mubr.f32.gmra.mrb[0].mxu0 %v733
    %v806 = vpop.f32.mrb[0].mxu0
    %v807 = vadd.f32 %v726, %v806
    %v808 = vpop.f32.mrb[0].mxu0
    %809 = vdwg.mxu0
    %810 = vrot.lane.b32.xlu0 %v232, 112
    %v811 = vpop.permute.xlu0 %810
    %812 = vrot.lane.b32.xlu0 %v237, 112
    %v813 = vpop.permute.xlu0 %812
    %814 = vrot.lane.b32.xlu0 %v232, 80
    %v815 = vpop.permute.xlu0 %814
    %816 = vrot.lane.b32.xlu0 %v237, 80
    %v817 = vpop.permute.xlu0 %816
    %v818 = vsel %vm246, %v811, 0
    %v820 = vsel %vm246, %v813, 0
    %v822 = vsel %vm246, %v815, 0
    %v824 = vsel %vm246, %v817, 0
    %826 = vmatprep.subr.mxu0 0.0
    %827 = vmatpush1.xpose.msra.mxu0 %v822
    %828 = vmatprep.subr.mxu0 0.0
    %829 = vmatpush1.xpose.msra.mxu0 %v824
    %830 = vmatprep.subr.mxu0 0.0
    %831 = vmatpush1.xpose.msra.mxu0 0.0
    %832 = vmatprep.subr.mxu0 0.0
    %833 = vmatpush1.xpose.msra.mxu0 0.0
    %834 = vmatprep.subr.mxu0 0.0
    %835 = vmatpush1.xpose.msra.mxu0 0.0
    %836 = vmatprep.subr.mxu0 0.0
    %837 = vmatpush1.xpose.msra.mxu0 0.0
    %838 = vmatprep.subr.mxu0 0.0
    %839 = vmatpush1.xpose.msra.mxu0 0.0
    %840 = vmatprep.subr.mxu0 0.0
    %841 = vmatpush1.xpose.msra.mxu0 0.0
    %842 = vmatprep.subr.mxu0 0.0
    %843 = vmatpush1.xpose.msra.mxu0 0.0
    %844 = vmatprep.subr.mxu0 0.0
    %845 = vmatpush1.xpose.msra.mxu0 0.0
    %846 = vmatprep.subr.mxu0 0.0
    %847 = vmatpush1.xpose.msra.mxu0 0.0
    %848 = vmatprep.subr.mxu0 0.0
    %849 = vmatpush1.xpose.msra.mxu0 0.0
    %850 = vmatprep.subr.mxu0 0.0
    %851 = vmatpush1.xpose.msra.mxu0 0.0
    %852 = vmatprep.subr.mxu0 0.0
    %853 = vmatpush1.xpose.msra.mxu0 0.0
    %854 = vmatprep.subr.mxu0 0.0
    %855 = vmatpush1.xpose.msra.mxu0 0.0
    %856 = vmatprep.subr.mxu0 0.0
    %857 = vmatpush1.xpose.msra.mxu0 0.0
    %858 = vmatprep.subr.mxu0 0.0
    %859 = vmatpush1.xpose.msra.mxu0 0.0
    %860 = vmatprep.subr.mxu0 0.0
    %861 = vmatpush1.xpose.msra.mxu0 0.0
    %862 = vmatprep.subr.mxu0 0.0
    %863 = vmatpush1.xpose.msra.mxu0 0.0
    %864 = vmatprep.subr.mxu0 0.0
    %865 = vmatpush1.xpose.msra.mxu0 0.0
    %866 = vmatprep.subr.mxu0 0.0
    %867 = vmatpush1.xpose.msra.mxu0 0.0
    %868 = vmatprep.subr.mxu0 0.0
    %869 = vmatpush1.xpose.msra.mxu0 0.0
    %870 = vmatprep.subr.mxu0 0.0
    %871 = vmatpush1.xpose.msra.mxu0 0.0
    %872 = vmatprep.subr.mxu0 0.0
    %873 = vmatpush1.xpose.msra.mxu0 0.0
    %874 = vmatprep.subr.mxu0 0.0
    %875 = vmatpush1.xpose.msra.mxu0 0.0
    %876 = vmatprep.subr.mxu0 0.0
    %877 = vmatpush1.xpose.msra.mxu0 0.0
    %878 = vmatprep.subr.mxu0 0.0
    %879 = vmatpush1.xpose.msra.mxu0 0.0
    %880 = vmatprep.subr.mxu0 0.0
    %881 = vmatpush1.xpose.msra.mxu0 0.0
    %882 = vmatprep.subr.mxu0 0.0
    %883 = vmatpush1.xpose.msra.mxu0 0.0
    %884 = vmatprep.subr.mxu0 0.0
    %885 = vmatpush1.xpose.msra.mxu0 0.0
    %886 = vmatprep.subr.mxu0 0.0
    %887 = vmatpush1.xpose.msra.mxu0 0.0
    %888 = vmatprep.subr.mxu0 0.0
    %889 = vmatpush1.xpose.msra.mxu0 0.0
    %890 = vmatprep.mubr.f32.mxu0 0.0
    %891 = vmatmul.mubr.f32.gmra.mrb[0].mxu0 %v818
    %v892 = vpop.f32.mrb[0].mxu0
    %v893 = vadd.f32 0.0, %v892
    %v894 = vpop.f32.mrb[0].mxu0
    %895 = vmatprep.mubr.f32.mxu0 0.0
    %896 = vmatmul.mubr.f32.gmra.mrb[0].mxu0 %v820
    %v897 = vpop.f32.mrb[0].mxu0
    %v898 = vadd.f32 0.0, %v897
    %v899 = vpop.f32.mrb[0].mxu0
    %900 = vdwg.mxu0
    %v901 = vmul.f32 %v893, 0.35355338
    %v902 = vmul.f32 %v898, 0.35355338
    %v903 = vadd.f32 %v901, %v91
    %v904 = vadd.f32 %v902, %v92
    %v905 = vsel %vm334, %v903, -inf
    %906 = vmax.xlane.f32.xlu0 %v905
    %v907 = vpop.xlane.xlu0 %906
    %v908 = vsel %vm334, %v904, -inf
    %909 = vmax.xlane.f32.xlu0 %v908
    %v910 = vpop.xlane.xlu0 %909
    %v911 = vsub.f32 %v903, %v907
    %v912 = vsub.f32 %v904, %v910
    %v913 = vmul.f32 %v911, 1.442695
    %v914 = vpow.pop %v913
    %v915 = vmul.f32 %v912, 1.442695
    %v916 = vpow.pop %v915
    %v917 = vsel %vm334, %v914, 0.0
    %918 = vadd.xlane.f32.xlu0 %v917
    %v919 = vpop.xlane.xlu0 %918
    %v920 = vsel %vm334, %v916, 0.0
    %921 = vadd.xlane.f32.xlu0 %v920
    %v922 = vpop.xlane.xlu0 %921
    %v923 = vrcp.pop %v919
    %v924 = vmul.f32 %v914, %v923
    %v925 = vrcp.pop %v922
    %v926 = vmul.f32 %v916, %v925
    %927 = vrot.lane.b32.xlu0 %v232, 48
    %v928 = vpop.permute.xlu0 %927
    %929 = vrot.lane.b32.xlu0 %v237, 48
    %v930 = vpop.permute.xlu0 %929
    %v934 = vsel %vm334, %v924, 0
    %v937 = vsel %vm334, %v926, 0
    %939 = vmatprep.subr.mxu0 0.0
    %940 = vmatpush1.msra.mxu0 %v928
    %941 = vmatprep.subr.mxu0 0.0
    %942 = vmatpush1.msra.mxu0 %v930
    %943 = vmatprep.subr.mxu0 0.0
    %944 = vmatpush1.msra.mxu0 0.0
    %945 = vmatprep.subr.mxu0 0.0
    %946 = vmatpush1.msra.mxu0 0.0
    %947 = vmatprep.subr.mxu0 0.0
    %948 = vmatpush1.msra.mxu0 0.0
    %949 = vmatprep.subr.mxu0 0.0
    %950 = vmatpush1.msra.mxu0 0.0
    %951 = vmatprep.subr.mxu0 0.0
    %952 = vmatpush1.msra.mxu0 0.0
    %953 = vmatprep.subr.mxu0 0.0
    %954 = vmatpush1.msra.mxu0 0.0
    %955 = vmatprep.subr.mxu0 0.0
    %956 = vmatpush1.msra.mxu0 0.0
    %957 = vmatprep.subr.mxu0 0.0
    %958 = vmatpush1.msra.mxu0 0.0
    %959 = vmatprep.subr.mxu0 0.0
    %960 = vmatpush1.msra.mxu0 0.0
    %961 = vmatprep.subr.mxu0 0.0
    %962 = vmatpush1.msra.mxu0 0.0
    %963 = vmatprep.subr.mxu0 0.0
    %964 = vmatpush1.msra.mxu0 0.0
    %965 = vmatprep.subr.mxu0 0.0
    %966 = vmatpush1.msra.mxu0 0.0
    %967 = vmatprep.subr.mxu0 0.0
    %968 = vmatpush1.msra.mxu0 0.0
    %969 = vmatprep.subr.mxu0 0.0
    %970 = vmatpush1.msra.mxu0 0.0
    %971 = vmatprep.subr.mxu0 0.0
    %972 = vmatpush1.msra.mxu0 0.0
    %973 = vmatprep.subr.mxu0 0.0
    %974 = vmatpush1.msra.mxu0 0.0
    %975 = vmatprep.subr.mxu0 0.0
    %976 = vmatpush1.msra.mxu0 0.0
    %977 = vmatprep.subr.mxu0 0.0
    %978 = vmatpush1.msra.mxu0 0.0
    %979 = vmatprep.subr.mxu0 0.0
    %980 = vmatpush1.msra.mxu0 0.0
    %981 = vmatprep.subr.mxu0 0.0
    %982 = vmatpush1.msra.mxu0 0.0
    %983 = vmatprep.subr.mxu0 0.0
    %984 = vmatpush1.msra.mxu0 0.0
    %985 = vmatprep.subr.mxu0 0.0
    %986 = vmatpush1.msra.mxu0 0.0
    %987 = vmatprep.subr.mxu0 0.0
    %988 = vmatpush1.msra.mxu0 0.0
    %989 = vmatprep.subr.mxu0 0.0
    %990 = vmatpush1.msra.mxu0 0.0
    %991 = vmatprep.subr.mxu0 0.0
    %992 = vmatpush1.msra.mxu0 0.0
    %993 = vmatprep.subr.mxu0 0.0
    %994 = vmatpush1.msra.mxu0 0.0
    %995 = vmatprep.subr.mxu0 0.0
    %996 = vmatpush1.msra.mxu0 0.0
    %997 = vmatprep.subr.mxu0 0.0
    %998 = vmatpush1.msra.mxu0 0.0
    %999 = vmatprep.subr.mxu0 0.0
    %1000 = vmatpush1.msra.mxu0 0.0
    %1001 = vmatprep.subr.mxu0 0.0
    %1002 = vmatpush1.msra.mxu0 0.0
    %1003 = vmatprep.mubr.f32.mxu0 0.0
    %1004 = vmatmul.mubr.f32.gmra.mrb[0].mxu0 %v934
    %v1005 = vpop.f32.mrb[0].mxu0
    %v1006 = vadd.f32 0.0, %v1005
    %v1007 = vpop.f32.mrb[0].mxu0
    %1008 = vmatprep.mubr.f32.mxu0 0.0
    %1009 = vmatmul.mubr.f32.gmra.mrb[0].mxu0 %v937
    %v1010 = vpop.f32.mrb[0].mxu0
    %v1011 = vadd.f32 0.0, %v1010
    %v1012 = vpop.f32.mrb[0].mxu0
    %1013 = vdwg.mxu0
    %v1015 = vsel %vm246, %v1006, 0
    %v1018 = vsel %vm246, %v1011, 0
    %1020 = vmatprep.subr.mxu0 0.0
    %1021 = vmatpush1.msra.mxu0 %v103
    %1022 = vmatprep.subr.mxu0 0.0
    %1023 = vmatpush1.msra.mxu0 0.0
    %1024 = vmatprep.subr.mxu0 0.0
    %1025 = vmatpush1.msra.mxu0 0.0
    %1026 = vmatprep.subr.mxu0 0.0
    %1027 = vmatpush1.msra.mxu0 0.0
    %1028 = vmatprep.subr.mxu0 0.0
    %1029 = vmatpush1.msra.mxu0 0.0
    %1030 = vmatprep.subr.mxu0 0.0
    %1031 = vmatpush1.msra.mxu0 0.0
    %1032 = vmatprep.subr.mxu0 0.0
    %1033 = vmatpush1.msra.mxu0 0.0
    %1034 = vmatprep.subr.mxu0 0.0
    %1035 = vmatpush1.msra.mxu0 0.0
    %1036 = vmatprep.subr.mxu0 0.0
    %1037 = vmatpush1.msra.mxu0 0.0
    %1038 = vmatprep.subr.mxu0 0.0
    %1039 = vmatpush1.msra.mxu0 0.0
    %1040 = vmatprep.subr.mxu0 0.0
    %1041 = vmatpush1.msra.mxu0 0.0
    %1042 = vmatprep.subr.mxu0 0.0
    %1043 = vmatpush1.msra.mxu0 0.0
    %1044 = vmatprep.subr.mxu0 0.0
    %1045 = vmatpush1.msra.mxu0 0.0
    %1046 = vmatprep.subr.mxu0 0.0
    %1047 = vmatpush1.msra.mxu0 0.0
    %1048 = vmatprep.subr.mxu0 0.0
    %1049 = vmatpush1.msra.mxu0 0.0
    %1050 = vmatprep.subr.mxu0 0.0
    %1051 = vmatpush1.msra.mxu0 0.0
    %1052 = vmatprep.subr.mxu0 0.0
    %1053 = vmatpush1.msra.mxu0 0.0
    %1054 = vmatprep.subr.mxu0 0.0
    %1055 = vmatpush1.msra.mxu0 0.0
    %1056 = vmatprep.subr.mxu0 0.0
    %1057 = vmatpush1.msra.mxu0 0.0
    %1058 = vmatprep.subr.mxu0 0.0
    %1059 = vmatpush1.msra.mxu0 0.0
    %1060 = vmatprep.subr.mxu0 0.0
    %1061 = vmatpush1.msra.mxu0 0.0
    %1062 = vmatprep.subr.mxu0 0.0
    %1063 = vmatpush1.msra.mxu0 0.0
    %1064 = vmatprep.subr.mxu0 0.0
    %1065 = vmatpush1.msra.mxu0 0.0
    %1066 = vmatprep.subr.mxu0 0.0
    %1067 = vmatpush1.msra.mxu0 0.0
    %1068 = vmatprep.subr.mxu0 0.0
    %1069 = vmatpush1.msra.mxu0 0.0
    %1070 = vmatprep.subr.mxu0 0.0
    %1071 = vmatpush1.msra.mxu0 0.0
    %1072 = vmatprep.subr.mxu0 0.0
    %1073 = vmatpush1.msra.mxu0 0.0
    %1074 = vmatprep.subr.mxu0 0.0
    %1075 = vmatpush1.msra.mxu0 0.0
    %1076 = vmatprep.subr.mxu0 0.0
    %1077 = vmatpush1.msra.mxu0 0.0
    %1078 = vmatprep.subr.mxu0 0.0
    %1079 = vmatpush1.msra.mxu0 0.0
    %1080 = vmatprep.subr.mxu0 0.0
    %1081 = vmatpush1.msra.mxu0 0.0
    %1082 = vmatprep.subr.mxu0 0.0
    %1083 = vmatpush1.msra.mxu0 0.0
    %1084 = vmatprep.mubr.f32.mxu0 0.0
    %1085 = vmatmul.mubr.f32.gmra.mrb[0].mxu0 %v1015
    %v1086 = vpop.f32.mrb[0].mxu0
    %v1087 = vadd.f32 0.0, %v1086
    %v1088 = vpop.f32.mrb[0].mxu0
    %1089 = vmatprep.mubr.f32.mxu0 0.0
    %1090 = vmatmul.mubr.f32.gmra.mrb[0].mxu0 %v1018
    %v1091 = vpop.f32.mrb[0].mxu0
    %v1092 = vadd.f32 0.0, %v1091
    %v1093 = vpop.f32.mrb[0].mxu0
    %1094 = vdwg.mxu0
    %v1095 = vadd.f32 %v802, %v1087
    %v1096 = vadd.f32 %v807, %v1092
    %1097 = vrot.lane.b32.xlu0 %v232, 104
    %v1098 = vpop.permute.xlu0 %1097
    %1099 = vrot.lane.b32.xlu0 %v237, 104
    %v1100 = vpop.permute.xlu0 %1099
    %1101 = vrot.lane.b32.xlu0 %v232, 72
    %v1102 = vpop.permute.xlu0 %1101
    %1103 = vrot.lane.b32.xlu0 %v237, 72
    %v1104 = vpop.permute.xlu0 %1103
    %v1105 = vsel %vm246, %v1098, 0
    %v1107 = vsel %vm246, %v1100, 0
    %v1109 = vsel %vm246, %v1102, 0
    %v1111 = vsel %vm246, %v1104, 0
    %1113 = vmatprep.subr.mxu0 0.0
    %1114 = vmatpush1.xpose.msra.mxu0 %v1109
    %1115 = vmatprep.subr.mxu0 0.0
    %1116 = vmatpush1.xpose.msra.mxu0 %v1111
    %1117 = vmatprep.subr.mxu0 0.0
    %1118 = vmatpush1.xpose.msra.mxu0 0.0
    %1119 = vmatprep.subr.mxu0 0.0
    %1120 = vmatpush1.xpose.msra.mxu0 0.0
    %1121 = vmatprep.subr.mxu0 0.0
    %1122 = vmatpush1.xpose.msra.mxu0 0.0
    %1123 = vmatprep.subr.mxu0 0.0
    %1124 = vmatpush1.xpose.msra.mxu0 0.0
    %1125 = vmatprep.subr.mxu0 0.0
    %1126 = vmatpush1.xpose.msra.mxu0 0.0
    %1127 = vmatprep.subr.mxu0 0.0
    %1128 = vmatpush1.xpose.msra.mxu0 0.0
    %1129 = vmatprep.subr.mxu0 0.0
    %1130 = vmatpush1.xpose.msra.mxu0 0.0
    %1131 = vmatprep.subr.mxu0 0.0
    %1132 = vmatpush1.xpose.msra.mxu0 0.0
    %1133 = vmatprep.subr.mxu0 0.0
    %1134 = vmatpush1.xpose.msra.mxu0 0.0
    %1135 = vmatprep.subr.mxu0 0.0
    %1136 = vmatpush1.xpose.msra.mxu0 0.0
    %1137 = vmatprep.subr.mxu0 0.0
    %1138 = vmatpush1.xpose.msra.mxu0 0.0
    %1139 = vmatprep.subr.mxu0 0.0
    %1140 = vmatpush1.xpose.msra.mxu0 0.0
    %1141 = vmatprep.subr.mxu0 0.0
    %1142 = vmatpush1.xpose.msra.mxu0 0.0
    %1143 = vmatprep.subr.mxu0 0.0
    %1144 = vmatpush1.xpose.msra.mxu0 0.0
    %1145 = vmatprep.subr.mxu0 0.0
    %1146 = vmatpush1.xpose.msra.mxu0 0.0
    %1147 = vmatprep.subr.mxu0 0.0
    %1148 = vmatpush1.xpose.msra.mxu0 0.0
    %1149 = vmatprep.subr.mxu0 0.0
    %1150 = vmatpush1.xpose.msra.mxu0 0.0
    %1151 = vmatprep.subr.mxu0 0.0
    %1152 = vmatpush1.xpose.msra.mxu0 0.0
    %1153 = vmatprep.subr.mxu0 0.0
    %1154 = vmatpush1.xpose.msra.mxu0 0.0
    %1155 = vmatprep.subr.mxu0 0.0
    %1156 = vmatpush1.xpose.msra.mxu0 0.0
    %1157 = vmatprep.subr.mxu0 0.0
    %1158 = vmatpush1.xpose.msra.mxu0 0.0
    %1159 = vmatprep.subr.mxu0 0.0
    %1160 = vmatpush1.xpose.msra.mxu0 0.0
    %1161 = vmatprep.subr.mxu0 0.0
    %1162 = vmatpush1.xpose.msra.mxu0 0.0
    %1163 = vmatprep.subr.mxu0 0.0
    %1164 = vmatpush1.xpose.msra.mxu0 0.0
    %1165 = vmatprep.subr.mxu0 0.0
    %1166 = vmatpush1.xpose.msra.mxu0 0.0
    %1167 = vmatprep.subr.mxu0 0.0
    %1168 = vmatpush1.xpose.msra.mxu0 0.0
    %1169 = vmatprep.subr.mxu0 0.0
    %1170 = vmatpush1.xpose.msra.mxu0 0.0
    %1171 = vmatprep.subr.mxu0 0.0
    %1172 = vmatpush1.xpose.msra.mxu0 0.0
    %1173 = vmatprep.subr.mxu0 0.0
    %1174 = vmatpush1.xpose.msra.mxu0 0.0
    %1175 = vmatprep.subr.mxu0 0.0
    %1176 = vmatpush1.xpose.msra.mxu0 0.0
    %1177 = vmatprep.mubr.f32.mxu0 0.0
    %1178 = vmatmul.mubr.f32.gmra.mrb[0].mxu0 %v1105
    %v1179 = vpop.f32.mrb[0].mxu0
    %v1180 = vadd.f32 0.0, %v1179
    %v1181 = vpop.f32.mrb[0].mxu0
    %1182 = vmatprep.mubr.f32.mxu0 0.0
    %1183 = vmatmul.mubr.f32.gmra.mrb[0].mxu0 %v1107
    %v1184 = vpop.f32.mrb[0].mxu0
    %v1185 = vadd.f32 0.0, %v1184
    %v1186 = vpop.f32.mrb[0].mxu0
    %1187 = vdwg.mxu0
    %v1188 = vmul.f32 %v1180, 0.35355338
    %v1189 = vmul.f32 %v1185, 0.35355338
    %v1190 = vadd.f32 %v1188, %v91
    %v1191 = vadd.f32 %v1189, %v92
    %v1192 = vsel %vm334, %v1190, -inf
    %1193 = vmax.xlane.f32.xlu0 %v1192
    %v1194 = vpop.xlane.xlu0 %1193
    %v1195 = vsel %vm334, %v1191, -inf
    %1196 = vmax.xlane.f32.xlu0 %v1195
    %v1197 = vpop.xlane.xlu0 %1196
    %v1198 = vsub.f32 %v1190, %v1194
    %v1199 = vsub.f32 %v1191, %v1197
    %v1200 = vmul.f32 %v1198, 1.442695
    %v1201 = vpow.pop %v1200
    %v1202 = vmul.f32 %v1199, 1.442695
    %v1203 = vpow.pop %v1202
    %v1204 = vsel %vm334, %v1201, 0.0
    %1205 = vadd.xlane.f32.xlu0 %v1204
    %v1206 = vpop.xlane.xlu0 %1205
    %v1207 = vsel %vm334, %v1203, 0.0
    %1208 = vadd.xlane.f32.xlu0 %v1207
    %v1209 = vpop.xlane.xlu0 %1208
    %v1210 = vrcp.pop %v1206
    %v1211 = vmul.f32 %v1201, %v1210
    %v1212 = vrcp.pop %v1209
    %v1213 = vmul.f32 %v1203, %v1212
    %1214 = vrot.lane.b32.xlu0 %v232, 40
    %v1215 = vpop.permute.xlu0 %1214
    %1216 = vrot.lane.b32.xlu0 %v237, 40
    %v1217 = vpop.permute.xlu0 %1216
    %v1221 = vsel %vm334, %v1211, 0
    %v1224 = vsel %vm334, %v1213, 0
    %1226 = vmatprep.subr.mxu0 0.0
    %1227 = vmatpush1.msra.mxu0 %v1215
    %1228 = vmatprep.subr.mxu0 0.0
    %1229 = vmatpush1.msra.mxu0 %v1217
    %1230 = vmatprep.subr.mxu0 0.0
    %1231 = vmatpush1.msra.mxu0 0.0
    %1232 = vmatprep.subr.mxu0 0.0
    %1233 = vmatpush1.msra.mxu0 0.0
    %1234 = vmatprep.subr.mxu0 0.0
    %1235 = vmatpush1.msra.mxu0 0.0
    %1236 = vmatprep.subr.mxu0 0.0
    %1237 = vmatpush1.msra.mxu0 0.0
    %1238 = vmatprep.subr.mxu0 0.0
    %1239 = vmatpush1.msra.mxu0 0.0
    %1240 = vmatprep.subr.mxu0 0.0
    %1241 = vmatpush1.msra.mxu0 0.0
    %1242 = vmatprep.subr.mxu0 0.0
    %1243 = vmatpush1.msra.mxu0 0.0
    %1244 = vmatprep.subr.mxu0 0.0
    %1245 = vmatpush1.msra.mxu0 0.0
    %1246 = vmatprep.subr.mxu0 0.0
    %1247 = vmatpush1.msra.mxu0 0.0
    %1248 = vmatprep.subr.mxu0 0.0
    %1249 = vmatpush1.msra.mxu0 0.0
    %1250 = vmatprep.subr.mxu0 0.0
    %1251 = vmatpush1.msra.mxu0 0.0
    %1252 = vmatprep.subr.mxu0 0.0
    %1253 = vmatpush1.msra.mxu0 0.0
    %1254 = vmatprep.subr.mxu0 0.0
    %1255 = vmatpush1.msra.mxu0 0.0
    %1256 = vmatprep.subr.mxu0 0.0
    %1257 = vmatpush1.msra.mxu0 0.0
    %1258 = vmatprep.subr.mxu0 0.0
    %1259 = vmatpush1.msra.mxu0 0.0
    %1260 = vmatprep.subr.mxu0 0.0
    %1261 = vmatpush1.msra.mxu0 0.0
    %1262 = vmatprep.subr.mxu0 0.0
    %1263 = vmatpush1.msra.mxu0 0.0
    %1264 = vmatprep.subr.mxu0 0.0
    %1265 = vmatpush1.msra.mxu0 0.0
    %1266 = vmatprep.subr.mxu0 0.0
    %1267 = vmatpush1.msra.mxu0 0.0
    %1268 = vmatprep.subr.mxu0 0.0
    %1269 = vmatpush1.msra.mxu0 0.0
    %1270 = vmatprep.subr.mxu0 0.0
    %1271 = vmatpush1.msra.mxu0 0.0
    %1272 = vmatprep.subr.mxu0 0.0
    %1273 = vmatpush1.msra.mxu0 0.0
    %1274 = vmatprep.subr.mxu0 0.0
    %1275 = vmatpush1.msra.mxu0 0.0
    %1276 = vmatprep.subr.mxu0 0.0
    %1277 = vmatpush1.msra.mxu0 0.0
    %1278 = vmatprep.subr.mxu0 0.0
    %1279 = vmatpush1.msra.mxu0 0.0
    %1280 = vmatprep.subr.mxu0 0.0
    %1281 = vmatpush1.msra.mxu0 0.0
    %1282 = vmatprep.subr.mxu0 0.0
    %1283 = vmatpush1.msra.mxu0 0.0
    %1284 = vmatprep.subr.mxu0 0.0
    %1285 = vmatpush1.msra.mxu0 0.0
    %1286 = vmatprep.subr.mxu0 0.0
    %1287 = vmatpush1.msra.mxu0 0.0
    %1288 = vmatprep.subr.mxu0 0.0
    %1289 = vmatpush1.msra.mxu0 0.0
    %1290 = vmatprep.mubr.f32.mxu0 0.0
    %1291 = vmatmul.mubr.f32.gmra.mrb[0].mxu0 %v1221
    %v1292 = vpop.f32.mrb[0].mxu0
    %v1293 = vadd.f32 0.0, %v1292
    %v1294 = vpop.f32.mrb[0].mxu0
    %1295 = vmatprep.mubr.f32.mxu0 0.0
    %1296 = vmatmul.mubr.f32.gmra.mrb[0].mxu0 %v1224
    %v1297 = vpop.f32.mrb[0].mxu0
    %v1298 = vadd.f32 0.0, %v1297
    %v1299 = vpop.f32.mrb[0].mxu0
    %1300 = vdwg.mxu0
    %v1302 = vsel %vm246, %v1293, 0
    %v1305 = vsel %vm246, %v1298, 0
    %1307 = vmatprep.subr.mxu0 0.0
    %1308 = vmatpush1.msra.mxu0 %v104
    %1309 = vmatprep.subr.mxu0 0.0
    %1310 = vmatpush1.msra.mxu0 0.0
    %1311 = vmatprep.subr.mxu0 0.0
    %1312 = vmatpush1.msra.mxu0 0.0
    %1313 = vmatprep.subr.mxu0 0.0
    %1314 = vmatpush1.msra.mxu0 0.0
    %1315 = vmatprep.subr.mxu0 0.0
    %1316 = vmatpush1.msra.mxu0 0.0
    %1317 = vmatprep.subr.mxu0 0.0
    %1318 = vmatpush1.msra.mxu0 0.0
    %1319 = vmatprep.subr.mxu0 0.0
    %1320 = vmatpush1.msra.mxu0 0.0
    %1321 = vmatprep.subr.mxu0 0.0
    %1322 = vmatpush1.msra.mxu0 0.0
    %1323 = vmatprep.subr.mxu0 0.0
    %1324 = vmatpush1.msra.mxu0 0.0
    %1325 = vmatprep.subr.mxu0 0.0
    %1326 = vmatpush1.msra.mxu0 0.0
    %1327 = vmatprep.subr.mxu0 0.0
    %1328 = vmatpush1.msra.mxu0 0.0
    %1329 = vmatprep.subr.mxu0 0.0
    %1330 = vmatpush1.msra.mxu0 0.0
    %1331 = vmatprep.subr.mxu0 0.0
    %1332 = vmatpush1.msra.mxu0 0.0
    %1333 = vmatprep.subr.mxu0 0.0
    %1334 = vmatpush1.msra.mxu0 0.0
    %1335 = vmatprep.subr.mxu0 0.0
    %1336 = vmatpush1.msra.mxu0 0.0
    %1337 = vmatprep.subr.mxu0 0.0
    %1338 = vmatpush1.msra.mxu0 0.0
    %1339 = vmatprep.subr.mxu0 0.0
    %1340 = vmatpush1.msra.mxu0 0.0
    %1341 = vmatprep.subr.mxu0 0.0
    %1342 = vmatpush1.msra.mxu0 0.0
    %1343 = vmatprep.subr.mxu0 0.0
    %1344 = vmatpush1.msra.mxu0 0.0
    %1345 = vmatprep.subr.mxu0 0.0
    %1346 = vmatpush1.msra.mxu0 0.0
    %1347 = vmatprep.subr.mxu0 0.0
    %1348 = vmatpush1.msra.mxu0 0.0
    %1349 = vmatprep.subr.mxu0 0.0
    %1350 = vmatpush1.msra.mxu0 0.0
    %1351 = vmatprep.subr.mxu0 0.0
    %1352 = vmatpush1.msra.mxu0 0.0
    %1353 = vmatprep.subr.mxu0 0.0
    %1354 = vmatpush1.msra.mxu0 0.0
    %1355 = vmatprep.subr.mxu0 0.0
    %1356 = vmatpush1.msra.mxu0 0.0
    %1357 = vmatprep.subr.mxu0 0.0
    %1358 = vmatpush1.msra.mxu0 0.0
    %1359 = vmatprep.subr.mxu0 0.0
    %1360 = vmatpush1.msra.mxu0 0.0
    %1361 = vmatprep.subr.mxu0 0.0
    %1362 = vmatpush1.msra.mxu0 0.0
    %1363 = vmatprep.subr.mxu0 0.0
    %1364 = vmatpush1.msra.mxu0 0.0
    %1365 = vmatprep.subr.mxu0 0.0
    %1366 = vmatpush1.msra.mxu0 0.0
    %1367 = vmatprep.subr.mxu0 0.0
    %1368 = vmatpush1.msra.mxu0 0.0
    %1369 = vmatprep.subr.mxu0 0.0
    %1370 = vmatpush1.msra.mxu0 0.0
    %1371 = vmatprep.mubr.f32.mxu0 0.0
    %1372 = vmatmul.mubr.f32.gmra.mrb[0].mxu0 %v1302
    %v1373 = vpop.f32.mrb[0].mxu0
    %v1374 = vadd.f32 0.0, %v1373
    %v1375 = vpop.f32.mrb[0].mxu0
    %1376 = vmatprep.mubr.f32.mxu0 0.0
    %1377 = vmatmul.mubr.f32.gmra.mrb[0].mxu0 %v1305
    %v1378 = vpop.f32.mrb[0].mxu0
    %v1379 = vadd.f32 0.0, %v1378
    %v1380 = vpop.f32.mrb[0].mxu0
    %1381 = vdwg.mxu0
    %v1382 = vadd.f32 %v1095, %v1374
    %v1383 = vadd.f32 %v1096, %v1379
    %v1384 = vlaneseq
    %v1385 = vshrl.u32 %v1384, 7
    %v1386 = vsub.s32 1, %v1385
    %v1387 = vrot.slane %v113, %v1386
    %v1388 = vadd.f32 %v1382, %v1387
    %v1389 = vadd.f32 %v1383, %v1387
    %v1392 = vcombine.high %v1388, %v1388
    %v1394 = vunpack.c.l.s4 1983009808
    %v1395 = vunpack.c.0.s8 %v1394
    %v1396 = vlaneseq
    %v1397 = vshrl.u32 %v1396, 7
    %v1398 = vsub.s32 %v1395, %v1397
    %v1399 = vrot.slane %v1388, %v1398
    %v1401 = vunpack.c.l.s4 1983009808
    %v1402 = vunpack.c.0.s8 %v1401
    %v1403 = vlaneseq
    %v1404 = vshrl.u32 %v1403, 7
    %v1405 = vsub.s32 %v1402, %v1404
    %v1406 = vrot.slane %v1392, %v1405
    %v1407 = vcombine.high %v1399, %v1399
    %v1408 = vcombine.high %v1406, %v1406
    %v1409 = vcombine.high %v1389, %v1389
    %v1411 = vunpack.c.l.s4 1983009808
    %v1412 = vunpack.c.0.s8 %v1411
    %v1413 = vlaneseq
    %v1414 = vshrl.u32 %v1413, 7
    %v1415 = vsub.s32 %v1412, %v1414
    %v1416 = vrot.slane %v1389, %v1415
    %v1418 = vunpack.c.l.s4 1983009808
    %v1419 = vunpack.c.0.s8 %v1418
    %v1420 = vlaneseq
    %v1421 = vshrl.u32 %v1420, 7
    %v1422 = vsub.s32 %v1419, %v1421
    %v1423 = vrot.slane %v1409, %v1422
    %v1424 = vcombine.high %v1416, %v1416
    %v1425 = vcombine.high %v1423, %v1423
    %v1434 = vadd.f32 %v40, %v1399
    %v1435 = vadd.f32 %v41, %v1407
    %v1436 = vadd.f32 %v42, %v1406
    %v1437 = vadd.f32 %v43, %v1408
    %v1438 = vadd.f32 %v44, %v1416
    %v1439 = vadd.f32 %v45, %v1424
    %v1440 = vadd.f32 %v46, %v1423
    %v1441 = vadd.f32 %v47, %v1425
    %v1450 = vcombine.low %v1434, %v1435
    %v1451 = vcombine.low %v1436, %v1437
    %v1453 = vunpack.c.l.s4 1983009808
    %v1454 = vunpack.c.0.s8 %v1453
    %v1455 = vlaneseq
    %v1456 = vshrl.u32 %v1455, 7
    %v1457 = vsub.s32 %v1454, %v1456
    %v1458 = vrot.slane %v1450, %v1457
    %v1460 = vunpack.c.l.s4 1983009808
    %v1461 = vunpack.c.0.s8 %v1460
    %v1462 = vlaneseq
    %v1463 = vshrl.u32 %v1462, 7
    %v1464 = vsub.s32 %v1461, %v1463
    %v1465 = vrot.slane %v1451, %v1464
    %v1466 = vcombine.low %v1458, %v1465
    %v1467 = vcombine.low %v1438, %v1439
    %v1468 = vcombine.low %v1440, %v1441
    %v1470 = vunpack.c.l.s4 1983009808
    %v1471 = vunpack.c.0.s8 %v1470
    %v1472 = vlaneseq
    %v1473 = vshrl.u32 %v1472, 7
    %v1474 = vsub.s32 %v1471, %v1473
    %v1475 = vrot.slane %v1467, %v1474
    %v1477 = vunpack.c.l.s4 1983009808
    %v1478 = vunpack.c.0.s8 %v1477
    %v1479 = vlaneseq
    %v1480 = vshrl.u32 %v1479, 7
    %v1481 = vsub.s32 %v1478, %v1480
    %v1482 = vrot.slane %v1468, %v1481
    %v1483 = vcombine.low %v1475, %v1482
    %v1486 = vsel %vm160, %v1466, 0.0
    %1487 = vadd.xlane.f32.xlu0 %v1486
    %v1488 = vpop.xlane.xlu0 %1487
    %v1489 = vsel %vm160, %v1483, 0.0
    %1490 = vadd.xlane.f32.xlu0 %v1489
    %v1491 = vpop.xlane.xlu0 %1490
    %v1492 = vrcp.pop 32.0
    %v1493 = vmul.f32 %v1488, %v1492
    %v1494 = vmul.f32 %v1491, %v1492
    %v1498 = vunpack.c.l.s4 269488144
    %v1499 = vunpack.c.0.s8 %v1498
    %v1500 = vlaneseq
    %v1501 = vshrl.u32 %v1500, 7
    %v1502 = vsub.s32 %v1499, %v1501
    %v1503 = vrot.slane %v1493, %v1502
    %v1505 = vunpack.c.l.s4 842150450
    %v1506 = vunpack.c.0.s8 %v1505
    %v1507 = vlaneseq
    %v1508 = vshrl.u32 %v1507, 7
    %v1509 = vsub.s32 %v1506, %v1508
    %v1510 = vrot.slane %v1493, %v1509
    %v1512 = vunpack.c.l.s4 1414812756
    %v1513 = vunpack.c.0.s8 %v1512
    %v1514 = vlaneseq
    %v1515 = vshrl.u32 %v1514, 7
    %v1516 = vsub.s32 %v1513, %v1515
    %v1517 = vrot.slane %v1493, %v1516
    %v1519 = vunpack.c.l.s4 1987475062
    %v1520 = vunpack.c.0.s8 %v1519
    %v1521 = vlaneseq
    %v1522 = vshrl.u32 %v1521, 7
    %v1523 = vsub.s32 %v1520, %v1522
    %v1524 = vrot.slane %v1493, %v1523
    %v1526 = vunpack.c.l.s4 269488144
    %v1527 = vunpack.c.0.s8 %v1526
    %v1528 = vlaneseq
    %v1529 = vshrl.u32 %v1528, 7
    %v1530 = vsub.s32 %v1527, %v1529
    %v1531 = vrot.slane %v1494, %v1530
    %v1533 = vunpack.c.l.s4 842150450
    %v1534 = vunpack.c.0.s8 %v1533
    %v1535 = vlaneseq
    %v1536 = vshrl.u32 %v1535, 7
    %v1537 = vsub.s32 %v1534, %v1536
    %v1538 = vrot.slane %v1494, %v1537
    %v1540 = vunpack.c.l.s4 1414812756
    %v1541 = vunpack.c.0.s8 %v1540
    %v1542 = vlaneseq
    %v1543 = vshrl.u32 %v1542, 7
    %v1544 = vsub.s32 %v1541, %v1543
    %v1545 = vrot.slane %v1494, %v1544
    %v1547 = vunpack.c.l.s4 1987475062
    %v1548 = vunpack.c.0.s8 %v1547
    %v1549 = vlaneseq
    %v1550 = vshrl.u32 %v1549, 7
    %v1551 = vsub.s32 %v1548, %v1550
    %v1552 = vrot.slane %v1494, %v1551
    %v1561 = vsub.f32 %v1434, %v1503
    %v1562 = vsub.f32 %v1435, %v1510
    %v1563 = vsub.f32 %v1436, %v1517
    %v1564 = vsub.f32 %v1437, %v1524
    %v1565 = vsub.f32 %v1438, %v1531
    %v1566 = vsub.f32 %v1439, %v1538
    %v1567 = vsub.f32 %v1440, %v1545
    %v1568 = vsub.f32 %v1441, %v1552
    %v1569 = vmul.f32 %v1561, %v1561
    %v1570 = vmul.f32 %v1562, %v1562
    %v1571 = vmul.f32 %v1563, %v1563
    %v1572 = vmul.f32 %v1564, %v1564
    %v1573 = vmul.f32 %v1565, %v1565
    %v1574 = vmul.f32 %v1566, %v1566
    %v1575 = vmul.f32 %v1567, %v1567
    %v1576 = vmul.f32 %v1568, %v1568
    %v1585 = vcombine.low %v1569, %v1570
    %v1586 = vcombine.low %v1571, %v1572
    %v1588 = vunpack.c.l.s4 1983009808
    %v1589 = vunpack.c.0.s8 %v1588
    %v1590 = vlaneseq
    %v1591 = vshrl.u32 %v1590, 7
    %v1592 = vsub.s32 %v1589, %v1591
    %v1593 = vrot.slane %v1585, %v1592
    %v1595 = vunpack.c.l.s4 1983009808
    %v1596 = vunpack.c.0.s8 %v1595
    %v1597 = vlaneseq
    %v1598 = vshrl.u32 %v1597, 7
    %v1599 = vsub.s32 %v1596, %v1598
    %v1600 = vrot.slane %v1586, %v1599
    %v1601 = vcombine.low %v1593, %v1600
    %v1602 = vcombine.low %v1573, %v1574
    %v1603 = vcombine.low %v1575, %v1576
    %v1605 = vunpack.c.l.s4 1983009808
    %v1606 = vunpack.c.0.s8 %v1605
    %v1607 = vlaneseq
    %v1608 = vshrl.u32 %v1607, 7
    %v1609 = vsub.s32 %v1606, %v1608
    %v1610 = vrot.slane %v1602, %v1609
    %v1612 = vunpack.c.l.s4 1983009808
    %v1613 = vunpack.c.0.s8 %v1612
    %v1614 = vlaneseq
    %v1615 = vshrl.u32 %v1614, 7
    %v1616 = vsub.s32 %v1613, %v1615
    %v1617 = vrot.slane %v1603, %v1616
    %v1618 = vcombine.low %v1610, %v1617
    %v1621 = vsel %vm160, %v1601, 0.0
    %1622 = vadd.xlane.f32.xlu0 %v1621
    %v1623 = vpop.xlane.xlu0 %1622
    %v1624 = vsel %vm160, %v1618, 0.0
    %1625 = vadd.xlane.f32.xlu0 %v1624
    %v1626 = vpop.xlane.xlu0 %1625
    %v1627 = vmul.f32 %v1623, %v1492
    %v1628 = vmul.f32 %v1626, %v1492
    %v1629 = vadd.f32 %v1627, 1e-05
    %v1630 = vadd.f32 %v1628, 1e-05
    %v1631 = vrsqrt.pop %v1629
    %v1632 = vrsqrt.pop %v1630
    %v1636 = vunpack.c.l.s4 269488144
    %v1637 = vunpack.c.0.s8 %v1636
    %v1638 = vlaneseq
    %v1639 = vshrl.u32 %v1638, 7
    %v1640 = vsub.s32 %v1637, %v1639
    %v1641 = vrot.slane %v1631, %v1640
    %v1643 = vunpack.c.l.s4 842150450
    %v1644 = vunpack.c.0.s8 %v1643
    %v1645 = vlaneseq
    %v1646 = vshrl.u32 %v1645, 7
    %v1647 = vsub.s32 %v1644, %v1646
    %v1648 = vrot.slane %v1631, %v1647
    %v1650 = vunpack.c.l.s4 1414812756
    %v1651 = vunpack.c.0.s8 %v1650
    %v1652 = vlaneseq
    %v1653 = vshrl.u32 %v1652, 7
    %v1654 = vsub.s32 %v1651, %v1653
    %v1655 = vrot.slane %v1631, %v1654
    %v1657 = vunpack.c.l.s4 1987475062
    %v1658 = vunpack.c.0.s8 %v1657
    %v1659 = vlaneseq
    %v1660 = vshrl.u32 %v1659, 7
    %v1661 = vsub.s32 %v1658, %v1660
    %v1662 = vrot.slane %v1631, %v1661
    %v1664 = vunpack.c.l.s4 269488144
    %v1665 = vunpack.c.0.s8 %v1664
    %v1666 = vlaneseq
    %v1667 = vshrl.u32 %v1666, 7
    %v1668 = vsub.s32 %v1665, %v1667
    %v1669 = vrot.slane %v1632, %v1668
    %v1671 = vunpack.c.l.s4 842150450
    %v1672 = vunpack.c.0.s8 %v1671
    %v1673 = vlaneseq
    %v1674 = vshrl.u32 %v1673, 7
    %v1675 = vsub.s32 %v1672, %v1674
    %v1676 = vrot.slane %v1632, %v1675
    %v1678 = vunpack.c.l.s4 1414812756
    %v1679 = vunpack.c.0.s8 %v1678
    %v1680 = vlaneseq
    %v1681 = vshrl.u32 %v1680, 7
    %v1682 = vsub.s32 %v1679, %v1681
    %v1683 = vrot.slane %v1632, %v1682
    %v1685 = vunpack.c.l.s4 1987475062
    %v1686 = vunpack.c.0.s8 %v1685
    %v1687 = vlaneseq
    %v1688 = vshrl.u32 %v1687, 7
    %v1689 = vsub.s32 %v1686, %v1688
    %v1690 = vrot.slane %v1632, %v1689
    %v1699 = vmul.f32 %v1561, %v1641
    %v1700 = vmul.f32 %v1562, %v1648
    %v1701 = vmul.f32 %v1563, %v1655
    %v1702 = vmul.f32 %v1564, %v1662
    %v1703 = vmul.f32 %v1565, %v1669
    %v1704 = vmul.f32 %v1566, %v1676
    %v1705 = vmul.f32 %v1567, %v1683
    %v1706 = vmul.f32 %v1568, %v1690
    %v1707 = vlaneseq
    %v1708 = vshrl.u32 %v1707, 7
    %v1709 = vsub.s32 4, %v1708
    %v1710 = vrot.slane %v113, %v1709
    %v1712 = vcombine.high %v1710, %v1710
    %v1714 = vunpack.c.l.s4 1983009808
    %v1715 = vunpack.c.0.s8 %v1714
    %v1716 = vlaneseq
    %v1717 = vshrl.u32 %v1716, 7
    %v1718 = vsub.s32 %v1715, %v1717
    %v1719 = vrot.slane %v1710, %v1718
    %v1721 = vunpack.c.l.s4 1983009808
    %v1722 = vunpack.c.0.s8 %v1721
    %v1723 = vlaneseq
    %v1724 = vshrl.u32 %v1723, 7
    %v1725 = vsub.s32 %v1722, %v1724
    %v1726 = vrot.slane %v1712, %v1725
    %v1727 = vcombine.high %v1719, %v1719
    %v1728 = vcombine.high %v1726, %v1726
    %v1733 = vmul.f32 %v1699, %v1719
    %v1734 = vmul.f32 %v1700, %v1727
    %v1735 = vmul.f32 %v1701, %v1726
    %v1736 = vmul.f32 %v1702, %v1728
    %v1737 = vmul.f32 %v1703, %v1719
    %v1738 = vmul.f32 %v1704, %v1727
    %v1739 = vmul.f32 %v1705, %v1726
    %v1740 = vmul.f32 %v1706, %v1728
    %v1741 = vlaneseq
    %v1742 = vshrl.u32 %v1741, 7
    %v1743 = vsub.s32 5, %v1742
    %v1744 = vrot.slane %v113, %v1743
    %v1746 = vcombine.high %v1744, %v1744
    %v1748 = vunpack.c.l.s4 1983009808
    %v1749 = vunpack.c.0.s8 %v1748
    %v1750 = vlaneseq
    %v1751 = vshrl.u32 %v1750, 7
    %v1752 = vsub.s32 %v1749, %v1751
    %v1753 = vrot.slane %v1744, %v1752
    %v1755 = vunpack.c.l.s4 1983009808
    %v1756 = vunpack.c.0.s8 %v1755
    %v1757 = vlaneseq
    %v1758 = vshrl.u32 %v1757, 7
    %v1759 = vsub.s32 %v1756, %v1758
    %v1760 = vrot.slane %v1746, %v1759
    %v1761 = vcombine.high %v1753, %v1753
    %v1762 = vcombine.high %v1760, %v1760
    %v1767 = vadd.f32 %v1733, %v1753
    %v1768 = vadd.f32 %v1734, %v1761
    %v1769 = vadd.f32 %v1735, %v1760
    %v1770 = vadd.f32 %v1736, %v1762
    %v1771 = vadd.f32 %v1737, %v1753
    %v1772 = vadd.f32 %v1738, %v1761
    %v1773 = vadd.f32 %v1739, %v1760
    %v1774 = vadd.f32 %v1740, %v1762
    %v1775 = vlaneseq
    %v1776 = vshrl.u32 %v1775, 7
    %v1777 = vsub.s32 2, %v1776
    %v1778 = vrot.slane %v113, %v1777
    %v1787 = vcombine.low %v1767, %v1768
    %v1788 = vcombine.low %v1769, %v1770
    %v1790 = vunpack.c.l.s4 1983009808
    %v1791 = vunpack.c.0.s8 %v1790
    %v1792 = vlaneseq
    %v1793 = vshrl.u32 %v1792, 7
    %v1794 = vsub.s32 %v1791, %v1793
    %v1795 = vrot.slane %v1787, %v1794
    %v1797 = vunpack.c.l.s4 1983009808
    %v1798 = vunpack.c.0.s8 %v1797
    %v1799 = vlaneseq
    %v1800 = vshrl.u32 %v1799, 7
    %v1801 = vsub.s32 %v1798, %v1800
    %v1802 = vrot.slane %v1788, %v1801
    %v1803 = vcombine.low %v1795, %v1802
    %v1804 = vcombine.low %v1771, %v1772
    %v1805 = vcombine.low %v1773, %v1774
    %v1807 = vunpack.c.l.s4 1983009808
    %v1808 = vunpack.c.0.s8 %v1807
    %v1809 = vlaneseq
    %v1810 = vshrl.u32 %v1809, 7
    %v1811 = vsub.s32 %v1808, %v1810
    %v1812 = vrot.slane %v1804, %v1811
    %v1814 = vunpack.c.l.s4 1983009808
    %v1815 = vunpack.c.0.s8 %v1814
    %v1816 = vlaneseq
    %v1817 = vshrl.u32 %v1816, 7
    %v1818 = vsub.s32 %v1815, %v1817
    %v1819 = vrot.slane %v1805, %v1818
    %v1820 = vcombine.low %v1812, %v1819
    %v1821 = vsel %vm160, %v1803, 0
    %v1823 = vsel %vm160, %v1820, 0
    %1825 = vmatprep.subr.mxu0 0.0
    %1826 = vmatpush1.msra.mxu0 %v97
    %1827 = vmatprep.subr.mxu0 0.0
    %1828 = vmatpush1.msra.mxu0 %v98
    %1829 = vmatprep.subr.mxu0 0.0
    %1830 = vmatpush1.msra.mxu0 %v99
    %1831 = vmatprep.subr.mxu0 0.0
    %1832 = vmatpush1.msra.mxu0 %v100
    %1833 = vmatprep.subr.mxu0 0.0
    %1834 = vmatpush1.msra.mxu0 0.0
    %1835 = vmatprep.subr.mxu0 0.0
    %1836 = vmatpush1.msra.mxu0 0.0
    %1837 = vmatprep.subr.mxu0 0.0
    %1838 = vmatpush1.msra.mxu0 0.0
    %1839 = vmatprep.subr.mxu0 0.0
    %1840 = vmatpush1.msra.mxu0 0.0
    %1841 = vmatprep.subr.mxu0 0.0
    %1842 = vmatpush1.msra.mxu0 0.0
    %1843 = vmatprep.subr.mxu0 0.0
    %1844 = vmatpush1.msra.mxu0 0.0
    %1845 = vmatprep.subr.mxu0 0.0
    %1846 = vmatpush1.msra.mxu0 0.0
    %1847 = vmatprep.subr.mxu0 0.0
    %1848 = vmatpush1.msra.mxu0 0.0
    %1849 = vmatprep.subr.mxu0 0.0
    %1850 = vmatpush1.msra.mxu0 0.0
    %1851 = vmatprep.subr.mxu0 0.0
    %1852 = vmatpush1.msra.mxu0 0.0
    %1853 = vmatprep.subr.mxu0 0.0
    %1854 = vmatpush1.msra.mxu0 0.0
    %1855 = vmatprep.subr.mxu0 0.0
    %1856 = vmatpush1.msra.mxu0 0.0
    %1857 = vmatprep.subr.mxu0 0.0
    %1858 = vmatpush1.msra.mxu0 0.0
    %1859 = vmatprep.subr.mxu0 0.0
    %1860 = vmatpush1.msra.mxu0 0.0
    %1861 = vmatprep.subr.mxu0 0.0
    %1862 = vmatpush1.msra.mxu0 0.0
    %1863 = vmatprep.subr.mxu0 0.0
    %1864 = vmatpush1.msra.mxu0 0.0
    %1865 = vmatprep.subr.mxu0 0.0
    %1866 = vmatpush1.msra.mxu0 0.0
    %1867 = vmatprep.subr.mxu0 0.0
    %1868 = vmatpush1.msra.mxu0 0.0
    %1869 = vmatprep.subr.mxu0 0.0
    %1870 = vmatpush1.msra.mxu0 0.0
    %1871 = vmatprep.subr.mxu0 0.0
    %1872 = vmatpush1.msra.mxu0 0.0
    %1873 = vmatprep.subr.mxu0 0.0
    %1874 = vmatpush1.msra.mxu0 0.0
    %1875 = vmatprep.subr.mxu0 0.0
    %1876 = vmatpush1.msra.mxu0 0.0
    %1877 = vmatprep.subr.mxu0 0.0
    %1878 = vmatpush1.msra.mxu0 0.0
    %1879 = vmatprep.subr.mxu0 0.0
    %1880 = vmatpush1.msra.mxu0 0.0
    %1881 = vmatprep.subr.mxu0 0.0
    %1882 = vmatpush1.msra.mxu0 0.0
    %1883 = vmatprep.subr.mxu0 0.0
    %1884 = vmatpush1.msra.mxu0 0.0
    %1885 = vmatprep.subr.mxu0 0.0
    %1886 = vmatpush1.msra.mxu0 0.0
    %1887 = vmatprep.subr.mxu0 0.0
    %1888 = vmatpush1.msra.mxu0 0.0
    %1889 = vmatprep.mubr.f32.mxu0 0.0
    %1890 = vmatmul.mubr.f32.gmra.mrb[0].mxu0 %v1821
    %v1891 = vpop.f32.mrb[0].mxu0
    %v1892 = vadd.f32 %v1778, %v1891
    %v1893 = vpop.f32.mrb[0].mxu0
    %1894 = vmatprep.mubr.f32.mxu0 0.0
    %1895 = vmatmul.mubr.f32.gmra.mrb[0].mxu0 %v1823
    %v1896 = vpop.f32.mrb[0].mxu0
    %v1897 = vadd.f32 %v1778, %v1896
    %v1898 = vpop.f32.mrb[0].mxu0
    %1899 = vdwg.mxu0
    %v1900 = vmul.f32 %v1892, 0.5
    %v1901 = vmul.f32 %v1897, 0.5
    %v1902 = vmul.f32 %v1892, 0.70710677
    %v1903 = vmul.f32 %v1897, 0.70710677
    %v1904 = verf.f32.pop %v1902
    %v1905 = verf.f32.pop %v1903
    %v1906 = vadd.f32 %v1904, 1.0
    %v1907 = vadd.f32 %v1905, 1.0
    %v1908 = vmul.f32 %v1900, %v1906
    %v1909 = vmul.f32 %v1901, %v1907
    %v1910 = vlaneseq
    %v1911 = vshrl.u32 %v1910, 7
    %v1912 = vsub.s32 3, %v1911
    %v1913 = vrot.slane %v113, %v1912
    %vm1914 = vcmask 523264
    %v1916 = vsel %vm1914, %v1908, 0
    %v1919 = vsel %vm1914, %v1909, 0
    %1921 = vmatprep.subr.mxu0 0.0
    %1922 = vmatpush1.msra.mxu0 %v105
    %1923 = vmatprep.subr.mxu0 0.0
    %1924 = vmatpush1.msra.mxu0 %v106
    %1925 = vmatprep.subr.mxu0 0.0
    %1926 = vmatpush1.msra.mxu0 %v107
    %1927 = vmatprep.subr.mxu0 0.0
    %1928 = vmatpush1.msra.mxu0 %v108
    %1929 = vmatprep.subr.mxu0 0.0
    %1930 = vmatpush1.msra.mxu0 %v109
    %1931 = vmatprep.subr.mxu0 0.0
    %1932 = vmatpush1.msra.mxu0 %v110
    %1933 = vmatprep.subr.mxu0 0.0
    %1934 = vmatpush1.msra.mxu0 %v111
    %1935 = vmatprep.subr.mxu0 0.0
    %1936 = vmatpush1.msra.mxu0 %v112
    %1937 = vmatprep.subr.mxu0 0.0
    %1938 = vmatpush1.msra.mxu0 0.0
    %1939 = vmatprep.subr.mxu0 0.0
    %1940 = vmatpush1.msra.mxu0 0.0
    %1941 = vmatprep.subr.mxu0 0.0
    %1942 = vmatpush1.msra.mxu0 0.0
    %1943 = vmatprep.subr.mxu0 0.0
    %1944 = vmatpush1.msra.mxu0 0.0
    %1945 = vmatprep.subr.mxu0 0.0
    %1946 = vmatpush1.msra.mxu0 0.0
    %1947 = vmatprep.subr.mxu0 0.0
    %1948 = vmatpush1.msra.mxu0 0.0
    %1949 = vmatprep.subr.mxu0 0.0
    %1950 = vmatpush1.msra.mxu0 0.0
    %1951 = vmatprep.subr.mxu0 0.0
    %1952 = vmatpush1.msra.mxu0 0.0
    %1953 = vmatprep.subr.mxu0 0.0
    %1954 = vmatpush1.msra.mxu0 0.0
    %1955 = vmatprep.subr.mxu0 0.0
    %1956 = vmatpush1.msra.mxu0 0.0
    %1957 = vmatprep.subr.mxu0 0.0
    %1958 = vmatpush1.msra.mxu0 0.0
    %1959 = vmatprep.subr.mxu0 0.0
    %1960 = vmatpush1.msra.mxu0 0.0
    %1961 = vmatprep.subr.mxu0 0.0
    %1962 = vmatpush1.msra.mxu0 0.0
    %1963 = vmatprep.subr.mxu0 0.0
    %1964 = vmatpush1.msra.mxu0 0.0
    %1965 = vmatprep.subr.mxu0 0.0
    %1966 = vmatpush1.msra.mxu0 0.0
    %1967 = vmatprep.subr.mxu0 0.0
    %1968 = vmatpush1.msra.mxu0 0.0
    %1969 = vmatprep.subr.mxu0 0.0
    %1970 = vmatpush1.msra.mxu0 0.0
    %1971 = vmatprep.subr.mxu0 0.0
    %1972 = vmatpush1.msra.mxu0 0.0
    %1973 = vmatprep.subr.mxu0 0.0
    %1974 = vmatpush1.msra.mxu0 0.0
    %1975 = vmatprep.subr.mxu0 0.0
    %1976 = vmatpush1.msra.mxu0 0.0
    %1977 = vmatprep.subr.mxu0 0.0
    %1978 = vmatpush1.msra.mxu0 0.0
    %1979 = vmatprep.subr.mxu0 0.0
    %1980 = vmatpush1.msra.mxu0 0.0
    %1981 = vmatprep.subr.mxu0 0.0
    %1982 = vmatpush1.msra.mxu0 0.0
    %1983 = vmatprep.subr.mxu0 0.0
    %1984 = vmatpush1.msra.mxu0 0.0
    %1985 = vmatprep.mubr.f32.mxu0 0.0
    %1986 = vmatmul.mubr.f32.gmra.mrb[0].mxu0 %v1916
    %v1987 = vpop.f32.mrb[0].mxu0
    %v1988 = vadd.f32 %v1913, %v1987
    %v1989 = vpop.f32.mrb[0].mxu0
    %1990 = vmatprep.mubr.f32.mxu0 0.0
    %1991 = vmatmul.mubr.f32.gmra.mrb[0].mxu0 %v1919
    %v1992 = vpop.f32.mrb[0].mxu0
    %v1993 = vadd.f32 %v1913, %v1992
    %v1994 = vpop.f32.mrb[0].mxu0
    %1995 = vdwg.mxu0
    %v1998 = vcombine.high %v1988, %v1988
    %v2000 = vunpack.c.l.s4 1983009808
    %v2001 = vunpack.c.0.s8 %v2000
    %v2002 = vlaneseq
    %v2003 = vshrl.u32 %v2002, 7
    %v2004 = vsub.s32 %v2001, %v2003
    %v2005 = vrot.slane %v1988, %v2004
    %v2007 = vunpack.c.l.s4 1983009808
    %v2008 = vunpack.c.0.s8 %v2007
    %v2009 = vlaneseq
    %v2010 = vshrl.u32 %v2009, 7
    %v2011 = vsub.s32 %v2008, %v2010
    %v2012 = vrot.slane %v1998, %v2011
    %v2013 = vcombine.high %v2005, %v2005
    %v2014 = vcombine.high %v2012, %v2012
    %v2015 = vcombine.high %v1993, %v1993
    %v2017 = vunpack.c.l.s4 1983009808
    %v2018 = vunpack.c.0.s8 %v2017
    %v2019 = vlaneseq
    %v2020 = vshrl.u32 %v2019, 7
    %v2021 = vsub.s32 %v2018, %v2020
    %v2022 = vrot.slane %v1993, %v2021
    %v2024 = vunpack.c.l.s4 1983009808
    %v2025 = vunpack.c.0.s8 %v2024
    %v2026 = vlaneseq
    %v2027 = vshrl.u32 %v2026, 7
    %v2028 = vsub.s32 %v2025, %v2027
    %v2029 = vrot.slane %v2015, %v2028
    %v2030 = vcombine.high %v2022, %v2022
    %v2031 = vcombine.high %v2029, %v2029
    %v2040 = vadd.f32 %v1767, %v2005
    %v2041 = vadd.f32 %v1768, %v2013
    %v2042 = vadd.f32 %v1769, %v2012
    %v2043 = vadd.f32 %v1770, %v2014
    %v2044 = vadd.f32 %v1771, %v2022
    %v2045 = vadd.f32 %v1772, %v2030
    %v2046 = vadd.f32 %v1773, %v2029
    %v2047 = vadd.f32 %v1774, %v2031
    %v2056 = vcombine.low %v2040, %v2041
    %v2057 = vcombine.low %v2042, %v2043
    %v2059 = vunpack.c.l.s4 1983009808
    %v2060 = vunpack.c.0.s8 %v2059
    %v2061 = vlaneseq
    %v2062 = vshrl.u32 %v2061, 7
    %v2063 = vsub.s32 %v2060, %v2062
    %v2064 = vrot.slane %v2056, %v2063
    %v2066 = vunpack.c.l.s4 1983009808
    %v2067 = vunpack.c.0.s8 %v2066
    %v2068 = vlaneseq
    %v2069 = vshrl.u32 %v2068, 7
    %v2070 = vsub.s32 %v2067, %v2069
    %v2071 = vrot.slane %v2057, %v2070
    %v2072 = vcombine.low %v2064, %v2071
    %v2073 = vcombine.low %v2044, %v2045
    %v2074 = vcombine.low %v2046, %v2047
    %v2076 = vunpack.c.l.s4 1983009808
    %v2077 = vunpack.c.0.s8 %v2076
    %v2078 = vlaneseq
    %v2079 = vshrl.u32 %v2078, 7
    %v2080 = vsub.s32 %v2077, %v2079
    %v2081 = vrot.slane %v2073, %v2080
    %v2083 = vunpack.c.l.s4 1983009808
    %v2084 = vunpack.c.0.s8 %v2083
    %v2085 = vlaneseq
    %v2086 = vshrl.u32 %v2085, 7
    %v2087 = vsub.s32 %v2084, %v2086
    %v2088 = vrot.slane %v2074, %v2087
    %v2089 = vcombine.low %v2081, %v2088
    %v2092 = vsel %vm160, %v2072, 0.0
    %2093 = vadd.xlane.f32.xlu0 %v2092
    %v2094 = vpop.xlane.xlu0 %2093
    %v2095 = vsel %vm160, %v2089, 0.0
    %2096 = vadd.xlane.f32.xlu0 %v2095
    %v2097 = vpop.xlane.xlu0 %2096
    %v2098 = vmul.f32 %v2094, %v1492
    %v2099 = vmul.f32 %v2097, %v1492
    %v2103 = vunpack.c.l.s4 269488144
    %v2104 = vunpack.c.0.s8 %v2103
    %v2105 = vlaneseq
    %v2106 = vshrl.u32 %v2105, 7
    %v2107 = vsub.s32 %v2104, %v2106
    %v2108 = vrot.slane %v2098, %v2107
    %v2110 = vunpack.c.l.s4 842150450
    %v2111 = vunpack.c.0.s8 %v2110
    %v2112 = vlaneseq
    %v2113 = vshrl.u32 %v2112, 7
    %v2114 = vsub.s32 %v2111, %v2113
    %v2115 = vrot.slane %v2098, %v2114
    %v2117 = vunpack.c.l.s4 1414812756
    %v2118 = vunpack.c.0.s8 %v2117
    %v2119 = vlaneseq
    %v2120 = vshrl.u32 %v2119, 7
    %v2121 = vsub.s32 %v2118, %v2120
    %v2122 = vrot.slane %v2098, %v2121
    %v2124 = vunpack.c.l.s4 1987475062
    %v2125 = vunpack.c.0.s8 %v2124
    %v2126 = vlaneseq
    %v2127 = vshrl.u32 %v2126, 7
    %v2128 = vsub.s32 %v2125, %v2127
    %v2129 = vrot.slane %v2098, %v2128
    %v2131 = vunpack.c.l.s4 269488144
    %v2132 = vunpack.c.0.s8 %v2131
    %v2133 = vlaneseq
    %v2134 = vshrl.u32 %v2133, 7
    %v2135 = vsub.s32 %v2132, %v2134
    %v2136 = vrot.slane %v2099, %v2135
    %v2138 = vunpack.c.l.s4 842150450
    %v2139 = vunpack.c.0.s8 %v2138
    %v2140 = vlaneseq
    %v2141 = vshrl.u32 %v2140, 7
    %v2142 = vsub.s32 %v2139, %v2141
    %v2143 = vrot.slane %v2099, %v2142
    %v2145 = vunpack.c.l.s4 1414812756
    %v2146 = vunpack.c.0.s8 %v2145
    %v2147 = vlaneseq
    %v2148 = vshrl.u32 %v2147, 7
    %v2149 = vsub.s32 %v2146, %v2148
    %v2150 = vrot.slane %v2099, %v2149
    %v2152 = vunpack.c.l.s4 1987475062
    %v2153 = vunpack.c.0.s8 %v2152
    %v2154 = vlaneseq
    %v2155 = vshrl.u32 %v2154, 7
    %v2156 = vsub.s32 %v2153, %v2155
    %v2157 = vrot.slane %v2099, %v2156
    %v2166 = vsub.f32 %v2040, %v2108
    %v2167 = vsub.f32 %v2041, %v2115
    %v2168 = vsub.f32 %v2042, %v2122
    %v2169 = vsub.f32 %v2043, %v2129
    %v2170 = vsub.f32 %v2044, %v2136
    %v2171 = vsub.f32 %v2045, %v2143
    %v2172 = vsub.f32 %v2046, %v2150
    %v2173 = vsub.f32 %v2047, %v2157
    %v2174 = vmul.f32 %v2166, %v2166
    %v2175 = vmul.f32 %v2167, %v2167
    %v2176 = vmul.f32 %v2168, %v2168
    %v2177 = vmul.f32 %v2169, %v2169
    %v2178 = vmul.f32 %v2170, %v2170
    %v2179 = vmul.f32 %v2171, %v2171
    %v2180 = vmul.f32 %v2172, %v2172
    %v2181 = vmul.f32 %v2173, %v2173
    %v2190 = vcombine.low %v2174, %v2175
    %v2191 = vcombine.low %v2176, %v2177
    %v2193 = vunpack.c.l.s4 1983009808
    %v2194 = vunpack.c.0.s8 %v2193
    %v2195 = vlaneseq
    %v2196 = vshrl.u32 %v2195, 7
    %v2197 = vsub.s32 %v2194, %v2196
    %v2198 = vrot.slane %v2190, %v2197
    %v2200 = vunpack.c.l.s4 1983009808
    %v2201 = vunpack.c.0.s8 %v2200
    %v2202 = vlaneseq
    %v2203 = vshrl.u32 %v2202, 7
    %v2204 = vsub.s32 %v2201, %v2203
    %v2205 = vrot.slane %v2191, %v2204
    %v2206 = vcombine.low %v2198, %v2205
    %v2207 = vcombine.low %v2178, %v2179
    %v2208 = vcombine.low %v2180, %v2181
    %v2210 = vunpack.c.l.s4 1983009808
    %v2211 = vunpack.c.0.s8 %v2210
    %v2212 = vlaneseq
    %v2213 = vshrl.u32 %v2212, 7
    %v2214 = vsub.s32 %v2211, %v2213
    %v2215 = vrot.slane %v2207, %v2214
    %v2217 = vunpack.c.l.s4 1983009808
    %v2218 = vunpack.c.0.s8 %v2217
    %v2219 = vlaneseq
    %v2220 = vshrl.u32 %v2219, 7
    %v2221 = vsub.s32 %v2218, %v2220
    %v2222 = vrot.slane %v2208, %v2221
    %v2223 = vcombine.low %v2215, %v2222
    %v2226 = vsel %vm160, %v2206, 0.0
    %2227 = vadd.xlane.f32.xlu0 %v2226
    %v2228 = vpop.xlane.xlu0 %2227
    %v2229 = vsel %vm160, %v2223, 0.0
    %2230 = vadd.xlane.f32.xlu0 %v2229
    %v2231 = vpop.xlane.xlu0 %2230
    %v2232 = vmul.f32 %v2228, %v1492
    %v2233 = vmul.f32 %v2231, %v1492
    %v2234 = vadd.f32 %v2232, 1e-05
    %v2235 = vadd.f32 %v2233, 1e-05
    %v2236 = vrsqrt.pop %v2234
    %v2237 = vrsqrt.pop %v2235
    %v2241 = vunpack.c.l.s4 269488144
    %v2242 = vunpack.c.0.s8 %v2241
    %v2243 = vlaneseq
    %v2244 = vshrl.u32 %v2243, 7
    %v2245 = vsub.s32 %v2242, %v2244
    %v2246 = vrot.slane %v2236, %v2245
    %v2248 = vunpack.c.l.s4 842150450
    %v2249 = vunpack.c.0.s8 %v2248
    %v2250 = vlaneseq
    %v2251 = vshrl.u32 %v2250, 7
    %v2252 = vsub.s32 %v2249, %v2251
    %v2253 = vrot.slane %v2236, %v2252
    %v2255 = vunpack.c.l.s4 1414812756
    %v2256 = vunpack.c.0.s8 %v2255
    %v2257 = vlaneseq
    %v2258 = vshrl.u32 %v2257, 7
    %v2259 = vsub.s32 %v2256, %v2258
    %v2260 = vrot.slane %v2236, %v2259
    %v2262 = vunpack.c.l.s4 1987475062
    %v2263 = vunpack.c.0.s8 %v2262
    %v2264 = vlaneseq
    %v2265 = vshrl.u32 %v2264, 7
    %v2266 = vsub.s32 %v2263, %v2265
    %v2267 = vrot.slane %v2236, %v2266
    %v2269 = vunpack.c.l.s4 269488144
    %v2270 = vunpack.c.0.s8 %v2269
    %v2271 = vlaneseq
    %v2272 = vshrl.u32 %v2271, 7
    %v2273 = vsub.s32 %v2270, %v2272
    %v2274 = vrot.slane %v2237, %v2273
    %v2276 = vunpack.c.l.s4 842150450
    %v2277 = vunpack.c.0.s8 %v2276
    %v2278 = vlaneseq
    %v2279 = vshrl.u32 %v2278, 7
    %v2280 = vsub.s32 %v2277, %v2279
    %v2281 = vrot.slane %v2237, %v2280
    %v2283 = vunpack.c.l.s4 1414812756
    %v2284 = vunpack.c.0.s8 %v2283
    %v2285 = vlaneseq
    %v2286 = vshrl.u32 %v2285, 7
    %v2287 = vsub.s32 %v2284, %v2286
    %v2288 = vrot.slane %v2237, %v2287
    %v2290 = vunpack.c.l.s4 1987475062
    %v2291 = vunpack.c.0.s8 %v2290
    %v2292 = vlaneseq
    %v2293 = vshrl.u32 %v2292, 7
    %v2294 = vsub.s32 %v2291, %v2293
    %v2295 = vrot.slane %v2237, %v2294
    %v2304 = vmul.f32 %v2166, %v2246
    %v2305 = vmul.f32 %v2167, %v2253
    %v2306 = vmul.f32 %v2168, %v2260
    %v2307 = vmul.f32 %v2169, %v2267
    %v2308 = vmul.f32 %v2170, %v2274
    %v2309 = vmul.f32 %v2171, %v2281
    %v2310 = vmul.f32 %v2172, %v2288
    %v2311 = vmul.f32 %v2173, %v2295
    %v2312 = vlaneseq
    %v2313 = vshrl.u32 %v2312, 7
    %v2314 = vsub.s32 6, %v2313
    %v2315 = vrot.slane %v113, %v2314
    %v2317 = vcombine.high %v2315, %v2315
    %v2319 = vunpack.c.l.s4 1983009808
    %v2320 = vunpack.c.0.s8 %v2319
    %v2321 = vlaneseq
    %v2322 = vshrl.u32 %v2321, 7
    %v2323 = vsub.s32 %v2320, %v2322
    %v2324 = vrot.slane %v2315, %v2323
    %v2326 = vunpack.c.l.s4 1983009808
    %v2327 = vunpack.c.0.s8 %v2326
    %v2328 = vlaneseq
    %v2329 = vshrl.u32 %v2328, 7
    %v2330 = vsub.s32 %v2327, %v2329
    %v2331 = vrot.slane %v2317, %v2330
    %v2332 = vcombine.high %v2324, %v2324
    %v2333 = vcombine.high %v2331, %v2331
    %v2338 = vmul.f32 %v2304, %v2324
    %v2339 = vmul.f32 %v2305, %v2332
    %v2340 = vmul.f32 %v2306, %v2331
    %v2341 = vmul.f32 %v2307, %v2333
    %v2342 = vmul.f32 %v2308, %v2324
    %v2343 = vmul.f32 %v2309, %v2332
    %v2344 = vmul.f32 %v2310, %v2331
    %v2345 = vmul.f32 %v2311, %v2333
    %v2346 = vlaneseq
    %v2347 = vshrl.u32 %v2346, 7
    %v2348 = vsub.s32 7, %v2347
    %v2349 = vrot.slane %v113, %v2348
    %v2351 = vcombine.high %v2349, %v2349
    %v2353 = vunpack.c.l.s4 1983009808
    %v2354 = vunpack.c.0.s8 %v2353
    %v2355 = vlaneseq
    %v2356 = vshrl.u32 %v2355, 7
    %v2357 = vsub.s32 %v2354, %v2356
    %v2358 = vrot.slane %v2349, %v2357
    %v2360 = vunpack.c.l.s4 1983009808
    %v2361 = vunpack.c.0.s8 %v2360
    %v2362 = vlaneseq
    %v2363 = vshrl.u32 %v2362, 7
    %v2364 = vsub.s32 %v2361, %v2363
    %v2365 = vrot.slane %v2351, %v2364
    %v2366 = vcombine.high %v2358, %v2358
    %v2367 = vcombine.high %v2365, %v2365
    %v2372 = vadd.f32 %v2338, %v2358
    %v2373 = vadd.f32 %v2339, %v2366
    %v2374 = vadd.f32 %v2340, %v2365
    %v2375 = vadd.f32 %v2341, %v2367
    %v2376 = vadd.f32 %v2342, %v2358
    %v2377 = vadd.f32 %v2343, %v2366
    %v2378 = vadd.f32 %v2344, %v2365
    %v2379 = vadd.f32 %v2345, %v2367
    %s2380 = scalar_lea.vmem [#allocation5], 192
    %v2381 = vld [vmem:[%s2380] sm:$0xff]
    %v2382 = vld [vmem:[%s2380 + $0x18] sm:$0xff]
    %v2383 = vld [vmem:[%s2380 + $0x30] sm:$0xff]
    %v2384 = vld [vmem:[%s2380 + $0x48] sm:$0xff]
    %v2385 = vld [vmem:[%s2380 + $0x8] sm:$0xff]
    %v2386 = vld [vmem:[%s2380 + $0x20] sm:$0xff]
    %v2387 = vld [vmem:[%s2380 + $0x38] sm:$0xff]
    %v2388 = vld [vmem:[%s2380 + $0x50] sm:$0xff]
    %v2389 = vld [vmem:[%s2380 + $0x68] sm:$0xff]
    %v2390 = vld [vmem:[%s2380 + $0x80] sm:$0xff]
    %v2391 = vld [vmem:[%s2380 + $0x98] sm:$0xff]
    %v2392 = vld [vmem:[%s2380 + $0xb0] sm:$0xff]
    %v2393 = vld [vmem:[%s2380 + $0x10] sm:$0xff]
    %v2394 = vld [vmem:[%s2380 + $0x28] sm:$0xff]
    %v2395 = vld [vmem:[%s2380 + $0x40] sm:$0xff]
    %v2396 = vld [vmem:[%s2380 + $0x58] sm:$0xff]
    %v2397 = vld [vmem:[%s2380 + $0x70] sm:$0xff]
    %v2398 = vld [vmem:[%s2380 + $0x88] sm:$0xff]
    %v2399 = vld [vmem:[%s2380 + $0xa0] sm:$0xff]
    %v2400 = vld [vmem:[%s2380 + $0xb8] sm:$0xff]
    %v2401 = vld [vmem:[%s2380 + $0x60] sm:$0xff]
    %v2402 = vlaneseq
    %v2403 = vshrl.u32 %v2402, 7
    %v2404 = vsub.s32 0, %v2403
    %v2405 = vrot.slane %v2401, %v2404
    %v2414 = vcombine.low %v2372, %v2373
    %v2415 = vcombine.low %v2374, %v2375
    %v2417 = vunpack.c.l.s4 1983009808
    %v2418 = vunpack.c.0.s8 %v2417
    %v2419 = vlaneseq
    %v2420 = vshrl.u32 %v2419, 7
    %v2421 = vsub.s32 %v2418, %v2420
    %v2422 = vrot.slane %v2414, %v2421
    %v2424 = vunpack.c.l.s4 1983009808
    %v2425 = vunpack.c.0.s8 %v2424
    %v2426 = vlaneseq
    %v2427 = vshrl.u32 %v2426, 7
    %v2428 = vsub.s32 %v2425, %v2427
    %v2429 = vrot.slane %v2415, %v2428
    %v2430 = vcombine.low %v2422, %v2429
    %v2431 = vcombine.low %v2376, %v2377
    %v2432 = vcombine.low %v2378, %v2379
    %v2434 = vunpack.c.l.s4 1983009808
    %v2435 = vunpack.c.0.s8 %v2434
    %v2436 = vlaneseq
    %v2437 = vshrl.u32 %v2436, 7
    %v2438 = vsub.s32 %v2435, %v2437
    %v2439 = vrot.slane %v2431, %v2438
    %v2441 = vunpack.c.l.s4 1983009808
    %v2442 = vunpack.c.0.s8 %v2441
    %v2443 = vlaneseq
    %v2444 = vshrl.u32 %v2443, 7
    %v2445 = vsub.s32 %v2442, %v2444
    %v2446 = vrot.slane %v2432, %v2445
    %v2447 = vcombine.low %v2439, %v2446
    %v2448 = vsel %vm160, %v2430, 0
    %v2450 = vsel %vm160, %v2447, 0
    %2452 = vmatprep.subr.mxu0 0.0
    %2453 = vmatpush1.msra.mxu0 %v2381
    %2454 = vmatprep.subr.mxu0 0.0
    %2455 = vmatpush1.msra.mxu0 %v2382
    %2456 = vmatprep.subr.mxu0 0.0
    %2457 = vmatpush1.msra.mxu0 %v2383
    %2458 = vmatprep.subr.mxu0 0.0
    %2459 = vmatpush1.msra.mxu0 %v2384
    %2460 = vmatprep.subr.mxu0 0.0
    %2461 = vmatpush1.msra.mxu0 0.0
    %2462 = vmatprep.subr.mxu0 0.0
    %2463 = vmatpush1.msra.mxu0 0.0
    %2464 = vmatprep.subr.mxu0 0.0
    %2465 = vmatpush1.msra.mxu0 0.0
    %2466 = vmatprep.subr.mxu0 0.0
    %2467 = vmatpush1.msra.mxu0 0.0
    %2468 = vmatprep.subr.mxu0 0.0
    %2469 = vmatpush1.msra.mxu0 0.0
    %2470 = vmatprep.subr.mxu0 0.0
    %2471 = vmatpush1.msra.mxu0 0.0
    %2472 = vmatprep.subr.mxu0 0.0
    %2473 = vmatpush1.msra.mxu0 0.0
    %2474 = vmatprep.subr.mxu0 0.0
    %2475 = vmatpush1.msra.mxu0 0.0
    %2476 = vmatprep.subr.mxu0 0.0
    %2477 = vmatpush1.msra.mxu0 0.0
    %2478 = vmatprep.subr.mxu0 0.0
    %2479 = vmatpush1.msra.mxu0 0.0
    %2480 = vmatprep.subr.mxu0 0.0
    %2481 = vmatpush1.msra.mxu0 0.0
    %2482 = vmatprep.subr.mxu0 0.0
    %2483 = vmatpush1.msra.mxu0 0.0
    %2484 = vmatprep.subr.mxu0 0.0
    %2485 = vmatpush1.msra.mxu0 0.0
    %2486 = vmatprep.subr.mxu0 0.0
    %2487 = vmatpush1.msra.mxu0 0.0
    %2488 = vmatprep.subr.mxu0 0.0
    %2489 = vmatpush1.msra.mxu0 0.0
    %2490 = vmatprep.subr.mxu0 0.0
    %2491 = vmatpush1.msra.mxu0 0.0
    %2492 = vmatprep.subr.mxu0 0.0
    %2493 = vmatpush1.msra.mxu0 0.0
    %2494 = vmatprep.subr.mxu0 0.0
    %2495 = vmatpush1.msra.mxu0 0.0
    %2496 = vmatprep.subr.mxu0 0.0
    %2497 = vmatpush1.msra.mxu0 0.0
    %2498 = vmatprep.subr.mxu0 0.0
    %2499 = vmatpush1.msra.mxu0 0.0
    %2500 = vmatprep.subr.mxu0 0.0
    %2501 = vmatpush1.msra.mxu0 0.0
    %2502 = vmatprep.subr.mxu0 0.0
    %2503 = vmatpush1.msra.mxu0 0.0
    %2504 = vmatprep.subr.mxu0 0.0
    %2505 = vmatpush1.msra.mxu0 0.0
    %2506 = vmatprep.subr.mxu0 0.0
    %2507 = vmatpush1.msra.mxu0 0.0
    %2508 = vmatprep.subr.mxu0 0.0
    %2509 = vmatpush1.msra.mxu0 0.0
    %2510 = vmatprep.subr.mxu0 0.0
    %2511 = vmatpush1.msra.mxu0 0.0
    %2512 = vmatprep.subr.mxu0 0.0
    %2513 = vmatpush1.msra.mxu0 0.0
    %2514 = vmatprep.subr.mxu0 0.0
    %2515 = vmatpush1.msra.mxu0 0.0
    %2516 = vmatprep.mubr.f32.mxu0 0.0
    %2517 = vmatmul.mubr.f32.gmra.mrb[0].mxu0 %v2448
    %v2518 = vpop.f32.mrb[0].mxu0
    %v2519 = vadd.f32 %v2405, %v2518
    %v2520 = vpop.f32.mrb[0].mxu0
    %2521 = vmatprep.mubr.f32.mxu0 0.0
    %2522 = vmatmul.mubr.f32.gmra.mrb[0].mxu0 %v2450
    %v2523 = vpop.f32.mrb[0].mxu0
    %v2524 = vadd.f32 %v2405, %v2523
    %v2525 = vpop.f32.mrb[0].mxu0
    %2526 = vdwg.mxu0
    %2529 = vrot.lane.b32.xlu0 %v2519, 96
    %v2530 = vpop.permute.xlu0 %2529
    %2531 = vrot.lane.b32.xlu0 %v2524, 96
    %v2532 = vpop.permute.xlu0 %2531
    %v2533 = vsel %vm246, %v2519, 0
    %v2535 = vsel %vm246, %v2524, 0
    %v2537 = vsel %vm246, %v2530, 0
    %v2539 = vsel %vm246, %v2532, 0
    %2541 = vmatprep.subr.mxu0 0.0
    %2542 = vmatpush1.xpose.msra.mxu0 %v2537
    %2543 = vmatprep.subr.mxu0 0.0
    %2544 = vmatpush1.xpose.msra.mxu0 %v2539
    %2545 = vmatprep.subr.mxu0 0.0
    %2546 = vmatpush1.xpose.msra.mxu0 0.0
    %2547 = vmatprep.subr.mxu0 0.0
    %2548 = vmatpush1.xpose.msra.mxu0 0.0
    %2549 = vmatprep.subr.mxu0 0.0
    %2550 = vmatpush1.xpose.msra.mxu0 0.0
    %2551 = vmatprep.subr.mxu0 0.0
    %2552 = vmatpush1.xpose.msra.mxu0 0.0
    %2553 = vmatprep.subr.mxu0 0.0
    %2554 = vmatpush1.xpose.msra.mxu0 0.0
    %2555 = vmatprep.subr.mxu0 0.0
    %2556 = vmatpush1.xpose.msra.mxu0 0.0
    %2557 = vmatprep.subr.mxu0 0.0
    %2558 = vmatpush1.xpose.msra.mxu0 0.0
    %2559 = vmatprep.subr.mxu0 0.0
    %2560 = vmatpush1.xpose.msra.mxu0 0.0
    %2561 = vmatprep.subr.mxu0 0.0
    %2562 = vmatpush1.xpose.msra.mxu0 0.0
    %2563 = vmatprep.subr.mxu0 0.0
    %2564 = vmatpush1.xpose.msra.mxu0 0.0
    %2565 = vmatprep.subr.mxu0 0.0
    %2566 = vmatpush1.xpose.msra.mxu0 0.0
    %2567 = vmatprep.subr.mxu0 0.0
    %2568 = vmatpush1.xpose.msra.mxu0 0.0
    %2569 = vmatprep.subr.mxu0 0.0
    %2570 = vmatpush1.xpose.msra.mxu0 0.0
    %2571 = vmatprep.subr.mxu0 0.0
    %2572 = vmatpush1.xpose.msra.mxu0 0.0
    %2573 = vmatprep.subr.mxu0 0.0
    %2574 = vmatpush1.xpose.msra.mxu0 0.0
    %2575 = vmatprep.subr.mxu0 0.0
    %2576 = vmatpush1.xpose.msra.mxu0 0.0
    %2577 = vmatprep.subr.mxu0 0.0
    %2578 = vmatpush1.xpose.msra.mxu0 0.0
    %2579 = vmatprep.subr.mxu0 0.0
    %2580 = vmatpush1.xpose.msra.mxu0 0.0
    %2581 = vmatprep.subr.mxu0 0.0
    %2582 = vmatpush1.xpose.msra.mxu0 0.0
    %2583 = vmatprep.subr.mxu0 0.0
    %2584 = vmatpush1.xpose.msra.mxu0 0.0
    %2585 = vmatprep.subr.mxu0 0.0
    %2586 = vmatpush1.xpose.msra.mxu0 0.0
    %2587 = vmatprep.subr.mxu0 0.0
    %2588 = vmatpush1.xpose.msra.mxu0 0.0
    %2589 = vmatprep.subr.mxu0 0.0
    %2590 = vmatpush1.xpose.msra.mxu0 0.0
    %2591 = vmatprep.subr.mxu0 0.0
    %2592 = vmatpush1.xpose.msra.mxu0 0.0
    %2593 = vmatprep.subr.mxu0 0.0
    %2594 = vmatpush1.xpose.msra.mxu0 0.0
    %2595 = vmatprep.subr.mxu0 0.0
    %2596 = vmatpush1.xpose.msra.mxu0 0.0
    %2597 = vmatprep.subr.mxu0 0.0
    %2598 = vmatpush1.xpose.msra.mxu0 0.0
    %2599 = vmatprep.subr.mxu0 0.0
    %2600 = vmatpush1.xpose.msra.mxu0 0.0
    %2601 = vmatprep.subr.mxu0 0.0
    %2602 = vmatpush1.xpose.msra.mxu0 0.0
    %2603 = vmatprep.subr.mxu0 0.0
    %2604 = vmatpush1.xpose.msra.mxu0 0.0
    %2605 = vmatprep.mubr.f32.mxu0 0.0
    %2606 = vmatmul.mubr.f32.gmra.mrb[0].mxu0 %v2533
    %v2607 = vpop.f32.mrb[0].mxu0
    %v2608 = vadd.f32 0.0, %v2607
    %v2609 = vpop.f32.mrb[0].mxu0
    %2610 = vmatprep.mubr.f32.mxu0 0.0
    %2611 = vmatmul.mubr.f32.gmra.mrb[0].mxu0 %v2535
    %v2612 = vpop.f32.mrb[0].mxu0
    %v2613 = vadd.f32 0.0, %v2612
    %v2614 = vpop.f32.mrb[0].mxu0
    %2615 = vdwg.mxu0
    %v2616 = vmul.f32 %v2608, 0.35355338
    %v2617 = vmul.f32 %v2613, 0.35355338
    %v2618 = vadd.f32 %v2616, %v91
    %v2619 = vadd.f32 %v2617, %v92
    %v2620 = vsel %vm334, %v2618, -inf
    %2621 = vmax.xlane.f32.xlu0 %v2620
    %v2622 = vpop.xlane.xlu0 %2621
    %v2623 = vsel %vm334, %v2619, -inf
    %2624 = vmax.xlane.f32.xlu0 %v2623
    %v2625 = vpop.xlane.xlu0 %2624
    %v2626 = vsub.f32 %v2618, %v2622
    %v2627 = vsub.f32 %v2619, %v2625
    %v2628 = vmul.f32 %v2626, 1.442695
    %v2629 = vpow.pop %v2628
    %v2630 = vmul.f32 %v2627, 1.442695
    %v2631 = vpow.pop %v2630
    %v2632 = vsel %vm334, %v2629, 0.0
    %2633 = vadd.xlane.f32.xlu0 %v2632
    %v2634 = vpop.xlane.xlu0 %2633
    %v2635 = vsel %vm334, %v2631, 0.0
    %2636 = vadd.xlane.f32.xlu0 %v2635
    %v2637 = vpop.xlane.xlu0 %2636
    %v2638 = vrcp.pop %v2634
    %v2639 = vmul.f32 %v2629, %v2638
    %v2640 = vrcp.pop %v2637
    %v2641 = vmul.f32 %v2631, %v2640
    %2642 = vrot.lane.b32.xlu0 %v2519, 64
    %v2643 = vpop.permute.xlu0 %2642
    %2644 = vrot.lane.b32.xlu0 %v2524, 64
    %v2645 = vpop.permute.xlu0 %2644
    %v2649 = vsel %vm334, %v2639, 0
    %v2652 = vsel %vm334, %v2641, 0
    %2654 = vmatprep.subr.mxu0 0.0
    %2655 = vmatpush1.msra.mxu0 %v2643
    %2656 = vmatprep.subr.mxu0 0.0
    %2657 = vmatpush1.msra.mxu0 %v2645
    %2658 = vmatprep.subr.mxu0 0.0
    %2659 = vmatpush1.msra.mxu0 0.0
    %2660 = vmatprep.subr.mxu0 0.0
    %2661 = vmatpush1.msra.mxu0 0.0
    %2662 = vmatprep.subr.mxu0 0.0
    %2663 = vmatpush1.msra.mxu0 0.0
    %2664 = vmatprep.subr.mxu0 0.0
    %2665 = vmatpush1.msra.mxu0 0.0
    %2666 = vmatprep.subr.mxu0 0.0
    %2667 = vmatpush1.msra.mxu0 0.0
    %2668 = vmatprep.subr.mxu0 0.0
    %2669 = vmatpush1.msra.mxu0 0.0
    %2670 = vmatprep.subr.mxu0 0.0
    %2671 = vmatpush1.msra.mxu0 0.0
    %2672 = vmatprep.subr.mxu0 0.0
    %2673 = vmatpush1.msra.mxu0 0.0
    %2674 = vmatprep.subr.mxu0 0.0
    %2675 = vmatpush1.msra.mxu0 0.0
    %2676 = vmatprep.subr.mxu0 0.0
    %2677 = vmatpush1.msra.mxu0 0.0
    %2678 = vmatprep.subr.mxu0 0.0
    %2679 = vmatpush1.msra.mxu0 0.0
    %2680 = vmatprep.subr.mxu0 0.0
    %2681 = vmatpush1.msra.mxu0 0.0
    %2682 = vmatprep.subr.mxu0 0.0
    %2683 = vmatpush1.msra.mxu0 0.0
    %2684 = vmatprep.subr.mxu0 0.0
    %2685 = vmatpush1.msra.mxu0 0.0
    %2686 = vmatprep.subr.mxu0 0.0
    %2687 = vmatpush1.msra.mxu0 0.0
    %2688 = vmatprep.subr.mxu0 0.0
    %2689 = vmatpush1.msra.mxu0 0.0
    %2690 = vmatprep.subr.mxu0 0.0
    %2691 = vmatpush1.msra.mxu0 0.0
    %2692 = vmatprep.subr.mxu0 0.0
    %2693 = vmatpush1.msra.mxu0 0.0
    %2694 = vmatprep.subr.mxu0 0.0
    %2695 = vmatpush1.msra.mxu0 0.0
    %2696 = vmatprep.subr.mxu0 0.0
    %2697 = vmatpush1.msra.mxu0 0.0
    %2698 = vmatprep.subr.mxu0 0.0
    %2699 = vmatpush1.msra.mxu0 0.0
    %2700 = vmatprep.subr.mxu0 0.0
    %2701 = vmatpush1.msra.mxu0 0.0
    %2702 = vmatprep.subr.mxu0 0.0
    %2703 = vmatpush1.msra.mxu0 0.0
    %2704 = vmatprep.subr.mxu0 0.0
    %2705 = vmatpush1.msra.mxu0 0.0
    %2706 = vmatprep.subr.mxu0 0.0
    %2707 = vmatpush1.msra.mxu0 0.0
    %2708 = vmatprep.subr.mxu0 0.0
    %2709 = vmatpush1.msra.mxu0 0.0
    %2710 = vmatprep.subr.mxu0 0.0
    %2711 = vmatpush1.msra.mxu0 0.0
    %2712 = vmatprep.subr.mxu0 0.0
    %2713 = vmatpush1.msra.mxu0 0.0
    %2714 = vmatprep.subr.mxu0 0.0
    %2715 = vmatpush1.msra.mxu0 0.0
    %2716 = vmatprep.subr.mxu0 0.0
    %2717 = vmatpush1.msra.mxu0 0.0
    %2718 = vmatprep.mubr.f32.mxu0 0.0
    %2719 = vmatmul.mubr.f32.gmra.mrb[0].mxu0 %v2649
    %v2720 = vpop.f32.mrb[0].mxu0
    %v2721 = vadd.f32 0.0, %v2720
    %v2722 = vpop.f32.mrb[0].mxu0
    %2723 = vmatprep.mubr.f32.mxu0 0.0
    %2724 = vmatmul.mubr.f32.gmra.mrb[0].mxu0 %v2652
    %v2725 = vpop.f32.mrb[0].mxu0
    %v2726 = vadd.f32 0.0, %v2725
    %v2727 = vpop.f32.mrb[0].mxu0
    %2728 = vdwg.mxu0
    %2729 = vrot.lane.b32.xlu0 %v2519, 120
    %v2730 = vpop.permute.xlu0 %2729
    %2731 = vrot.lane.b32.xlu0 %v2524, 120
    %v2732 = vpop.permute.xlu0 %2731
    %2733 = vrot.lane.b32.xlu0 %v2519, 88
    %v2734 = vpop.permute.xlu0 %2733
    %2735 = vrot.lane.b32.xlu0 %v2524, 88
    %v2736 = vpop.permute.xlu0 %2735
    %v2737 = vsel %vm246, %v2730, 0
    %v2739 = vsel %vm246, %v2732, 0
    %v2741 = vsel %vm246, %v2734, 0
    %v2743 = vsel %vm246, %v2736, 0
    %2745 = vmatprep.subr.mxu0 0.0
    %2746 = vmatpush1.xpose.msra.mxu0 %v2741
    %2747 = vmatprep.subr.mxu0 0.0
    %2748 = vmatpush1.xpose.msra.mxu0 %v2743
    %2749 = vmatprep.subr.mxu0 0.0
    %2750 = vmatpush1.xpose.msra.mxu0 0.0
    %2751 = vmatprep.subr.mxu0 0.0
    %2752 = vmatpush1.xpose.msra.mxu0 0.0
    %2753 = vmatprep.subr.mxu0 0.0
    %2754 = vmatpush1.xpose.msra.mxu0 0.0
    %2755 = vmatprep.subr.mxu0 0.0
    %2756 = vmatpush1.xpose.msra.mxu0 0.0
    %2757 = vmatprep.subr.mxu0 0.0
    %2758 = vmatpush1.xpose.msra.mxu0 0.0
    %2759 = vmatprep.subr.mxu0 0.0
    %2760 = vmatpush1.xpose.msra.mxu0 0.0
    %2761 = vmatprep.subr.mxu0 0.0
    %2762 = vmatpush1.xpose.msra.mxu0 0.0
    %2763 = vmatprep.subr.mxu0 0.0
    %2764 = vmatpush1.xpose.msra.mxu0 0.0
    %2765 = vmatprep.subr.mxu0 0.0
    %2766 = vmatpush1.xpose.msra.mxu0 0.0
    %2767 = vmatprep.subr.mxu0 0.0
    %2768 = vmatpush1.xpose.msra.mxu0 0.0
    %2769 = vmatprep.subr.mxu0 0.0
    %2770 = vmatpush1.xpose.msra.mxu0 0.0
    %2771 = vmatprep.subr.mxu0 0.0
    %2772 = vmatpush1.xpose.msra.mxu0 0.0
    %2773 = vmatprep.subr.mxu0 0.0
    %2774 = vmatpush1.xpose.msra.mxu0 0.0
    %2775 = vmatprep.subr.mxu0 0.0
    %2776 = vmatpush1.xpose.msra.mxu0 0.0
    %2777 = vmatprep.subr.mxu0 0.0
    %2778 = vmatpush1.xpose.msra.mxu0 0.0
    %2779 = vmatprep.subr.mxu0 0.0
    %2780 = vmatpush1.xpose.msra.mxu0 0.0
    %2781 = vmatprep.subr.mxu0 0.0
    %2782 = vmatpush1.xpose.msra.mxu0 0.0
    %2783 = vmatprep.subr.mxu0 0.0
    %2784 = vmatpush1.xpose.msra.mxu0 0.0
    %2785 = vmatprep.subr.mxu0 0.0
    %2786 = vmatpush1.xpose.msra.mxu0 0.0
    %2787 = vmatprep.subr.mxu0 0.0
    %2788 = vmatpush1.xpose.msra.mxu0 0.0
    %2789 = vmatprep.subr.mxu0 0.0
    %2790 = vmatpush1.xpose.msra.mxu0 0.0
    %2791 = vmatprep.subr.mxu0 0.0
    %2792 = vmatpush1.xpose.msra.mxu0 0.0
    %2793 = vmatprep.subr.mxu0 0.0
    %2794 = vmatpush1.xpose.msra.mxu0 0.0
    %2795 = vmatprep.subr.mxu0 0.0
    %2796 = vmatpush1.xpose.msra.mxu0 0.0
    %2797 = vmatprep.subr.mxu0 0.0
    %2798 = vmatpush1.xpose.msra.mxu0 0.0
    %2799 = vmatprep.subr.mxu0 0.0
    %2800 = vmatpush1.xpose.msra.mxu0 0.0
    %2801 = vmatprep.subr.mxu0 0.0
    %2802 = vmatpush1.xpose.msra.mxu0 0.0
    %2803 = vmatprep.subr.mxu0 0.0
    %2804 = vmatpush1.xpose.msra.mxu0 0.0
    %2805 = vmatprep.subr.mxu0 0.0
    %2806 = vmatpush1.xpose.msra.mxu0 0.0
    %2807 = vmatprep.subr.mxu0 0.0
    %2808 = vmatpush1.xpose.msra.mxu0 0.0
    %2809 = vmatprep.mubr.f32.mxu0 0.0
    %2810 = vmatmul.mubr.f32.gmra.mrb[0].mxu0 %v2737
    %v2811 = vpop.f32.mrb[0].mxu0
    %v2812 = vadd.f32 0.0, %v2811
    %v2813 = vpop.f32.mrb[0].mxu0
    %2814 = vmatprep.mubr.f32.mxu0 0.0
    %2815 = vmatmul.mubr.f32.gmra.mrb[0].mxu0 %v2739
    %v2816 = vpop.f32.mrb[0].mxu0
    %v2817 = vadd.f32 0.0, %v2816
    %v2818 = vpop.f32.mrb[0].mxu0
    %2819 = vdwg.mxu0
    %v2820 = vmul.f32 %v2812, 0.35355338
    %v2821 = vmul.f32 %v2817, 0.35355338
    %v2822 = vadd.f32 %v2820, %v91
    %v2823 = vadd.f32 %v2821, %v92
    %v2824 = vsel %vm334, %v2822, -inf
    %2825 = vmax.xlane.f32.xlu0 %v2824
    %v2826 = vpop.xlane.xlu0 %2825
    %v2827 = vsel %vm334, %v2823, -inf
    %2828 = vmax.xlane.f32.xlu0 %v2827
    %v2829 = vpop.xlane.xlu0 %2828
    %v2830 = vsub.f32 %v2822, %v2826
    %v2831 = vsub.f32 %v2823, %v2829
    %v2832 = vmul.f32 %v2830, 1.442695
    %v2833 = vpow.pop %v2832
    %v2834 = vmul.f32 %v2831, 1.442695
    %v2835 = vpow.pop %v2834
    %v2836 = vsel %vm334, %v2833, 0.0
    %2837 = vadd.xlane.f32.xlu0 %v2836
    %v2838 = vpop.xlane.xlu0 %2837
    %v2839 = vsel %vm334, %v2835, 0.0
    %2840 = vadd.xlane.f32.xlu0 %v2839
    %v2841 = vpop.xlane.xlu0 %2840
    %v2842 = vrcp.pop %v2838
    %v2843 = vmul.f32 %v2833, %v2842
    %v2844 = vrcp.pop %v2841
    %v2845 = vmul.f32 %v2835, %v2844
    %2846 = vrot.lane.b32.xlu0 %v2519, 56
    %v2847 = vpop.permute.xlu0 %2846
    %2848 = vrot.lane.b32.xlu0 %v2524, 56
    %v2849 = vpop.permute.xlu0 %2848
    %v2853 = vsel %vm334, %v2843, 0
    %v2856 = vsel %vm334, %v2845, 0
    %2858 = vmatprep.subr.mxu0 0.0
    %2859 = vmatpush1.msra.mxu0 %v2847
    %2860 = vmatprep.subr.mxu0 0.0
    %2861 = vmatpush1.msra.mxu0 %v2849
    %2862 = vmatprep.subr.mxu0 0.0
    %2863 = vmatpush1.msra.mxu0 0.0
    %2864 = vmatprep.subr.mxu0 0.0
    %2865 = vmatpush1.msra.mxu0 0.0
    %2866 = vmatprep.subr.mxu0 0.0
    %2867 = vmatpush1.msra.mxu0 0.0
    %2868 = vmatprep.subr.mxu0 0.0
    %2869 = vmatpush1.msra.mxu0 0.0
    %2870 = vmatprep.subr.mxu0 0.0
    %2871 = vmatpush1.msra.mxu0 0.0
    %2872 = vmatprep.subr.mxu0 0.0
    %2873 = vmatpush1.msra.mxu0 0.0
    %2874 = vmatprep.subr.mxu0 0.0
    %2875 = vmatpush1.msra.mxu0 0.0
    %2876 = vmatprep.subr.mxu0 0.0
    %2877 = vmatpush1.msra.mxu0 0.0
    %2878 = vmatprep.subr.mxu0 0.0
    %2879 = vmatpush1.msra.mxu0 0.0
    %2880 = vmatprep.subr.mxu0 0.0
    %2881 = vmatpush1.msra.mxu0 0.0
    %2882 = vmatprep.subr.mxu0 0.0
    %2883 = vmatpush1.msra.mxu0 0.0
    %2884 = vmatprep.subr.mxu0 0.0
    %2885 = vmatpush1.msra.mxu0 0.0
    %2886 = vmatprep.subr.mxu0 0.0
    %2887 = vmatpush1.msra.mxu0 0.0
    %2888 = vmatprep.subr.mxu0 0.0
    %2889 = vmatpush1.msra.mxu0 0.0
    %2890 = vmatprep.subr.mxu0 0.0
    %2891 = vmatpush1.msra.mxu0 0.0
    %2892 = vmatprep.subr.mxu0 0.0
    %2893 = vmatpush1.msra.mxu0 0.0
    %2894 = vmatprep.subr.mxu0 0.0
    %2895 = vmatpush1.msra.mxu0 0.0
    %2896 = vmatprep.subr.mxu0 0.0
    %2897 = vmatpush1.msra.mxu0 0.0
    %2898 = vmatprep.subr.mxu0 0.0
    %2899 = vmatpush1.msra.mxu0 0.0
    %2900 = vmatprep.subr.mxu0 0.0
    %2901 = vmatpush1.msra.mxu0 0.0
    %2902 = vmatprep.subr.mxu0 0.0
    %2903 = vmatpush1.msra.mxu0 0.0
    %2904 = vmatprep.subr.mxu0 0.0
    %2905 = vmatpush1.msra.mxu0 0.0
    %2906 = vmatprep.subr.mxu0 0.0
    %2907 = vmatpush1.msra.mxu0 0.0
    %2908 = vmatprep.subr.mxu0 0.0
    %2909 = vmatpush1.msra.mxu0 0.0
    %2910 = vmatprep.subr.mxu0 0.0
    %2911 = vmatpush1.msra.mxu0 0.0
    %2912 = vmatprep.subr.mxu0 0.0
    %2913 = vmatpush1.msra.mxu0 0.0
    %2914 = vmatprep.subr.mxu0 0.0
    %2915 = vmatpush1.msra.mxu0 0.0
    %2916 = vmatprep.subr.mxu0 0.0
    %2917 = vmatpush1.msra.mxu0 0.0
    %2918 = vmatprep.subr.mxu0 0.0
    %2919 = vmatpush1.msra.mxu0 0.0
    %2920 = vmatprep.subr.mxu0 0.0
    %2921 = vmatpush1.msra.mxu0 0.0
    %2922 = vmatprep.mubr.f32.mxu0 0.0
    %2923 = vmatmul.mubr.f32.gmra.mrb[0].mxu0 %v2853
    %v2924 = vpop.f32.mrb[0].mxu0
    %v2925 = vadd.f32 0.0, %v2924
    %v2926 = vpop.f32.mrb[0].mxu0
    %2927 = vmatprep.mubr.f32.mxu0 0.0
    %2928 = vmatmul.mubr.f32.gmra.mrb[0].mxu0 %v2856
    %v2929 = vpop.f32.mrb[0].mxu0
    %v2930 = vadd.f32 0.0, %v2929
    %v2931 = vpop.f32.mrb[0].mxu0
    %2932 = vdwg.mxu0
    %v2934 = vsel %vm246, %v2925, 0
    %v2937 = vsel %vm246, %v2930, 0
    %2939 = vmatprep.subr.mxu0 0.0
    %2940 = vmatpush1.msra.mxu0 %v2390
    %2941 = vmatprep.subr.mxu0 0.0
    %2942 = vmatpush1.msra.mxu0 0.0
    %2943 = vmatprep.subr.mxu0 0.0
    %2944 = vmatpush1.msra.mxu0 0.0
    %2945 = vmatprep.subr.mxu0 0.0
    %2946 = vmatpush1.msra.mxu0 0.0
    %2947 = vmatprep.subr.mxu0 0.0
    %2948 = vmatpush1.msra.mxu0 0.0
    %2949 = vmatprep.subr.mxu0 0.0
    %2950 = vmatpush1.msra.mxu0 0.0
    %2951 = vmatprep.subr.mxu0 0.0
    %2952 = vmatpush1.msra.mxu0 0.0
    %2953 = vmatprep.subr.mxu0 0.0
    %2954 = vmatpush1.msra.mxu0 0.0
    %2955 = vmatprep.subr.mxu0 0.0
    %2956 = vmatpush1.msra.mxu0 0.0
    %2957 = vmatprep.subr.mxu0 0.0
    %2958 = vmatpush1.msra.mxu0 0.0
    %2959 = vmatprep.subr.mxu0 0.0
    %2960 = vmatpush1.msra.mxu0 0.0
    %2961 = vmatprep.subr.mxu0 0.0
    %2962 = vmatpush1.msra.mxu0 0.0
    %2963 = vmatprep.subr.mxu0 0.0
    %2964 = vmatpush1.msra.mxu0 0.0
    %2965 = vmatprep.subr.mxu0 0.0
    %2966 = vmatpush1.msra.mxu0 0.0
    %2967 = vmatprep.subr.mxu0 0.0
    %2968 = vmatpush1.msra.mxu0 0.0
    %2969 = vmatprep.subr.mxu0 0.0
    %2970 = vmatpush1.msra.mxu0 0.0
    %2971 = vmatprep.subr.mxu0 0.0
    %2972 = vmatpush1.msra.mxu0 0.0
    %2973 = vmatprep.subr.mxu0 0.0
    %2974 = vmatpush1.msra.mxu0 0.0
    %2975 = vmatprep.subr.mxu0 0.0
    %2976 = vmatpush1.msra.mxu0 0.0
    %2977 = vmatprep.subr.mxu0 0.0
    %2978 = vmatpush1.msra.mxu0 0.0
    %2979 = vmatprep.subr.mxu0 0.0
    %2980 = vmatpush1.msra.mxu0 0.0
    %2981 = vmatprep.subr.mxu0 0.0
    %2982 = vmatpush1.msra.mxu0 0.0
    %2983 = vmatprep.subr.mxu0 0.0
    %2984 = vmatpush1.msra.mxu0 0.0
    %2985 = vmatprep.subr.mxu0 0.0
    %2986 = vmatpush1.msra.mxu0 0.0
    %2987 = vmatprep.subr.mxu0 0.0
    %2988 = vmatpush1.msra.mxu0 0.0
    %2989 = vmatprep.subr.mxu0 0.0
    %2990 = vmatpush1.msra.mxu0 0.0
    %2991 = vmatprep.subr.mxu0 0.0
    %2992 = vmatpush1.msra.mxu0 0.0
    %2993 = vmatprep.subr.mxu0 0.0
    %2994 = vmatpush1.msra.mxu0 0.0
    %2995 = vmatprep.subr.mxu0 0.0
    %2996 = vmatpush1.msra.mxu0 0.0
    %2997 = vmatprep.subr.mxu0 0.0
    %2998 = vmatpush1.msra.mxu0 0.0
    %2999 = vmatprep.subr.mxu0 0.0
    %3000 = vmatpush1.msra.mxu0 0.0
    %3001 = vmatprep.subr.mxu0 0.0
    %3002 = vmatpush1.msra.mxu0 0.0
    %3003 = vmatprep.mubr.f32.mxu0 0.0
    %3004 = vmatmul.mubr.f32.gmra.mrb[0].mxu0 %v2934
    %v3005 = vpop.f32.mrb[0].mxu0
    %v3006 = vadd.f32 0.0, %v3005
    %v3007 = vpop.f32.mrb[0].mxu0
    %3008 = vmatprep.mubr.f32.mxu0 0.0
    %3009 = vmatmul.mubr.f32.gmra.mrb[0].mxu0 %v2937
    %v3010 = vpop.f32.mrb[0].mxu0
    %v3011 = vadd.f32 0.0, %v3010
    %v3012 = vpop.f32.mrb[0].mxu0
    %3013 = vdwg.mxu0
    %v3015 = vsel %vm246, %v2721, 0
    %v3018 = vsel %vm246, %v2726, 0
    %3020 = vmatprep.subr.mxu0 0.0
    %3021 = vmatpush1.msra.mxu0 %v2389
    %3022 = vmatprep.subr.mxu0 0.0
    %3023 = vmatpush1.msra.mxu0 0.0
    %3024 = vmatprep.subr.mxu0 0.0
    %3025 = vmatpush1.msra.mxu0 0.0
    %3026 = vmatprep.subr.mxu0 0.0
    %3027 = vmatpush1.msra.mxu0 0.0
    %3028 = vmatprep.subr.mxu0 0.0
    %3029 = vmatpush1.msra.mxu0 0.0
    %3030 = vmatprep.subr.mxu0 0.0
    %3031 = vmatpush1.msra.mxu0 0.0
    %3032 = vmatprep.subr.mxu0 0.0
    %3033 = vmatpush1.msra.mxu0 0.0
    %3034 = vmatprep.subr.mxu0 0.0
    %3035 = vmatpush1.msra.mxu0 0.0
    %3036 = vmatprep.subr.mxu0 0.0
    %3037 = vmatpush1.msra.mxu0 0.0
    %3038 = vmatprep.subr.mxu0 0.0
    %3039 = vmatpush1.msra.mxu0 0.0
    %3040 = vmatprep.subr.mxu0 0.0
    %3041 = vmatpush1.msra.mxu0 0.0
    %3042 = vmatprep.subr.mxu0 0.0
    %3043 = vmatpush1.msra.mxu0 0.0
    %3044 = vmatprep.subr.mxu0 0.0
    %3045 = vmatpush1.msra.mxu0 0.0
    %3046 = vmatprep.subr.mxu0 0.0
    %3047 = vmatpush1.msra.mxu0 0.0
    %3048 = vmatprep.subr.mxu0 0.0
    %3049 = vmatpush1.msra.mxu0 0.0
    %3050 = vmatprep.subr.mxu0 0.0
    %3051 = vmatpush1.msra.mxu0 0.0
    %3052 = vmatprep.subr.mxu0 0.0
    %3053 = vmatpush1.msra.mxu0 0.0
    %3054 = vmatprep.subr.mxu0 0.0
    %3055 = vmatpush1.msra.mxu0 0.0
    %3056 = vmatprep.subr.mxu0 0.0
    %3057 = vmatpush1.msra.mxu0 0.0
    %3058 = vmatprep.subr.mxu0 0.0
    %3059 = vmatpush1.msra.mxu0 0.0
    %3060 = vmatprep.subr.mxu0 0.0
    %3061 = vmatpush1.msra.mxu0 0.0
    %3062 = vmatprep.subr.mxu0 0.0
    %3063 = vmatpush1.msra.mxu0 0.0
    %3064 = vmatprep.subr.mxu0 0.0
    %3065 = vmatpush1.msra.mxu0 0.0
    %3066 = vmatprep.subr.mxu0 0.0
    %3067 = vmatpush1.msra.mxu0 0.0
    %3068 = vmatprep.subr.mxu0 0.0
    %3069 = vmatpush1.msra.mxu0 0.0
    %3070 = vmatprep.subr.mxu0 0.0
    %3071 = vmatpush1.msra.mxu0 0.0
    %3072 = vmatprep.subr.mxu0 0.0
    %3073 = vmatpush1.msra.mxu0 0.0
    %3074 = vmatprep.subr.mxu0 0.0
    %3075 = vmatpush1.msra.mxu0 0.0
    %3076 = vmatprep.subr.mxu0 0.0
    %3077 = vmatpush1.msra.mxu0 0.0
    %3078 = vmatprep.subr.mxu0 0.0
    %3079 = vmatpush1.msra.mxu0 0.0
    %3080 = vmatprep.subr.mxu0 0.0
    %3081 = vmatpush1.msra.mxu0 0.0
    %3082 = vmatprep.subr.mxu0 0.0
    %3083 = vmatpush1.msra.mxu0 0.0
    %3084 = vmatprep.mubr.f32.mxu0 0.0
    %3085 = vmatmul.mubr.f32.gmra.mrb[0].mxu0 %v3015
    %v3086 = vpop.f32.mrb[0].mxu0
    %v3087 = vadd.f32 %v3006, %v3086
    %v3088 = vpop.f32.mrb[0].mxu0
    %3089 = vmatprep.mubr.f32.mxu0 0.0
    %3090 = vmatmul.mubr.f32.gmra.mrb[0].mxu0 %v3018
    %v3091 = vpop.f32.mrb[0].mxu0
    %v3092 = vadd.f32 %v3011, %v3091
    %v3093 = vpop.f32.mrb[0].mxu0
    %3094 = vdwg.mxu0
    %3095 = vrot.lane.b32.xlu0 %v2519, 112
    %v3096 = vpop.permute.xlu0 %3095
    %3097 = vrot.lane.b32.xlu0 %v2524, 112
    %v3098 = vpop.permute.xlu0 %3097
    %3099 = vrot.lane.b32.xlu0 %v2519, 80
    %v3100 = vpop.permute.xlu0 %3099
    %3101 = vrot.lane.b32.xlu0 %v2524, 80
    %v3102 = vpop.permute.xlu0 %3101
    %v3103 = vsel %vm246, %v3096, 0
    %v3105 = vsel %vm246, %v3098, 0
    %v3107 = vsel %vm246, %v3100, 0
    %v3109 = vsel %vm246, %v3102, 0
    %3111 = vmatprep.subr.mxu0 0.0
    %3112 = vmatpush1.xpose.msra.mxu0 %v3107
    %3113 = vmatprep.subr.mxu0 0.0
    %3114 = vmatpush1.xpose.msra.mxu0 %v3109
    %3115 = vmatprep.subr.mxu0 0.0
    %3116 = vmatpush1.xpose.msra.mxu0 0.0
    %3117 = vmatprep.subr.mxu0 0.0
    %3118 = vmatpush1.xpose.msra.mxu0 0.0
    %3119 = vmatprep.subr.mxu0 0.0
    %3120 = vmatpush1.xpose.msra.mxu0 0.0
    %3121 = vmatprep.subr.mxu0 0.0
    %3122 = vmatpush1.xpose.msra.mxu0 0.0
    %3123 = vmatprep.subr.mxu0 0.0
    %3124 = vmatpush1.xpose.msra.mxu0 0.0
    %3125 = vmatprep.subr.mxu0 0.0
    %3126 = vmatpush1.xpose.msra.mxu0 0.0
    %3127 = vmatprep.subr.mxu0 0.0
    %3128 = vmatpush1.xpose.msra.mxu0 0.0
    %3129 = vmatprep.subr.mxu0 0.0
    %3130 = vmatpush1.xpose.msra.mxu0 0.0
    %3131 = vmatprep.subr.mxu0 0.0
    %3132 = vmatpush1.xpose.msra.mxu0 0.0
    %3133 = vmatprep.subr.mxu0 0.0
    %3134 = vmatpush1.xpose.msra.mxu0 0.0
    %3135 = vmatprep.subr.mxu0 0.0
    %3136 = vmatpush1.xpose.msra.mxu0 0.0
    %3137 = vmatprep.subr.mxu0 0.0
    %3138 = vmatpush1.xpose.msra.mxu0 0.0
    %3139 = vmatprep.subr.mxu0 0.0
    %3140 = vmatpush1.xpose.msra.mxu0 0.0
    %3141 = vmatprep.subr.mxu0 0.0
    %3142 = vmatpush1.xpose.msra.mxu0 0.0
    %3143 = vmatprep.subr.mxu0 0.0
    %3144 = vmatpush1.xpose.msra.mxu0 0.0
    %3145 = vmatprep.subr.mxu0 0.0
    %3146 = vmatpush1.xpose.msra.mxu0 0.0
    %3147 = vmatprep.subr.mxu0 0.0
    %3148 = vmatpush1.xpose.msra.mxu0 0.0
    %3149 = vmatprep.subr.mxu0 0.0
    %3150 = vmatpush1.xpose.msra.mxu0 0.0
    %3151 = vmatprep.subr.mxu0 0.0
    %3152 = vmatpush1.xpose.msra.mxu0 0.0
    %3153 = vmatprep.subr.mxu0 0.0
    %3154 = vmatpush1.xpose.msra.mxu0 0.0
    %3155 = vmatprep.subr.mxu0 0.0
    %3156 = vmatpush1.xpose.msra.mxu0 0.0
    %3157 = vmatprep.subr.mxu0 0.0
    %3158 = vmatpush1.xpose.msra.mxu0 0.0
    %3159 = vmatprep.subr.mxu0 0.0
    %3160 = vmatpush1.xpose.msra.mxu0 0.0
    %3161 = vmatprep.subr.mxu0 0.0
    %3162 = vmatpush1.xpose.msra.mxu0 0.0
    %3163 = vmatprep.subr.mxu0 0.0
    %3164 = vmatpush1.xpose.msra.mxu0 0.0
    %3165 = vmatprep.subr.mxu0 0.0
    %3166 = vmatpush1.xpose.msra.mxu0 0.0
    %3167 = vmatprep.subr.mxu0 0.0
    %3168 = vmatpush1.xpose.msra.mxu0 0.0
    %3169 = vmatprep.subr.mxu0 0.0
    %3170 = vmatpush1.xpose.msra.mxu0 0.0
    %3171 = vmatprep.subr.mxu0 0.0
    %3172 = vmatpush1.xpose.msra.mxu0 0.0
    %3173 = vmatprep.subr.mxu0 0.0
    %3174 = vmatpush1.xpose.msra.mxu0 0.0
    %3175 = vmatprep.mubr.f32.mxu0 0.0
    %3176 = vmatmul.mubr.f32.gmra.mrb[0].mxu0 %v3103
    %v3177 = vpop.f32.mrb[0].mxu0
    %v3178 = vadd.f32 0.0, %v3177
    %v3179 = vpop.f32.mrb[0].mxu0
    %3180 = vmatprep.mubr.f32.mxu0 0.0
    %3181 = vmatmul.mubr.f32.gmra.mrb[0].mxu0 %v3105
    %v3182 = vpop.f32.mrb[0].mxu0
    %v3183 = vadd.f32 0.0, %v3182
    %v3184 = vpop.f32.mrb[0].mxu0
    %3185 = vdwg.mxu0
    %v3186 = vmul.f32 %v3178, 0.35355338
    %v3187 = vmul.f32 %v3183, 0.35355338
    %v3188 = vadd.f32 %v3186, %v91
    %v3189 = vadd.f32 %v3187, %v92
    %v3190 = vsel %vm334, %v3188, -inf
    %3191 = vmax.xlane.f32.xlu0 %v3190
    %v3192 = vpop.xlane.xlu0 %3191
    %v3193 = vsel %vm334, %v3189, -inf
    %3194 = vmax.xlane.f32.xlu0 %v3193
    %v3195 = vpop.xlane.xlu0 %3194
    %v3196 = vsub.f32 %v3188, %v3192
    %v3197 = vsub.f32 %v3189, %v3195
    %v3198 = vmul.f32 %v3196, 1.442695
    %v3199 = vpow.pop %v3198
    %v3200 = vmul.f32 %v3197, 1.442695
    %v3201 = vpow.pop %v3200
    %v3202 = vsel %vm334, %v3199, 0.0
    %3203 = vadd.xlane.f32.xlu0 %v3202
    %v3204 = vpop.xlane.xlu0 %3203
    %v3205 = vsel %vm334, %v3201, 0.0
    %3206 = vadd.xlane.f32.xlu0 %v3205
    %v3207 = vpop.xlane.xlu0 %3206
    %v3208 = vrcp.pop %v3204
    %v3209 = vmul.f32 %v3199, %v3208
    %v3210 = vrcp.pop %v3207
    %v3211 = vmul.f32 %v3201, %v3210
    %3212 = vrot.lane.b32.xlu0 %v2519, 48
    %v3213 = vpop.permute.xlu0 %3212
    %3214 = vrot.lane.b32.xlu0 %v2524, 48
    %v3215 = vpop.permute.xlu0 %3214
    %v3219 = vsel %vm334, %v3209, 0
    %v3222 = vsel %vm334, %v3211, 0
    %3224 = vmatprep.subr.mxu0 0.0
    %3225 = vmatpush1.msra.mxu0 %v3213
    %3226 = vmatprep.subr.mxu0 0.0
    %3227 = vmatpush1.msra.mxu0 %v3215
    %3228 = vmatprep.subr.mxu0 0.0
    %3229 = vmatpush1.msra.mxu0 0.0
    %3230 = vmatprep.subr.mxu0 0.0
    %3231 = vmatpush1.msra.mxu0 0.0
    %3232 = vmatprep.subr.mxu0 0.0
    %3233 = vmatpush1.msra.mxu0 0.0
    %3234 = vmatprep.subr.mxu0 0.0
    %3235 = vmatpush1.msra.mxu0 0.0
    %3236 = vmatprep.subr.mxu0 0.0
    %3237 = vmatpush1.msra.mxu0 0.0
    %3238 = vmatprep.subr.mxu0 0.0
    %3239 = vmatpush1.msra.mxu0 0.0
    %3240 = vmatprep.subr.mxu0 0.0
    %3241 = vmatpush1.msra.mxu0 0.0
    %3242 = vmatprep.subr.mxu0 0.0
    %3243 = vmatpush1.msra.mxu0 0.0
    %3244 = vmatprep.subr.mxu0 0.0
    %3245 = vmatpush1.msra.mxu0 0.0
    %3246 = vmatprep.subr.mxu0 0.0
    %3247 = vmatpush1.msra.mxu0 0.0
    %3248 = vmatprep.subr.mxu0 0.0
    %3249 = vmatpush1.msra.mxu0 0.0
    %3250 = vmatprep.subr.mxu0 0.0
    %3251 = vmatpush1.msra.mxu0 0.0
    %3252 = vmatprep.subr.mxu0 0.0
    %3253 = vmatpush1.msra.mxu0 0.0
    %3254 = vmatprep.subr.mxu0 0.0
    %3255 = vmatpush1.msra.mxu0 0.0
    %3256 = vmatprep.subr.mxu0 0.0
    %3257 = vmatpush1.msra.mxu0 0.0
    %3258 = vmatprep.subr.mxu0 0.0
    %3259 = vmatpush1.msra.mxu0 0.0
    %3260 = vmatprep.subr.mxu0 0.0
    %3261 = vmatpush1.msra.mxu0 0.0
    %3262 = vmatprep.subr.mxu0 0.0
    %3263 = vmatpush1.msra.mxu0 0.0
    %3264 = vmatprep.subr.mxu0 0.0
    %3265 = vmatpush1.msra.mxu0 0.0
    %3266 = vmatprep.subr.mxu0 0.0
    %3267 = vmatpush1.msra.mxu0 0.0
    %3268 = vmatprep.subr.mxu0 0.0
    %3269 = vmatpush1.msra.mxu0 0.0
    %3270 = vmatprep.subr.mxu0 0.0
    %3271 = vmatpush1.msra.mxu0 0.0
    %3272 = vmatprep.subr.mxu0 0.0
    %3273 = vmatpush1.msra.mxu0 0.0
    %3274 = vmatprep.subr.mxu0 0.0
    %3275 = vmatpush1.msra.mxu0 0.0
    %3276 = vmatprep.subr.mxu0 0.0
    %3277 = vmatpush1.msra.mxu0 0.0
    %3278 = vmatprep.subr.mxu0 0.0
    %3279 = vmatpush1.msra.mxu0 0.0
    %3280 = vmatprep.subr.mxu0 0.0
    %3281 = vmatpush1.msra.mxu0 0.0
    %3282 = vmatprep.subr.mxu0 0.0
    %3283 = vmatpush1.msra.mxu0 0.0
    %3284 = vmatprep.subr.mxu0 0.0
    %3285 = vmatpush1.msra.mxu0 0.0
    %3286 = vmatprep.subr.mxu0 0.0
    %3287 = vmatpush1.msra.mxu0 0.0
    %3288 = vmatprep.mubr.f32.mxu0 0.0
    %3289 = vmatmul.mubr.f32.gmra.mrb[0].mxu0 %v3219
    %v3290 = vpop.f32.mrb[0].mxu0
    %v3291 = vadd.f32 0.0, %v3290
    %v3292 = vpop.f32.mrb[0].mxu0
    %3293 = vmatprep.mubr.f32.mxu0 0.0
    %3294 = vmatmul.mubr.f32.gmra.mrb[0].mxu0 %v3222
    %v3295 = vpop.f32.mrb[0].mxu0
    %v3296 = vadd.f32 0.0, %v3295
    %v3297 = vpop.f32.mrb[0].mxu0
    %3298 = vdwg.mxu0
    %v3300 = vsel %vm246, %v3291, 0
    %v3303 = vsel %vm246, %v3296, 0
    %3305 = vmatprep.subr.mxu0 0.0
    %3306 = vmatpush1.msra.mxu0 %v2391
    %3307 = vmatprep.subr.mxu0 0.0
    %3308 = vmatpush1.msra.mxu0 0.0
    %3309 = vmatprep.subr.mxu0 0.0
    %3310 = vmatpush1.msra.mxu0 0.0
    %3311 = vmatprep.subr.mxu0 0.0
    %3312 = vmatpush1.msra.mxu0 0.0
    %3313 = vmatprep.subr.mxu0 0.0
    %3314 = vmatpush1.msra.mxu0 0.0
    %3315 = vmatprep.subr.mxu0 0.0
    %3316 = vmatpush1.msra.mxu0 0.0
    %3317 = vmatprep.subr.mxu0 0.0
    %3318 = vmatpush1.msra.mxu0 0.0
    %3319 = vmatprep.subr.mxu0 0.0
    %3320 = vmatpush1.msra.mxu0 0.0
    %3321 = vmatprep.subr.mxu0 0.0
    %3322 = vmatpush1.msra.mxu0 0.0
    %3323 = vmatprep.subr.mxu0 0.0
    %3324 = vmatpush1.msra.mxu0 0.0
    %3325 = vmatprep.subr.mxu0 0.0
    %3326 = vmatpush1.msra.mxu0 0.0
    %3327 = vmatprep.subr.mxu0 0.0
    %3328 = vmatpush1.msra.mxu0 0.0
    %3329 = vmatprep.subr.mxu0 0.0
    %3330 = vmatpush1.msra.mxu0 0.0
    %3331 = vmatprep.subr.mxu0 0.0
    %3332 = vmatpush1.msra.mxu0 0.0
    %3333 = vmatprep.subr.mxu0 0.0
    %3334 = vmatpush1.msra.mxu0 0.0
    %3335 = vmatprep.subr.mxu0 0.0
    %3336 = vmatpush1.msra.mxu0 0.0
    %3337 = vmatprep.subr.mxu0 0.0
    %3338 = vmatpush1.msra.mxu0 0.0
    %3339 = vmatprep.subr.mxu0 0.0
    %3340 = vmatpush1.msra.mxu0 0.0
    %3341 = vmatprep.subr.mxu0 0.0
    %3342 = vmatpush1.msra.mxu0 0.0
    %3343 = vmatprep.subr.mxu0 0.0
    %3344 = vmatpush1.msra.mxu0 0.0
    %3345 = vmatprep.subr.mxu0 0.0
    %3346 = vmatpush1.msra.mxu0 0.0
    %3347 = vmatprep.subr.mxu0 0.0
    %3348 = vmatpush1.msra.mxu0 0.0
    %3349 = vmatprep.subr.mxu0 0.0
    %3350 = vmatpush1.msra.mxu0 0.0
    %3351 = vmatprep.subr.mxu0 0.0
    %3352 = vmatpush1.msra.mxu0 0.0
    %3353 = vmatprep.subr.mxu0 0.0
    %3354 = vmatpush1.msra.mxu0 0.0
    %3355 = vmatprep.subr.mxu0 0.0
    %3356 = vmatpush1.msra.mxu0 0.0
    %3357 = vmatprep.subr.mxu0 0.0
    %3358 = vmatpush1.msra.mxu0 0.0
    %3359 = vmatprep.subr.mxu0 0.0
    %3360 = vmatpush1.msra.mxu0 0.0
    %3361 = vmatprep.subr.mxu0 0.0
    %3362 = vmatpush1.msra.mxu0 0.0
    %3363 = vmatprep.subr.mxu0 0.0
    %3364 = vmatpush1.msra.mxu0 0.0
    %3365 = vmatprep.subr.mxu0 0.0
    %3366 = vmatpush1.msra.mxu0 0.0
    %3367 = vmatprep.subr.mxu0 0.0
    %3368 = vmatpush1.msra.mxu0 0.0
    %3369 = vmatprep.mubr.f32.mxu0 0.0
    %3370 = vmatmul.mubr.f32.gmra.mrb[0].mxu0 %v3300
    %v3371 = vpop.f32.mrb[0].mxu0
    %v3372 = vadd.f32 0.0, %v3371
    %v3373 = vpop.f32.mrb[0].mxu0
    %3374 = vmatprep.mubr.f32.mxu0 0.0
    %3375 = vmatmul.mubr.f32.gmra.mrb[0].mxu0 %v3303
    %v3376 = vpop.f32.mrb[0].mxu0
    %v3377 = vadd.f32 0.0, %v3376
    %v3378 = vpop.f32.mrb[0].mxu0
    %3379 = vdwg.mxu0
    %v3380 = vadd.f32 %v3087, %v3372
    %v3381 = vadd.f32 %v3092, %v3377
    %3382 = vrot.lane.b32.xlu0 %v2519, 104
    %v3383 = vpop.permute.xlu0 %3382
    %3384 = vrot.lane.b32.xlu0 %v2524, 104
    %v3385 = vpop.permute.xlu0 %3384
    %3386 = vrot.lane.b32.xlu0 %v2519, 72
    %v3387 = vpop.permute.xlu0 %3386
    %3388 = vrot.lane.b32.xlu0 %v2524, 72
    %v3389 = vpop.permute.xlu0 %3388
    %v3390 = vsel %vm246, %v3383, 0
    %v3392 = vsel %vm246, %v3385, 0
    %v3394 = vsel %vm246, %v3387, 0
    %v3396 = vsel %vm246, %v3389, 0
    %3398 = vmatprep.subr.mxu0 0.0
    %3399 = vmatpush1.xpose.msra.mxu0 %v3394
    %3400 = vmatprep.subr.mxu0 0.0
    %3401 = vmatpush1.xpose.msra.mxu0 %v3396
    %3402 = vmatprep.subr.mxu0 0.0
    %3403 = vmatpush1.xpose.msra.mxu0 0.0
    %3404 = vmatprep.subr.mxu0 0.0
    %3405 = vmatpush1.xpose.msra.mxu0 0.0
    %3406 = vmatprep.subr.mxu0 0.0
    %3407 = vmatpush1.xpose.msra.mxu0 0.0
    %3408 = vmatprep.subr.mxu0 0.0
    %3409 = vmatpush1.xpose.msra.mxu0 0.0
    %3410 = vmatprep.subr.mxu0 0.0
    %3411 = vmatpush1.xpose.msra.mxu0 0.0
    %3412 = vmatprep.subr.mxu0 0.0
    %3413 = vmatpush1.xpose.msra.mxu0 0.0
    %3414 = vmatprep.subr.mxu0 0.0
    %3415 = vmatpush1.xpose.msra.mxu0 0.0
    %3416 = vmatprep.subr.mxu0 0.0
    %3417 = vmatpush1.xpose.msra.mxu0 0.0
    %3418 = vmatprep.subr.mxu0 0.0
    %3419 = vmatpush1.xpose.msra.mxu0 0.0
    %3420 = vmatprep.subr.mxu0 0.0
    %3421 = vmatpush1.xpose.msra.mxu0 0.0
    %3422 = vmatprep.subr.mxu0 0.0
    %3423 = vmatpush1.xpose.msra.mxu0 0.0
    %3424 = vmatprep.subr.mxu0 0.0
    %3425 = vmatpush1.xpose.msra.mxu0 0.0
    %3426 = vmatprep.subr.mxu0 0.0
    %3427 = vmatpush1.xpose.msra.mxu0 0.0
    %3428 = vmatprep.subr.mxu0 0.0
    %3429 = vmatpush1.xpose.msra.mxu0 0.0
    %3430 = vmatprep.subr.mxu0 0.0
    %3431 = vmatpush1.xpose.msra.mxu0 0.0
    %3432 = vmatprep.subr.mxu0 0.0
    %3433 = vmatpush1.xpose.msra.mxu0 0.0
    %3434 = vmatprep.subr.mxu0 0.0
    %3435 = vmatpush1.xpose.msra.mxu0 0.0
    %3436 = vmatprep.subr.mxu0 0.0
    %3437 = vmatpush1.xpose.msra.mxu0 0.0
    %3438 = vmatprep.subr.mxu0 0.0
    %3439 = vmatpush1.xpose.msra.mxu0 0.0
    %3440 = vmatprep.subr.mxu0 0.0
    %3441 = vmatpush1.xpose.msra.mxu0 0.0
    %3442 = vmatprep.subr.mxu0 0.0
    %3443 = vmatpush1.xpose.msra.mxu0 0.0
    %3444 = vmatprep.subr.mxu0 0.0
    %3445 = vmatpush1.xpose.msra.mxu0 0.0
    %3446 = vmatprep.subr.mxu0 0.0
    %3447 = vmatpush1.xpose.msra.mxu0 0.0
    %3448 = vmatprep.subr.mxu0 0.0
    %3449 = vmatpush1.xpose.msra.mxu0 0.0
    %3450 = vmatprep.subr.mxu0 0.0
    %3451 = vmatpush1.xpose.msra.mxu0 0.0
    %3452 = vmatprep.subr.mxu0 0.0
    %3453 = vmatpush1.xpose.msra.mxu0 0.0
    %3454 = vmatprep.subr.mxu0 0.0
    %3455 = vmatpush1.xpose.msra.mxu0 0.0
    %3456 = vmatprep.subr.mxu0 0.0
    %3457 = vmatpush1.xpose.msra.mxu0 0.0
    %3458 = vmatprep.subr.mxu0 0.0
    %3459 = vmatpush1.xpose.msra.mxu0 0.0
    %3460 = vmatprep.subr.mxu0 0.0
    %3461 = vmatpush1.xpose.msra.mxu0 0.0
    %3462 = vmatprep.mubr.f32.mxu0 0.0
    %3463 = vmatmul.mubr.f32.gmra.mrb[0].mxu0 %v3390
    %v3464 = vpop.f32.mrb[0].mxu0
    %v3465 = vadd.f32 0.0, %v3464
    %v3466 = vpop.f32.mrb[0].mxu0
    %3467 = vmatprep.mubr.f32.mxu0 0.0
    %3468 = vmatmul.mubr.f32.gmra.mrb[0].mxu0 %v3392
    %v3469 = vpop.f32.mrb[0].mxu0
    %v3470 = vadd.f32 0.0, %v3469
    %v3471 = vpop.f32.mrb[0].mxu0
    %3472 = vdwg.mxu0
    %v3473 = vmul.f32 %v3465, 0.35355338
    %v3474 = vmul.f32 %v3470, 0.35355338
    %v3475 = vadd.f32 %v3473, %v91
    %v3476 = vadd.f32 %v3474, %v92
    %v3477 = vsel %vm334, %v3475, -inf
    %3478 = vmax.xlane.f32.xlu0 %v3477
    %v3479 = vpop.xlane.xlu0 %3478
    %v3480 = vsel %vm334, %v3476, -inf
    %3481 = vmax.xlane.f32.xlu0 %v3480
    %v3482 = vpop.xlane.xlu0 %3481
    %v3483 = vsub.f32 %v3475, %v3479
    %v3484 = vsub.f32 %v3476, %v3482
    %v3485 = vmul.f32 %v3483, 1.442695
    %v3486 = vpow.pop %v3485
    %v3487 = vmul.f32 %v3484, 1.442695
    %v3488 = vpow.pop %v3487
    %v3489 = vsel %vm334, %v3486, 0.0
    %3490 = vadd.xlane.f32.xlu0 %v3489
    %v3491 = vpop.xlane.xlu0 %3490
    %v3492 = vsel %vm334, %v3488, 0.0
    %3493 = vadd.xlane.f32.xlu0 %v3492
    %v3494 = vpop.xlane.xlu0 %3493
    %v3495 = vrcp.pop %v3491
    %v3496 = vmul.f32 %v3486, %v3495
    %v3497 = vrcp.pop %v3494
    %v3498 = vmul.f32 %v3488, %v3497
    %3499 = vrot.lane.b32.xlu0 %v2519, 40
    %v3500 = vpop.permute.xlu0 %3499
    %3501 = vrot.lane.b32.xlu0 %v2524, 40
    %v3502 = vpop.permute.xlu0 %3501
    %v3506 = vsel %vm334, %v3496, 0
    %v3509 = vsel %vm334, %v3498, 0
    %3511 = vmatprep.subr.mxu0 0.0
    %3512 = vmatpush1.msra.mxu0 %v3500
    %3513 = vmatprep.subr.mxu0 0.0
    %3514 = vmatpush1.msra.mxu0 %v3502
    %3515 = vmatprep.subr.mxu0 0.0
    %3516 = vmatpush1.msra.mxu0 0.0
    %3517 = vmatprep.subr.mxu0 0.0
    %3518 = vmatpush1.msra.mxu0 0.0
    %3519 = vmatprep.subr.mxu0 0.0
    %3520 = vmatpush1.msra.mxu0 0.0
    %3521 = vmatprep.subr.mxu0 0.0
    %3522 = vmatpush1.msra.mxu0 0.0
    %3523 = vmatprep.subr.mxu0 0.0
    %3524 = vmatpush1.msra.mxu0 0.0
    %3525 = vmatprep.subr.mxu0 0.0
    %3526 = vmatpush1.msra.mxu0 0.0
    %3527 = vmatprep.subr.mxu0 0.0
    %3528 = vmatpush1.msra.mxu0 0.0
    %3529 = vmatprep.subr.mxu0 0.0
    %3530 = vmatpush1.msra.mxu0 0.0
    %3531 = vmatprep.subr.mxu0 0.0
    %3532 = vmatpush1.msra.mxu0 0.0
    %3533 = vmatprep.subr.mxu0 0.0
    %3534 = vmatpush1.msra.mxu0 0.0
    %3535 = vmatprep.subr.mxu0 0.0
    %3536 = vmatpush1.msra.mxu0 0.0
    %3537 = vmatprep.subr.mxu0 0.0
    %3538 = vmatpush1.msra.mxu0 0.0
    %3539 = vmatprep.subr.mxu0 0.0
    %3540 = vmatpush1.msra.mxu0 0.0
    %3541 = vmatprep.subr.mxu0 0.0
    %3542 = vmatpush1.msra.mxu0 0.0
    %3543 = vmatprep.subr.mxu0 0.0
    %3544 = vmatpush1.msra.mxu0 0.0
    %3545 = vmatprep.subr.mxu0 0.0
    %3546 = vmatpush1.msra.mxu0 0.0
    %3547 = vmatprep.subr.mxu0 0.0
    %3548 = vmatpush1.msra.mxu0 0.0
    %3549 = vmatprep.subr.mxu0 0.0
    %3550 = vmatpush1.msra.mxu0 0.0
    %3551 = vmatprep.subr.mxu0 0.0
    %3552 = vmatpush1.msra.mxu0 0.0
    %3553 = vmatprep.subr.mxu0 0.0
    %3554 = vmatpush1.msra.mxu0 0.0
    %3555 = vmatprep.subr.mxu0 0.0
    %3556 = vmatpush1.msra.mxu0 0.0
    %3557 = vmatprep.subr.mxu0 0.0
    %3558 = vmatpush1.msra.mxu0 0.0
    %3559 = vmatprep.subr.mxu0 0.0
    %3560 = vmatpush1.msra.mxu0 0.0
    %3561 = vmatprep.subr.mxu0 0.0
    %3562 = vmatpush1.msra.mxu0 0.0
    %3563 = vmatprep.subr.mxu0 0.0
    %3564 = vmatpush1.msra.mxu0 0.0
    %3565 = vmatprep.subr.mxu0 0.0
    %3566 = vmatpush1.msra.mxu0 0.0
    %3567 = vmatprep.subr.mxu0 0.0
    %3568 = vmatpush1.msra.mxu0 0.0
    %3569 = vmatprep.subr.mxu0 0.0
    %3570 = vmatpush1.msra.mxu0 0.0
    %3571 = vmatprep.subr.mxu0 0.0
    %3572 = vmatpush1.msra.mxu0 0.0
    %3573 = vmatprep.subr.mxu0 0.0
    %3574 = vmatpush1.msra.mxu0 0.0
    %3575 = vmatprep.mubr.f32.mxu0 0.0
    %3576 = vmatmul.mubr.f32.gmra.mrb[0].mxu0 %v3506
    %v3577 = vpop.f32.mrb[0].mxu0
    %v3578 = vadd.f32 0.0, %v3577
    %v3579 = vpop.f32.mrb[0].mxu0
    %3580 = vmatprep.mubr.f32.mxu0 0.0
    %3581 = vmatmul.mubr.f32.gmra.mrb[0].mxu0 %v3509
    %v3582 = vpop.f32.mrb[0].mxu0
    %v3583 = vadd.f32 0.0, %v3582
    %v3584 = vpop.f32.mrb[0].mxu0
    %3585 = vdwg.mxu0
    %v3587 = vsel %vm246, %v3578, 0
    %v3590 = vsel %vm246, %v3583, 0
    %3592 = vmatprep.subr.mxu0 0.0
    %3593 = vmatpush1.msra.mxu0 %v2392
    %3594 = vmatprep.subr.mxu0 0.0
    %3595 = vmatpush1.msra.mxu0 0.0
    %3596 = vmatprep.subr.mxu0 0.0
    %3597 = vmatpush1.msra.mxu0 0.0
    %3598 = vmatprep.subr.mxu0 0.0
    %3599 = vmatpush1.msra.mxu0 0.0
    %3600 = vmatprep.subr.mxu0 0.0
    %3601 = vmatpush1.msra.mxu0 0.0
    %3602 = vmatprep.subr.mxu0 0.0
    %3603 = vmatpush1.msra.mxu0 0.0
    %3604 = vmatprep.subr.mxu0 0.0
    %3605 = vmatpush1.msra.mxu0 0.0
    %3606 = vmatprep.subr.mxu0 0.0
    %3607 = vmatpush1.msra.mxu0 0.0
    %3608 = vmatprep.subr.mxu0 0.0
    %3609 = vmatpush1.msra.mxu0 0.0
    %3610 = vmatprep.subr.mxu0 0.0
    %3611 = vmatpush1.msra.mxu0 0.0
    %3612 = vmatprep.subr.mxu0 0.0
    %3613 = vmatpush1.msra.mxu0 0.0
    %3614 = vmatprep.subr.mxu0 0.0
    %3615 = vmatpush1.msra.mxu0 0.0
    %3616 = vmatprep.subr.mxu0 0.0
    %3617 = vmatpush1.msra.mxu0 0.0
    %3618 = vmatprep.subr.mxu0 0.0
    %3619 = vmatpush1.msra.mxu0 0.0
    %3620 = vmatprep.subr.mxu0 0.0
    %3621 = vmatpush1.msra.mxu0 0.0
    %3622 = vmatprep.subr.mxu0 0.0
    %3623 = vmatpush1.msra.mxu0 0.0
    %3624 = vmatprep.subr.mxu0 0.0
    %3625 = vmatpush1.msra.mxu0 0.0
    %3626 = vmatprep.subr.mxu0 0.0
    %3627 = vmatpush1.msra.mxu0 0.0
    %3628 = vmatprep.subr.mxu0 0.0
    %3629 = vmatpush1.msra.mxu0 0.0
    %3630 = vmatprep.subr.mxu0 0.0
    %3631 = vmatpush1.msra.mxu0 0.0
    %3632 = vmatprep.subr.mxu0 0.0
    %3633 = vmatpush1.msra.mxu0 0.0
    %3634 = vmatprep.subr.mxu0 0.0
    %3635 = vmatpush1.msra.mxu0 0.0
    %3636 = vmatprep.subr.mxu0 0.0
    %3637 = vmatpush1.msra.mxu0 0.0
    %3638 = vmatprep.subr.mxu0 0.0
    %3639 = vmatpush1.msra.mxu0 0.0
    %3640 = vmatprep.subr.mxu0 0.0
    %3641 = vmatpush1.msra.mxu0 0.0
    %3642 = vmatprep.subr.mxu0 0.0
    %3643 = vmatpush1.msra.mxu0 0.0
    %3644 = vmatprep.subr.mxu0 0.0
    %3645 = vmatpush1.msra.mxu0 0.0
    %3646 = vmatprep.subr.mxu0 0.0
    %3647 = vmatpush1.msra.mxu0 0.0
    %3648 = vmatprep.subr.mxu0 0.0
    %3649 = vmatpush1.msra.mxu0 0.0
    %3650 = vmatprep.subr.mxu0 0.0
    %3651 = vmatpush1.msra.mxu0 0.0
    %3652 = vmatprep.subr.mxu0 0.0
    %3653 = vmatpush1.msra.mxu0 0.0
    %3654 = vmatprep.subr.mxu0 0.0
    %3655 = vmatpush1.msra.mxu0 0.0
    %3656 = vmatprep.mubr.f32.mxu0 0.0
    %3657 = vmatmul.mubr.f32.gmra.mrb[0].mxu0 %v3587
    %v3658 = vpop.f32.mrb[0].mxu0
    %v3659 = vadd.f32 0.0, %v3658
    %v3660 = vpop.f32.mrb[0].mxu0
    %3661 = vmatprep.mubr.f32.mxu0 0.0
    %3662 = vmatmul.mubr.f32.gmra.mrb[0].mxu0 %v3590
    %v3663 = vpop.f32.mrb[0].mxu0
    %v3664 = vadd.f32 0.0, %v3663
    %v3665 = vpop.f32.mrb[0].mxu0
    %3666 = vdwg.mxu0
    %v3667 = vadd.f32 %v3380, %v3659
    %v3668 = vadd.f32 %v3381, %v3664
    %v3669 = vlaneseq
    %v3670 = vshrl.u32 %v3669, 7
    %v3671 = vsub.s32 1, %v3670
    %v3672 = vrot.slane %v2401, %v3671
    %v3673 = vadd.f32 %v3667, %v3672
    %v3674 = vadd.f32 %v3668, %v3672
    %v3677 = vcombine.high %v3673, %v3673
    %v3679 = vunpack.c.l.s4 1983009808
    %v3680 = vunpack.c.0.s8 %v3679
    %v3681 = vlaneseq
    %v3682 = vshrl.u32 %v3681, 7
    %v3683 = vsub.s32 %v3680, %v3682
    %v3684 = vrot.slane %v3673, %v3683
    %v3686 = vunpack.c.l.s4 1983009808
    %v3687 = vunpack.c.0.s8 %v3686
    %v3688 = vlaneseq
    %v3689 = vshrl.u32 %v3688, 7
    %v3690 = vsub.s32 %v3687, %v3689
    %v3691 = vrot.slane %v3677, %v3690
    %v3692 = vcombine.high %v3684, %v3684
    %v3693 = vcombine.high %v3691, %v3691
    %v3694 = vcombine.high %v3674, %v3674
    %v3696 = vunpack.c.l.s4 1983009808
    %v3697 = vunpack.c.0.s8 %v3696
    %v3698 = vlaneseq
    %v3699 = vshrl.u32 %v3698, 7
    %v3700 = vsub.s32 %v3697, %v3699
    %v3701 = vrot.slane %v3674, %v3700
    %v3703 = vunpack.c.l.s4 1983009808
    %v3704 = vunpack.c.0.s8 %v3703
    %v3705 = vlaneseq
    %v3706 = vshrl.u32 %v3705, 7
    %v3707 = vsub.s32 %v3704, %v3706
    %v3708 = vrot.slane %v3694, %v3707
    %v3709 = vcombine.high %v3701, %v3701
    %v3710 = vcombine.high %v3708, %v3708
    %v3719 = vadd.f32 %v2372, %v3684
    %v3720 = vadd.f32 %v2373, %v3692
    %v3721 = vadd.f32 %v2374, %v3691
    %v3722 = vadd.f32 %v2375, %v3693
    %v3723 = vadd.f32 %v2376, %v3701
    %v3724 = vadd.f32 %v2377, %v3709
    %v3725 = vadd.f32 %v2378, %v3708
    %v3726 = vadd.f32 %v2379, %v3710
    %v3735 = vcombine.low %v3719, %v3720
    %v3736 = vcombine.low %v3721, %v3722
    %v3738 = vunpack.c.l.s4 1983009808
    %v3739 = vunpack.c.0.s8 %v3738
    %v3740 = vlaneseq
    %v3741 = vshrl.u32 %v3740, 7
    %v3742 = vsub.s32 %v3739, %v3741
    %v3743 = vrot.slane %v3735, %v3742
    %v3745 = vunpack.c.l.s4 1983009808
    %v3746 = vunpack.c.0.s8 %v3745
    %v3747 = vlaneseq
    %v3748 = vshrl.u32 %v3747, 7
    %v3749 = vsub.s32 %v3746, %v3748
    %v3750 = vrot.slane %v3736, %v3749
    %v3751 = vcombine.low %v3743, %v3750
    %v3752 = vcombine.low %v3723, %v3724
    %v3753 = vcombine.low %v3725, %v3726
    %v3755 = vunpack.c.l.s4 1983009808
    %v3756 = vunpack.c.0.s8 %v3755
    %v3757 = vlaneseq
    %v3758 = vshrl.u32 %v3757, 7
    %v3759 = vsub.s32 %v3756, %v3758
    %v3760 = vrot.slane %v3752, %v3759
    %v3762 = vunpack.c.l.s4 1983009808
    %v3763 = vunpack.c.0.s8 %v3762
    %v3764 = vlaneseq
    %v3765 = vshrl.u32 %v3764, 7
    %v3766 = vsub.s32 %v3763, %v3765
    %v3767 = vrot.slane %v3753, %v3766
    %v3768 = vcombine.low %v3760, %v3767
    %v3771 = vsel %vm160, %v3751, 0.0
    %3772 = vadd.xlane.f32.xlu0 %v3771
    %v3773 = vpop.xlane.xlu0 %3772
    %v3774 = vsel %vm160, %v3768, 0.0
    %3775 = vadd.xlane.f32.xlu0 %v3774
    %v3776 = vpop.xlane.xlu0 %3775
    %v3777 = vmul.f32 %v3773, %v1492
    %v3778 = vmul.f32 %v3776, %v1492
    %v3782 = vunpack.c.l.s4 269488144
    %v3783 = vunpack.c.0.s8 %v3782
    %v3784 = vlaneseq
    %v3785 = vshrl.u32 %v3784, 7
    %v3786 = vsub.s32 %v3783, %v3785
    %v3787 = vrot.slane %v3777, %v3786
    %v3789 = vunpack.c.l.s4 842150450
    %v3790 = vunpack.c.0.s8 %v3789
    %v3791 = vlaneseq
    %v3792 = vshrl.u32 %v3791, 7
    %v3793 = vsub.s32 %v3790, %v3792
    %v3794 = vrot.slane %v3777, %v3793
    %v3796 = vunpack.c.l.s4 1414812756
    %v3797 = vunpack.c.0.s8 %v3796
    %v3798 = vlaneseq
    %v3799 = vshrl.u32 %v3798, 7
    %v3800 = vsub.s32 %v3797, %v3799
    %v3801 = vrot.slane %v3777, %v3800
    %v3803 = vunpack.c.l.s4 1987475062
    %v3804 = vunpack.c.0.s8 %v3803
    %v3805 = vlaneseq
    %v3806 = vshrl.u32 %v3805, 7
    %v3807 = vsub.s32 %v3804, %v3806
    %v3808 = vrot.slane %v3777, %v3807
    %v3810 = vunpack.c.l.s4 269488144
    %v3811 = vunpack.c.0.s8 %v3810
    %v3812 = vlaneseq
    %v3813 = vshrl.u32 %v3812, 7
    %v3814 = vsub.s32 %v3811, %v3813
    %v3815 = vrot.slane %v3778, %v3814
    %v3817 = vunpack.c.l.s4 842150450
    %v3818 = vunpack.c.0.s8 %v3817
    %v3819 = vlaneseq
    %v3820 = vshrl.u32 %v3819, 7
    %v3821 = vsub.s32 %v3818, %v3820
    %v3822 = vrot.slane %v3778, %v3821
    %v3824 = vunpack.c.l.s4 1414812756
    %v3825 = vunpack.c.0.s8 %v3824
    %v3826 = vlaneseq
    %v3827 = vshrl.u32 %v3826, 7
    %v3828 = vsub.s32 %v3825, %v3827
    %v3829 = vrot.slane %v3778, %v3828
    %v3831 = vunpack.c.l.s4 1987475062
    %v3832 = vunpack.c.0.s8 %v3831
    %v3833 = vlaneseq
    %v3834 = vshrl.u32 %v3833, 7
    %v3835 = vsub.s32 %v3832, %v3834
    %v3836 = vrot.slane %v3778, %v3835
    %v3845 = vsub.f32 %v3719, %v3787
    %v3846 = vsub.f32 %v3720, %v3794
    %v3847 = vsub.f32 %v3721, %v3801
    %v3848 = vsub.f32 %v3722, %v3808
    %v3849 = vsub.f32 %v3723, %v3815
    %v3850 = vsub.f32 %v3724, %v3822
    %v3851 = vsub.f32 %v3725, %v3829
    %v3852 = vsub.f32 %v3726, %v3836
    %v3853 = vmul.f32 %v3845, %v3845
    %v3854 = vmul.f32 %v3846, %v3846
    %v3855 = vmul.f32 %v3847, %v3847
    %v3856 = vmul.f32 %v3848, %v3848
    %v3857 = vmul.f32 %v3849, %v3849
    %v3858 = vmul.f32 %v3850, %v3850
    %v3859 = vmul.f32 %v3851, %v3851
    %v3860 = vmul.f32 %v3852, %v3852
    %v3869 = vcombine.low %v3853, %v3854
    %v3870 = vcombine.low %v3855, %v3856
    %v3872 = vunpack.c.l.s4 1983009808
    %v3873 = vunpack.c.0.s8 %v3872
    %v3874 = vlaneseq
    %v3875 = vshrl.u32 %v3874, 7
    %v3876 = vsub.s32 %v3873, %v3875
    %v3877 = vrot.slane %v3869, %v3876
    %v3879 = vunpack.c.l.s4 1983009808
    %v3880 = vunpack.c.0.s8 %v3879
    %v3881 = vlaneseq
    %v3882 = vshrl.u32 %v3881, 7
    %v3883 = vsub.s32 %v3880, %v3882
    %v3884 = vrot.slane %v3870, %v3883
    %v3885 = vcombine.low %v3877, %v3884
    %v3886 = vcombine.low %v3857, %v3858
    %v3887 = vcombine.low %v3859, %v3860
    %v3889 = vunpack.c.l.s4 1983009808
    %v3890 = vunpack.c.0.s8 %v3889
    %v3891 = vlaneseq
    %v3892 = vshrl.u32 %v3891, 7
    %v3893 = vsub.s32 %v3890, %v3892
    %v3894 = vrot.slane %v3886, %v3893
    %v3896 = vunpack.c.l.s4 1983009808
    %v3897 = vunpack.c.0.s8 %v3896
    %v3898 = vlaneseq
    %v3899 = vshrl.u32 %v3898, 7
    %v3900 = vsub.s32 %v3897, %v3899
    %v3901 = vrot.slane %v3887, %v3900
    %v3902 = vcombine.low %v3894, %v3901
    %v3905 = vsel %vm160, %v3885, 0.0
    %3906 = vadd.xlane.f32.xlu0 %v3905
    %v3907 = vpop.xlane.xlu0 %3906
    %v3908 = vsel %vm160, %v3902, 0.0
    %3909 = vadd.xlane.f32.xlu0 %v3908
    %v3910 = vpop.xlane.xlu0 %3909
    %v3911 = vmul.f32 %v3907, %v1492
    %v3912 = vmul.f32 %v3910, %v1492
    %v3913 = vadd.f32 %v3911, 1e-05
    %v3914 = vadd.f32 %v3912, 1e-05
    %v3915 = vrsqrt.pop %v3913
    %v3916 = vrsqrt.pop %v3914
    %v3920 = vunpack.c.l.s4 269488144
    %v3921 = vunpack.c.0.s8 %v3920
    %v3922 = vlaneseq
    %v3923 = vshrl.u32 %v3922, 7
    %v3924 = vsub.s32 %v3921, %v3923
    %v3925 = vrot.slane %v3915, %v3924
    %v3927 = vunpack.c.l.s4 842150450
    %v3928 = vunpack.c.0.s8 %v3927
    %v3929 = vlaneseq
    %v3930 = vshrl.u32 %v3929, 7
    %v3931 = vsub.s32 %v3928, %v3930
    %v3932 = vrot.slane %v3915, %v3931
    %v3934 = vunpack.c.l.s4 1414812756
    %v3935 = vunpack.c.0.s8 %v3934
    %v3936 = vlaneseq
    %v3937 = vshrl.u32 %v3936, 7
    %v3938 = vsub.s32 %v3935, %v3937
    %v3939 = vrot.slane %v3915, %v3938
    %v3941 = vunpack.c.l.s4 1987475062
    %v3942 = vunpack.c.0.s8 %v3941
    %v3943 = vlaneseq
    %v3944 = vshrl.u32 %v3943, 7
    %v3945 = vsub.s32 %v3942, %v3944
    %v3946 = vrot.slane %v3915, %v3945
    %v3948 = vunpack.c.l.s4 269488144
    %v3949 = vunpack.c.0.s8 %v3948
    %v3950 = vlaneseq
    %v3951 = vshrl.u32 %v3950, 7
    %v3952 = vsub.s32 %v3949, %v3951
    %v3953 = vrot.slane %v3916, %v3952
    %v3955 = vunpack.c.l.s4 842150450
    %v3956 = vunpack.c.0.s8 %v3955
    %v3957 = vlaneseq
    %v3958 = vshrl.u32 %v3957, 7
    %v3959 = vsub.s32 %v3956, %v3958
    %v3960 = vrot.slane %v3916, %v3959
    %v3962 = vunpack.c.l.s4 1414812756
    %v3963 = vunpack.c.0.s8 %v3962
    %v3964 = vlaneseq
    %v3965 = vshrl.u32 %v3964, 7
    %v3966 = vsub.s32 %v3963, %v3965
    %v3967 = vrot.slane %v3916, %v3966
    %v3969 = vunpack.c.l.s4 1987475062
    %v3970 = vunpack.c.0.s8 %v3969
    %v3971 = vlaneseq
    %v3972 = vshrl.u32 %v3971, 7
    %v3973 = vsub.s32 %v3970, %v3972
    %v3974 = vrot.slane %v3916, %v3973
    %v3983 = vmul.f32 %v3845, %v3925
    %v3984 = vmul.f32 %v3846, %v3932
    %v3985 = vmul.f32 %v3847, %v3939
    %v3986 = vmul.f32 %v3848, %v3946
    %v3987 = vmul.f32 %v3849, %v3953
    %v3988 = vmul.f32 %v3850, %v3960
    %v3989 = vmul.f32 %v3851, %v3967
    %v3990 = vmul.f32 %v3852, %v3974
    %v3991 = vlaneseq
    %v3992 = vshrl.u32 %v3991, 7
    %v3993 = vsub.s32 4, %v3992
    %v3994 = vrot.slane %v2401, %v3993
    %v3996 = vcombine.high %v3994, %v3994
    %v3998 = vunpack.c.l.s4 1983009808
    %v3999 = vunpack.c.0.s8 %v3998
    %v4000 = vlaneseq
    %v4001 = vshrl.u32 %v4000, 7
    %v4002 = vsub.s32 %v3999, %v4001
    %v4003 = vrot.slane %v3994, %v4002
    %v4005 = vunpack.c.l.s4 1983009808
    %v4006 = vunpack.c.0.s8 %v4005
    %v4007 = vlaneseq
    %v4008 = vshrl.u32 %v4007, 7
    %v4009 = vsub.s32 %v4006, %v4008
    %v4010 = vrot.slane %v3996, %v4009
    %v4011 = vcombine.high %v4003, %v4003
    %v4012 = vcombine.high %v4010, %v4010
    %v4017 = vmul.f32 %v3983, %v4003
    %v4018 = vmul.f32 %v3984, %v4011
    %v4019 = vmul.f32 %v3985, %v4010
    %v4020 = vmul.f32 %v3986, %v4012
    %v4021 = vmul.f32 %v3987, %v4003
    %v4022 = vmul.f32 %v3988, %v4011
    %v4023 = vmul.f32 %v3989, %v4010
    %v4024 = vmul.f32 %v3990, %v4012
    %v4025 = vlaneseq
    %v4026 = vshrl.u32 %v4025, 7
    %v4027 = vsub.s32 5, %v4026
    %v4028 = vrot.slane %v2401, %v4027
    %v4030 = vcombine.high %v4028, %v4028
    %v4032 = vunpack.c.l.s4 1983009808
    %v4033 = vunpack.c.0.s8 %v4032
    %v4034 = vlaneseq
    %v4035 = vshrl.u32 %v4034, 7
    %v4036 = vsub.s32 %v4033, %v4035
    %v4037 = vrot.slane %v4028, %v4036
    %v4039 = vunpack.c.l.s4 1983009808
    %v4040 = vunpack.c.0.s8 %v4039
    %v4041 = vlaneseq
    %v4042 = vshrl.u32 %v4041, 7
    %v4043 = vsub.s32 %v4040, %v4042
    %v4044 = vrot.slane %v4030, %v4043
    %v4045 = vcombine.high %v4037, %v4037
    %v4046 = vcombine.high %v4044, %v4044
    %v4051 = vadd.f32 %v4017, %v4037
    %v4052 = vadd.f32 %v4018, %v4045
    %v4053 = vadd.f32 %v4019, %v4044
    %v4054 = vadd.f32 %v4020, %v4046
    %v4055 = vadd.f32 %v4021, %v4037
    %v4056 = vadd.f32 %v4022, %v4045
    %v4057 = vadd.f32 %v4023, %v4044
    %v4058 = vadd.f32 %v4024, %v4046
    %v4059 = vlaneseq
    %v4060 = vshrl.u32 %v4059, 7
    %v4061 = vsub.s32 2, %v4060
    %v4062 = vrot.slane %v2401, %v4061
    %v4071 = vcombine.low %v4051, %v4052
    %v4072 = vcombine.low %v4053, %v4054
    %v4074 = vunpack.c.l.s4 1983009808
    %v4075 = vunpack.c.0.s8 %v4074
    %v4076 = vlaneseq
    %v4077 = vshrl.u32 %v4076, 7
    %v4078 = vsub.s32 %v4075, %v4077
    %v4079 = vrot.slane %v4071, %v4078
    %v4081 = vunpack.c.l.s4 1983009808
    %v4082 = vunpack.c.0.s8 %v4081
    %v4083 = vlaneseq
    %v4084 = vshrl.u32 %v4083, 7
    %v4085 = vsub.s32 %v4082, %v4084
    %v4086 = vrot.slane %v4072, %v4085
    %v4087 = vcombine.low %v4079, %v4086
    %v4088 = vcombine.low %v4055, %v4056
    %v4089 = vcombine.low %v4057, %v4058
    %v4091 = vunpack.c.l.s4 1983009808
    %v4092 = vunpack.c.0.s8 %v4091
    %v4093 = vlaneseq
    %v4094 = vshrl.u32 %v4093, 7
    %v4095 = vsub.s32 %v4092, %v4094
    %v4096 = vrot.slane %v4088, %v4095
    %v4098 = vunpack.c.l.s4 1983009808
    %v4099 = vunpack.c.0.s8 %v4098
    %v4100 = vlaneseq
    %v4101 = vshrl.u32 %v4100, 7
    %v4102 = vsub.s32 %v4099, %v4101
    %v4103 = vrot.slane %v4089, %v4102
    %v4104 = vcombine.low %v4096, %v4103
    %v4105 = vsel %vm160, %v4087, 0
    %v4107 = vsel %vm160, %v4104, 0
    %4109 = vmatprep.subr.mxu0 0.0
    %4110 = vmatpush1.msra.mxu0 %v2385
    %4111 = vmatprep.subr.mxu0 0.0
    %4112 = vmatpush1.msra.mxu0 %v2386
    %4113 = vmatprep.subr.mxu0 0.0
    %4114 = vmatpush1.msra.mxu0 %v2387
    %4115 = vmatprep.subr.mxu0 0.0
    %4116 = vmatpush1.msra.mxu0 %v2388
    %4117 = vmatprep.subr.mxu0 0.0
    %4118 = vmatpush1.msra.mxu0 0.0
    %4119 = vmatprep.subr.mxu0 0.0
    %4120 = vmatpush1.msra.mxu0 0.0
    %4121 = vmatprep.subr.mxu0 0.0
    %4122 = vmatpush1.msra.mxu0 0.0
    %4123 = vmatprep.subr.mxu0 0.0
    %4124 = vmatpush1.msra.mxu0 0.0
    %4125 = vmatprep.subr.mxu0 0.0
    %4126 = vmatpush1.msra.mxu0 0.0
    %4127 = vmatprep.subr.mxu0 0.0
    %4128 = vmatpush1.msra.mxu0 0.0
    %4129 = vmatprep.subr.mxu0 0.0
    %4130 = vmatpush1.msra.mxu0 0.0
    %4131 = vmatprep.subr.mxu0 0.0
    %4132 = vmatpush1.msra.mxu0 0.0
    %4133 = vmatprep.subr.mxu0 0.0
    %4134 = vmatpush1.msra.mxu0 0.0
    %4135 = vmatprep.subr.mxu0 0.0
    %4136 = vmatpush1.msra.mxu0 0.0
    %4137 = vmatprep.subr.mxu0 0.0
    %4138 = vmatpush1.msra.mxu0 0.0
    %4139 = vmatprep.subr.mxu0 0.0
    %4140 = vmatpush1.msra.mxu0 0.0
    %4141 = vmatprep.subr.mxu0 0.0
    %4142 = vmatpush1.msra.mxu0 0.0
    %4143 = vmatprep.subr.mxu0 0.0
    %4144 = vmatpush1.msra.mxu0 0.0
    %4145 = vmatprep.subr.mxu0 0.0
    %4146 = vmatpush1.msra.mxu0 0.0
    %4147 = vmatprep.subr.mxu0 0.0
    %4148 = vmatpush1.msra.mxu0 0.0
    %4149 = vmatprep.subr.mxu0 0.0
    %4150 = vmatpush1.msra.mxu0 0.0
    %4151 = vmatprep.subr.mxu0 0.0
    %4152 = vmatpush1.msra.mxu0 0.0
    %4153 = vmatprep.subr.mxu0 0.0
    %4154 = vmatpush1.msra.mxu0 0.0
    %4155 = vmatprep.subr.mxu0 0.0
    %4156 = vmatpush1.msra.mxu0 0.0
    %4157 = vmatprep.subr.mxu0 0.0
    %4158 = vmatpush1.msra.mxu0 0.0
    %4159 = vmatprep.subr.mxu0 0.0
    %4160 = vmatpush1.msra.mxu0 0.0
    %4161 = vmatprep.subr.mxu0 0.0
    %4162 = vmatpush1.msra.mxu0 0.0
    %4163 = vmatprep.subr.mxu0 0.0
    %4164 = vmatpush1.msra.mxu0 0.0
    %4165 = vmatprep.subr.mxu0 0.0
    %4166 = vmatpush1.msra.mxu0 0.0
    %4167 = vmatprep.subr.mxu0 0.0
    %4168 = vmatpush1.msra.mxu0 0.0
    %4169 = vmatprep.subr.mxu0 0.0
    %4170 = vmatpush1.msra.mxu0 0.0
    %4171 = vmatprep.subr.mxu0 0.0
    %4172 = vmatpush1.msra.mxu0 0.0
    %4173 = vmatprep.mubr.f32.mxu0 0.0
    %4174 = vmatmul.mubr.f32.gmra.mrb[0].mxu0 %v4105
    %v4175 = vpop.f32.mrb[0].mxu0
    %v4176 = vadd.f32 %v4062, %v4175
    %v4177 = vpop.f32.mrb[0].mxu0
    %4178 = vmatprep.mubr.f32.mxu0 0.0
    %4179 = vmatmul.mubr.f32.gmra.mrb[0].mxu0 %v4107
    %v4180 = vpop.f32.mrb[0].mxu0
    %v4181 = vadd.f32 %v4062, %v4180
    %v4182 = vpop.f32.mrb[0].mxu0
    %4183 = vdwg.mxu0
    %v4184 = vmul.f32 %v4176, 0.5
    %v4185 = vmul.f32 %v4181, 0.5
    %v4186 = vmul.f32 %v4176, 0.70710677
    %v4187 = vmul.f32 %v4181, 0.70710677
    %v4188 = verf.f32.pop %v4186
    %v4189 = verf.f32.pop %v4187
    %v4190 = vadd.f32 %v4188, 1.0
    %v4191 = vadd.f32 %v4189, 1.0
    %v4192 = vmul.f32 %v4184, %v4190
    %v4193 = vmul.f32 %v4185, %v4191
    %v4194 = vlaneseq
    %v4195 = vshrl.u32 %v4194, 7
    %v4196 = vsub.s32 3, %v4195
    %v4197 = vrot.slane %v2401, %v4196
    %v4199 = vsel %vm1914, %v4192, 0
    %v4202 = vsel %vm1914, %v4193, 0
    %4204 = vmatprep.subr.mxu0 0.0
    %4205 = vmatpush1.msra.mxu0 %v2393
    %4206 = vmatprep.subr.mxu0 0.0
    %4207 = vmatpush1.msra.mxu0 %v2394
    %4208 = vmatprep.subr.mxu0 0.0
    %4209 = vmatpush1.msra.mxu0 %v2395
    %4210 = vmatprep.subr.mxu0 0.0
    %4211 = vmatpush1.msra.mxu0 %v2396
    %4212 = vmatprep.subr.mxu0 0.0
    %4213 = vmatpush1.msra.mxu0 %v2397
    %4214 = vmatprep.subr.mxu0 0.0
    %4215 = vmatpush1.msra.mxu0 %v2398
    %4216 = vmatprep.subr.mxu0 0.0
    %4217 = vmatpush1.msra.mxu0 %v2399
    %4218 = vmatprep.subr.mxu0 0.0
    %4219 = vmatpush1.msra.mxu0 %v2400
    %4220 = vmatprep.subr.mxu0 0.0
    %4221 = vmatpush1.msra.mxu0 0.0
    %4222 = vmatprep.subr.mxu0 0.0
    %4223 = vmatpush1.msra.mxu0 0.0
    %4224 = vmatprep.subr.mxu0 0.0
    %4225 = vmatpush1.msra.mxu0 0.0
    %4226 = vmatprep.subr.mxu0 0.0
    %4227 = vmatpush1.msra.mxu0 0.0
    %4228 = vmatprep.subr.mxu0 0.0
    %4229 = vmatpush1.msra.mxu0 0.0
    %4230 = vmatprep.subr.mxu0 0.0
    %4231 = vmatpush1.msra.mxu0 0.0
    %4232 = vmatprep.subr.mxu0 0.0
    %4233 = vmatpush1.msra.mxu0 0.0
    %4234 = vmatprep.subr.mxu0 0.0
    %4235 = vmatpush1.msra.mxu0 0.0
    %4236 = vmatprep.subr.mxu0 0.0
    %4237 = vmatpush1.msra.mxu0 0.0
    %4238 = vmatprep.subr.mxu0 0.0
    %4239 = vmatpush1.msra.mxu0 0.0
    %4240 = vmatprep.subr.mxu0 0.0
    %4241 = vmatpush1.msra.mxu0 0.0
    %4242 = vmatprep.subr.mxu0 0.0
    %4243 = vmatpush1.msra.mxu0 0.0
    %4244 = vmatprep.subr.mxu0 0.0
    %4245 = vmatpush1.msra.mxu0 0.0
    %4246 = vmatprep.subr.mxu0 0.0
    %4247 = vmatpush1.msra.mxu0 0.0
    %4248 = vmatprep.subr.mxu0 0.0
    %4249 = vmatpush1.msra.mxu0 0.0
    %4250 = vmatprep.subr.mxu0 0.0
    %4251 = vmatpush1.msra.mxu0 0.0
    %4252 = vmatprep.subr.mxu0 0.0
    %4253 = vmatpush1.msra.mxu0 0.0
    %4254 = vmatprep.subr.mxu0 0.0
    %4255 = vmatpush1.msra.mxu0 0.0
    %4256 = vmatprep.subr.mxu0 0.0
    %4257 = vmatpush1.msra.mxu0 0.0
    %4258 = vmatprep.subr.mxu0 0.0
    %4259 = vmatpush1.msra.mxu0 0.0
    %4260 = vmatprep.subr.mxu0 0.0
    %4261 = vmatpush1.msra.mxu0 0.0
    %4262 = vmatprep.subr.mxu0 0.0
    %4263 = vmatpush1.msra.mxu0 0.0
    %4264 = vmatprep.subr.mxu0 0.0
    %4265 = vmatpush1.msra.mxu0 0.0
    %4266 = vmatprep.subr.mxu0 0.0
    %4267 = vmatpush1.msra.mxu0 0.0
    %4268 = vmatprep.mubr.f32.mxu0 0.0
    %4269 = vmatmul.mubr.f32.gmra.mrb[0].mxu0 %v4199
    %v4270 = vpop.f32.mrb[0].mxu0
    %v4271 = vadd.f32 %v4197, %v4270
    %v4272 = vpop.f32.mrb[0].mxu0
    %4273 = vmatprep.mubr.f32.mxu0 0.0
    %4274 = vmatmul.mubr.f32.gmra.mrb[0].mxu0 %v4202
    %v4275 = vpop.f32.mrb[0].mxu0
    %v4276 = vadd.f32 %v4197, %v4275
    %v4277 = vpop.f32.mrb[0].mxu0
    %4278 = vdwg.mxu0
    %v4281 = vcombine.high %v4271, %v4271
    %v4283 = vunpack.c.l.s4 1983009808
    %v4284 = vunpack.c.0.s8 %v4283
    %v4285 = vlaneseq
    %v4286 = vshrl.u32 %v4285, 7
    %v4287 = vsub.s32 %v4284, %v4286
    %v4288 = vrot.slane %v4271, %v4287
    %v4290 = vunpack.c.l.s4 1983009808
    %v4291 = vunpack.c.0.s8 %v4290
    %v4292 = vlaneseq
    %v4293 = vshrl.u32 %v4292, 7
    %v4294 = vsub.s32 %v4291, %v4293
    %v4295 = vrot.slane %v4281, %v4294
    %v4296 = vcombine.high %v4288, %v4288
    %v4297 = vcombine.high %v4295, %v4295
    %v4298 = vcombine.high %v4276, %v4276
    %v4300 = vunpack.c.l.s4 1983009808
    %v4301 = vunpack.c.0.s8 %v4300
    %v4302 = vlaneseq
    %v4303 = vshrl.u32 %v4302, 7
    %v4304 = vsub.s32 %v4301, %v4303
    %v4305 = vrot.slane %v4276, %v4304
    %v4307 = vunpack.c.l.s4 1983009808
    %v4308 = vunpack.c.0.s8 %v4307
    %v4309 = vlaneseq
    %v4310 = vshrl.u32 %v4309, 7
    %v4311 = vsub.s32 %v4308, %v4310
    %v4312 = vrot.slane %v4298, %v4311
    %v4313 = vcombine.high %v4305, %v4305
    %v4314 = vcombine.high %v4312, %v4312
    %v4323 = vadd.f32 %v4051, %v4288
    %v4324 = vadd.f32 %v4052, %v4296
    %v4325 = vadd.f32 %v4053, %v4295
    %v4326 = vadd.f32 %v4054, %v4297
    %v4327 = vadd.f32 %v4055, %v4305
    %v4328 = vadd.f32 %v4056, %v4313
    %v4329 = vadd.f32 %v4057, %v4312
    %v4330 = vadd.f32 %v4058, %v4314
    %v4339 = vcombine.low %v4323, %v4324
    %v4340 = vcombine.low %v4325, %v4326
    %v4342 = vunpack.c.l.s4 1983009808
    %v4343 = vunpack.c.0.s8 %v4342
    %v4344 = vlaneseq
    %v4345 = vshrl.u32 %v4344, 7
    %v4346 = vsub.s32 %v4343, %v4345
    %v4347 = vrot.slane %v4339, %v4346
    %v4349 = vunpack.c.l.s4 1983009808
    %v4350 = vunpack.c.0.s8 %v4349
    %v4351 = vlaneseq
    %v4352 = vshrl.u32 %v4351, 7
    %v4353 = vsub.s32 %v4350, %v4352
    %v4354 = vrot.slane %v4340, %v4353
    %v4355 = vcombine.low %v4347, %v4354
    %v4356 = vcombine.low %v4327, %v4328
    %v4357 = vcombine.low %v4329, %v4330
    %v4359 = vunpack.c.l.s4 1983009808
    %v4360 = vunpack.c.0.s8 %v4359
    %v4361 = vlaneseq
    %v4362 = vshrl.u32 %v4361, 7
    %v4363 = vsub.s32 %v4360, %v4362
    %v4364 = vrot.slane %v4356, %v4363
    %v4366 = vunpack.c.l.s4 1983009808
    %v4367 = vunpack.c.0.s8 %v4366
    %v4368 = vlaneseq
    %v4369 = vshrl.u32 %v4368, 7
    %v4370 = vsub.s32 %v4367, %v4369
    %v4371 = vrot.slane %v4357, %v4370
    %v4372 = vcombine.low %v4364, %v4371
    %v4375 = vsel %vm160, %v4355, 0.0
    %4376 = vadd.xlane.f32.xlu0 %v4375
    %v4377 = vpop.xlane.xlu0 %4376
    %v4378 = vsel %vm160, %v4372, 0.0
    %4379 = vadd.xlane.f32.xlu0 %v4378
    %v4380 = vpop.xlane.xlu0 %4379
    %v4381 = vmul.f32 %v4377, %v1492
    %v4382 = vmul.f32 %v4380, %v1492
    %v4386 = vunpack.c.l.s4 269488144
    %v4387 = vunpack.c.0.s8 %v4386
    %v4388 = vlaneseq
    %v4389 = vshrl.u32 %v4388, 7
    %v4390 = vsub.s32 %v4387, %v4389
    %v4391 = vrot.slane %v4381, %v4390
    %v4393 = vunpack.c.l.s4 842150450
    %v4394 = vunpack.c.0.s8 %v4393
    %v4395 = vlaneseq
    %v4396 = vshrl.u32 %v4395, 7
    %v4397 = vsub.s32 %v4394, %v4396
    %v4398 = vrot.slane %v4381, %v4397
    %v4400 = vunpack.c.l.s4 1414812756
    %v4401 = vunpack.c.0.s8 %v4400
    %v4402 = vlaneseq
    %v4403 = vshrl.u32 %v4402, 7
    %v4404 = vsub.s32 %v4401, %v4403
    %v4405 = vrot.slane %v4381, %v4404
    %v4407 = vunpack.c.l.s4 1987475062
    %v4408 = vunpack.c.0.s8 %v4407
    %v4409 = vlaneseq
    %v4410 = vshrl.u32 %v4409, 7
    %v4411 = vsub.s32 %v4408, %v4410
    %v4412 = vrot.slane %v4381, %v4411
    %v4414 = vunpack.c.l.s4 269488144
    %v4415 = vunpack.c.0.s8 %v4414
    %v4416 = vlaneseq
    %v4417 = vshrl.u32 %v4416, 7
    %v4418 = vsub.s32 %v4415, %v4417
    %v4419 = vrot.slane %v4382, %v4418
    %v4421 = vunpack.c.l.s4 842150450
    %v4422 = vunpack.c.0.s8 %v4421
    %v4423 = vlaneseq
    %v4424 = vshrl.u32 %v4423, 7
    %v4425 = vsub.s32 %v4422, %v4424
    %v4426 = vrot.slane %v4382, %v4425
    %v4428 = vunpack.c.l.s4 1414812756
    %v4429 = vunpack.c.0.s8 %v4428
    %v4430 = vlaneseq
    %v4431 = vshrl.u32 %v4430, 7
    %v4432 = vsub.s32 %v4429, %v4431
    %v4433 = vrot.slane %v4382, %v4432
    %v4435 = vunpack.c.l.s4 1987475062
    %v4436 = vunpack.c.0.s8 %v4435
    %v4437 = vlaneseq
    %v4438 = vshrl.u32 %v4437, 7
    %v4439 = vsub.s32 %v4436, %v4438
    %v4440 = vrot.slane %v4382, %v4439
    %v4449 = vsub.f32 %v4323, %v4391
    %v4450 = vsub.f32 %v4324, %v4398
    %v4451 = vsub.f32 %v4325, %v4405
    %v4452 = vsub.f32 %v4326, %v4412
    %v4453 = vsub.f32 %v4327, %v4419
    %v4454 = vsub.f32 %v4328, %v4426
    %v4455 = vsub.f32 %v4329, %v4433
    %v4456 = vsub.f32 %v4330, %v4440
    %v4457 = vmul.f32 %v4449, %v4449
    %v4458 = vmul.f32 %v4450, %v4450
    %v4459 = vmul.f32 %v4451, %v4451
    %v4460 = vmul.f32 %v4452, %v4452
    %v4461 = vmul.f32 %v4453, %v4453
    %v4462 = vmul.f32 %v4454, %v4454
    %v4463 = vmul.f32 %v4455, %v4455
    %v4464 = vmul.f32 %v4456, %v4456
    %v4473 = vcombine.low %v4457, %v4458
    %v4474 = vcombine.low %v4459, %v4460
    %v4476 = vunpack.c.l.s4 1983009808
    %v4477 = vunpack.c.0.s8 %v4476
    %v4478 = vlaneseq
    %v4479 = vshrl.u32 %v4478, 7
    %v4480 = vsub.s32 %v4477, %v4479
    %v4481 = vrot.slane %v4473, %v4480
    %v4483 = vunpack.c.l.s4 1983009808
    %v4484 = vunpack.c.0.s8 %v4483
    %v4485 = vlaneseq
    %v4486 = vshrl.u32 %v4485, 7
    %v4487 = vsub.s32 %v4484, %v4486
    %v4488 = vrot.slane %v4474, %v4487
    %v4489 = vcombine.low %v4481, %v4488
    %v4490 = vcombine.low %v4461, %v4462
    %v4491 = vcombine.low %v4463, %v4464
    %v4493 = vunpack.c.l.s4 1983009808
    %v4494 = vunpack.c.0.s8 %v4493
    %v4495 = vlaneseq
    %v4496 = vshrl.u32 %v4495, 7
    %v4497 = vsub.s32 %v4494, %v4496
    %v4498 = vrot.slane %v4490, %v4497
    %v4500 = vunpack.c.l.s4 1983009808
    %v4501 = vunpack.c.0.s8 %v4500
    %v4502 = vlaneseq
    %v4503 = vshrl.u32 %v4502, 7
    %v4504 = vsub.s32 %v4501, %v4503
    %v4505 = vrot.slane %v4491, %v4504
    %v4506 = vcombine.low %v4498, %v4505
    %v4509 = vsel %vm160, %v4489, 0.0
    %4510 = vadd.xlane.f32.xlu0 %v4509
    %v4511 = vpop.xlane.xlu0 %4510
    %v4512 = vsel %vm160, %v4506, 0.0
    %4513 = vadd.xlane.f32.xlu0 %v4512
    %v4514 = vpop.xlane.xlu0 %4513
    %v4515 = vmul.f32 %v4511, %v1492
    %v4516 = vmul.f32 %v4514, %v1492
    %v4517 = vadd.f32 %v4515, 1e-05
    %v4518 = vadd.f32 %v4516, 1e-05
    %v4519 = vrsqrt.pop %v4517
    %v4520 = vrsqrt.pop %v4518
    %v4524 = vunpack.c.l.s4 269488144
    %v4525 = vunpack.c.0.s8 %v4524
    %v4526 = vlaneseq
    %v4527 = vshrl.u32 %v4526, 7
    %v4528 = vsub.s32 %v4525, %v4527
    %v4529 = vrot.slane %v4519, %v4528
    %v4531 = vunpack.c.l.s4 842150450
    %v4532 = vunpack.c.0.s8 %v4531
    %v4533 = vlaneseq
    %v4534 = vshrl.u32 %v4533, 7
    %v4535 = vsub.s32 %v4532, %v4534
    %v4536 = vrot.slane %v4519, %v4535
    %v4538 = vunpack.c.l.s4 1414812756
    %v4539 = vunpack.c.0.s8 %v4538
    %v4540 = vlaneseq
    %v4541 = vshrl.u32 %v4540, 7
    %v4542 = vsub.s32 %v4539, %v4541
    %v4543 = vrot.slane %v4519, %v4542
    %v4545 = vunpack.c.l.s4 1987475062
    %v4546 = vunpack.c.0.s8 %v4545
    %v4547 = vlaneseq
    %v4548 = vshrl.u32 %v4547, 7
    %v4549 = vsub.s32 %v4546, %v4548
    %v4550 = vrot.slane %v4519, %v4549
    %v4552 = vunpack.c.l.s4 269488144
    %v4553 = vunpack.c.0.s8 %v4552
    %v4554 = vlaneseq
    %v4555 = vshrl.u32 %v4554, 7
    %v4556 = vsub.s32 %v4553, %v4555
    %v4557 = vrot.slane %v4520, %v4556
    %v4559 = vunpack.c.l.s4 842150450
    %v4560 = vunpack.c.0.s8 %v4559
    %v4561 = vlaneseq
    %v4562 = vshrl.u32 %v4561, 7
    %v4563 = vsub.s32 %v4560, %v4562
    %v4564 = vrot.slane %v4520, %v4563
    %v4566 = vunpack.c.l.s4 1414812756
    %v4567 = vunpack.c.0.s8 %v4566
    %v4568 = vlaneseq
    %v4569 = vshrl.u32 %v4568, 7
    %v4570 = vsub.s32 %v4567, %v4569
    %v4571 = vrot.slane %v4520, %v4570
    %v4573 = vunpack.c.l.s4 1987475062
    %v4574 = vunpack.c.0.s8 %v4573
    %v4575 = vlaneseq
    %v4576 = vshrl.u32 %v4575, 7
    %v4577 = vsub.s32 %v4574, %v4576
    %v4578 = vrot.slane %v4520, %v4577
    %v4587 = vmul.f32 %v4449, %v4529
    %v4588 = vmul.f32 %v4450, %v4536
    %v4589 = vmul.f32 %v4451, %v4543
    %v4590 = vmul.f32 %v4452, %v4550
    %v4591 = vmul.f32 %v4453, %v4557
    %v4592 = vmul.f32 %v4454, %v4564
    %v4593 = vmul.f32 %v4455, %v4571
    %v4594 = vmul.f32 %v4456, %v4578
    %v4595 = vlaneseq
    %v4596 = vshrl.u32 %v4595, 7
    %v4597 = vsub.s32 6, %v4596
    %v4598 = vrot.slane %v2401, %v4597
    %v4600 = vcombine.high %v4598, %v4598
    %v4602 = vunpack.c.l.s4 1983009808
    %v4603 = vunpack.c.0.s8 %v4602
    %v4604 = vlaneseq
    %v4605 = vshrl.u32 %v4604, 7
    %v4606 = vsub.s32 %v4603, %v4605
    %v4607 = vrot.slane %v4598, %v4606
    %v4609 = vunpack.c.l.s4 1983009808
    %v4610 = vunpack.c.0.s8 %v4609
    %v4611 = vlaneseq
    %v4612 = vshrl.u32 %v4611, 7
    %v4613 = vsub.s32 %v4610, %v4612
    %v4614 = vrot.slane %v4600, %v4613
    %v4615 = vcombine.high %v4607, %v4607
    %v4616 = vcombine.high %v4614, %v4614
    %v4621 = vmul.f32 %v4587, %v4607
    %v4622 = vmul.f32 %v4588, %v4615
    %v4623 = vmul.f32 %v4589, %v4614
    %v4624 = vmul.f32 %v4590, %v4616
    %v4625 = vmul.f32 %v4591, %v4607
    %v4626 = vmul.f32 %v4592, %v4615
    %v4627 = vmul.f32 %v4593, %v4614
    %v4628 = vmul.f32 %v4594, %v4616
    %v4629 = vlaneseq
    %v4630 = vshrl.u32 %v4629, 7
    %v4631 = vsub.s32 7, %v4630
    %v4632 = vrot.slane %v2401, %v4631
    %v4634 = vcombine.high %v4632, %v4632
    %v4636 = vunpack.c.l.s4 1983009808
    %v4637 = vunpack.c.0.s8 %v4636
    %v4638 = vlaneseq
    %v4639 = vshrl.u32 %v4638, 7
    %v4640 = vsub.s32 %v4637, %v4639
    %v4641 = vrot.slane %v4632, %v4640
    %v4643 = vunpack.c.l.s4 1983009808
    %v4644 = vunpack.c.0.s8 %v4643
    %v4645 = vlaneseq
    %v4646 = vshrl.u32 %v4645, 7
    %v4647 = vsub.s32 %v4644, %v4646
    %v4648 = vrot.slane %v4634, %v4647
    %v4649 = vcombine.high %v4641, %v4641
    %v4650 = vcombine.high %v4648, %v4648
    %v4655 = vadd.f32 %v4621, %v4641
    %v4656 = vadd.f32 %v4622, %v4649
    %v4657 = vadd.f32 %v4623, %v4648
    %v4658 = vadd.f32 %v4624, %v4650
    %v4659 = vadd.f32 %v4625, %v4641
    %v4660 = vadd.f32 %v4626, %v4649
    %v4661 = vadd.f32 %v4627, %v4648
    %v4662 = vadd.f32 %v4628, %v4650
    %vm4663 = vcmask 254976
    %4664 = vst.msk [vmem:[#allocation7] sm:$0x3] %vm4663, %v4655
    %4665 = vst.msk [vmem:[#allocation7 + $0x2] sm:$0x3] %vm4663, %v4656
    %4666 = vst.msk [vmem:[#allocation7 + $0x4] sm:$0x3] %vm4663, %v4657
    %4667 = vst.msk [vmem:[#allocation7 + $0x6] sm:$0x3] %vm4663, %v4658
    %4668 = vst.msk [vmem:[#allocation7 + $0x8] sm:$0x3] %vm4663, %v4659
    %4669 = vst.msk [vmem:[#allocation7 + $0xa] sm:$0x3] %vm4663, %v4660
    %4670 = vst.msk [vmem:[#allocation7 + $0xc] sm:$0x3] %vm4663, %v4661
    %4671 = vst.msk [vmem:[#allocation7 + $0xe] sm:$0x3] %vm4663, %v4662
    // Predicated region
    $region18: #{transformer_encoder_layer.1} parent=1 // pred_check
      _
    $region19: #{transformer_encoder_layer.1} parent=1 // pred_check_branch
      %4673 = sbr.rel (0) target = $region21
    $region20: #{transformer_encoder_layer.1} parent=1 // pred_region
      %s4675 = ssub.s32 256, 256
      %4676 = vsyncadd [#allocation4], %s4675
      %s4677 = sshll.u32 [#allocation7], 4
      %s4678 = int_to_ptr.vmem [resolvable:$true] %s4677
      %4683 = dma.vmem_to_hbm [thread:$0]  %s4678, 256, %s2, [#allocation4], 32, 32, 2
    $region21: #{transformer_encoder_layer.1} parent=1 // pred_fallthru
      _
    // Predicated region
    $region22: #{transformer_encoder_layer.1} parent=1 // pred_check
      _
    $region23: #{transformer_encoder_layer.1} parent=1 // pred_check_branch
      %4685 = sbr.rel (0) target = $region25
    $region24: #{transformer_encoder_layer.1} parent=1 // pred_region
      %4686 = dma.done [#allocation4], 256
    $region25: #{transformer_encoder_layer.1} parent=1 // pred_fallthru
      _
    %4687 = vsyncpa [#allocation3], 1
    %4688 = vsyncpa [#allocation6], 1
    %4689 = vsyncpa [#allocation4], 1

</llo_original>
